<compile_context>
chip_gen: v5e
topology: v5e:2x2
jax: 0.10.0
libtpu: 0.0.40
codegen_flags: <defaults>
</compile_context>

<pallas_src>
import functools

import numpy as np
import jax
import jax.numpy as jnp
from jax.experimental import pallas as pl
from jax.experimental.pallas import tpu as pltpu

F32 = jnp.float32
BF16 = jnp.bfloat16


# ============================== Pallas kernels ==============================

def _conv3x3_stats_kernel(x_ref, w_ref, b_ref, y_ref, stats_ref):
    """Fused 3x3 conv (padding=1) + bias, plus per-channel BN statistics.

    x_ref:     (1, H+2, W+2, Cin)  bf16 — full padded image, resident per batch
    w_ref:     (9, Cin, Cout)      bf16 — tap-major packed conv weights
    b_ref:     (1, Cout)           f32
    y_ref:     (1, TH, W, Cout)    f32  — conv+bias output row tile
    stats_ref: (1, 2, Cout)        f32  — per-batch [sum; sum of squares]
    """
    i = pl.program_id(1)                       # row-tile index
    TH = y_ref.shape[1]
    W = y_ref.shape[2]
    Cout = y_ref.shape[3]
    Cin = x_ref.shape[3]
    row0 = pl.multiple_of(i * TH, TH)

    acc = jnp.zeros((TH * W, Cout), jnp.float32)
    for dh in range(3):
        for dw in range(3):
            # Shifted tap window of the resident padded image (no im2col).
            patch = x_ref[0, pl.ds(row0 + dh, TH), pl.ds(dw, W), :]
            patch = patch.reshape(TH * W, Cin)
            acc = acc + jnp.dot(patch, w_ref[dh * 3 + dw],
                                preferred_element_type=jnp.float32)
    acc = acc + b_ref[...]                     # bias in f32 epilogue
    y_ref[0] = acc.reshape(TH, W, Cout)

    # Fused BN statistics: accumulate across the (sequential) row-tile axis.
    @pl.when(i == 0)
    def _():
        stats_ref[...] = jnp.zeros_like(stats_ref)

    s1 = jnp.sum(acc, axis=0, keepdims=True)          # (1, Cout)
    s2 = jnp.sum(acc * acc, axis=0, keepdims=True)    # (1, Cout)
    stats_ref[0] += jnp.concatenate([s1, s2], axis=0)


def _bn_relu_kernel(y_ref, stats_ref, g_ref, beta_ref, o_ref, *, count, eps):
    """Apply BatchNorm (batch stats) affine + ReLU to a conv-output tile.

    y_ref:     (1, TH, W, C) f32      stats_ref: (2, C) f32
    g_ref/beta_ref: (1, C) f32        o_ref: (1, TH, W, C) f32
    """
    inv_n = 1.0 / count
    mean = stats_ref[0:1, :] * inv_n
    ex2 = stats_ref[1:2, :] * inv_n
    var = jnp.maximum(ex2 - mean * mean, 0.0)   # guard against cancellation
    inv = jax.lax.rsqrt(var + eps)
    scale = g_ref[...] * inv                    # (1, C)
    shift = beta_ref[...] - mean * scale        # (1, C)
    y = y_ref[0]                                # (TH, W, C)
    o_ref[0] = jnp.maximum(y * scale[None] + shift[None], 0.0)


# =============================== wrappers ===================================

def conv3x3_bn_relu(x_nhwc, w9, bias, gamma, beta, *, eps=1e-5, tile_h=8):
    """Conv2d(3x3, padding=1, bias) -> BatchNorm2d (batch stats) -> ReLU.

    x_nhwc: (B, H, W, Cin) f32, channels-last.
    w9:     (9, Cin, Cout) bf16 (tap-major packed), bias/gamma/beta: (1, Cout).
    Returns (B, H, W, Cout) f32.
    """
    B, H, W, Cin = x_nhwc.shape
    Cout = w9.shape[-1]
    TH = tile_h if H % tile_h == 0 else H
    n_tiles = H // TH

    xp = jnp.pad(x_nhwc, ((0, 0), (1, 1), (1, 1), (0, 0))).astype(BF16)

    y, stats_b = pl.pallas_call(
        _conv3x3_stats_kernel,
        out_shape=(jax.ShapeDtypeStruct((B, H, W, Cout), F32),
                   jax.ShapeDtypeStruct((B, 2, Cout), F32)),
        grid_spec=pltpu.PrefetchScalarGridSpec(
            num_scalar_prefetch=0,
            grid=(B, n_tiles),
            in_specs=[
                # Full padded image, VMEM-resident across row tiles.
                pl.BlockSpec((1, H + 2, W + 2, Cin), lambda b, i: (b, 0, 0, 0)),
                pl.BlockSpec((9, Cin, Cout), lambda b, i: (0, 0, 0)),
                pl.BlockSpec((1, Cout), lambda b, i: (0, 0)),
            ],
            out_specs=(
                pl.BlockSpec((1, TH, W, Cout), lambda b, i: (b, i, 0, 0)),
                # Per-batch stats accumulator, resident across row tiles.
                pl.BlockSpec((1, 2, Cout), lambda b, i: (b, 0, 0)),
            ),
        ),
        compiler_params=pltpu.CompilerParams(
            dimension_semantics=("parallel", "arbitrary")),
    )(xp, w9, bias)

    # Tiny glue reduction over the batch axis (keeps the conv grid parallel).
    stats = jnp.sum(stats_b, axis=0)                       # (2, Cout)

    out = pl.pallas_call(
        functools.partial(_bn_relu_kernel, count=float(B * H * W), eps=eps),
        out_shape=jax.ShapeDtypeStruct((B, H, W, Cout), F32),
        grid_spec=pltpu.PrefetchScalarGridSpec(
            num_scalar_prefetch=0,
            grid=(B, n_tiles),
            in_specs=[
                pl.BlockSpec((1, TH, W, Cout), lambda b, i: (b, i, 0, 0)),
                pl.BlockSpec((2, Cout), lambda b, i: (0, 0)),
                pl.BlockSpec((1, Cout), lambda b, i: (0, 0)),
                pl.BlockSpec((1, Cout), lambda b, i: (0, 0)),
            ],
            out_specs=pl.BlockSpec((1, TH, W, Cout), lambda b, i: (b, i, 0, 0)),
        ),
        compiler_params=pltpu.CompilerParams(
            dimension_semantics=("parallel", "parallel")),
    )(y, stats, gamma, beta)
    return out


def u_double_conv(x_nchw, kp):
    """Forward pass of U_double_conv. x: (B, Cin, H, W) NCHW -> (B, Cout, H, W)."""
    x = jnp.transpose(x_nchw, (0, 2, 3, 1))        # NCHW -> NHWC (channels on lanes)
    x = conv3x3_bn_relu(x, kp["w1"], kp["b1"], kp["g1"], kp["be1"])
    x = conv3x3_bn_relu(x, kp["w2"], kp["b2"], kp["g2"], kp["be2"])
    return jnp.transpose(x, (0, 3, 1, 2))          # back to NCHW


# ======================= parameters & pure-JAX reference ====================

def init_params(key, in_ch, out_ch):
    """PyTorch-layout parameters (OIHW conv weights, per-channel BN affine)."""
    ks = jax.random.split(key, 6)

    def conv_w(k, ci, co):
        return jax.random.normal(k, (co, ci, 3, 3), F32) * (1.0 / np.sqrt(ci * 9))

    return {
        "conv1_w": conv_w(ks[0], in_ch, out_ch),
        "conv1_b": 0.1 * jax.random.normal(ks[1], (out_ch,), F32),
        "bn1_g": 1.0 + 0.1 * jax.random.normal(ks[2], (out_ch,), F32),
        "bn1_b": 0.1 * jax.random.normal(ks[3], (out_ch,), F32),
        "conv2_w": conv_w(ks[4], out_ch, out_ch),
        "conv2_b": 0.1 * jax.random.normal(ks[5], (out_ch,), F32),
        "bn2_g": jnp.ones((out_ch,), F32),
        "bn2_b": jnp.zeros((out_ch,), F32),
    }


def prep_kernel_params(p):
    """One-time packing: conv (O,I,3,3) -> tap-major (9,I,O) bf16; vectors -> (1,C)."""
    def pack(w):
        o, i_, _, _ = w.shape
        return jnp.transpose(w, (2, 3, 1, 0)).reshape(9, i_, o).astype(BF16)

    r2 = lambda v: v.reshape(1, -1).astype(F32)
    return {
        "w1": pack(p["conv1_w"]), "b1": r2(p["conv1_b"]),
        "g1": r2(p["bn1_g"]), "be1": r2(p["bn1_b"]),
        "w2": pack(p["conv2_w"]), "b2": r2(p["conv2_b"]),
        "g2": r2(p["bn2_g"]), "be2": r2(p["bn2_b"]),
    }


def ref_u_double_conv(x, p, eps=1e-5):
    """Pure-JAX reference matching PyTorch training-mode forward."""
    def block(x, w, b, g, be):
        y = jax.lax.conv_general_dilated(
            x, w, window_strides=(1, 1), padding=((1, 1), (1, 1)),
            dimension_numbers=("NCHW", "OIHW", "NCHW"))
        y = y + b[None, :, None, None]
        mean = jnp.mean(y, axis=(0, 2, 3), keepdims=True)
        var = jnp.mean(jnp.square(y - mean), axis=(0, 2, 3), keepdims=True)
        y = (y - mean) * jax.lax.rsqrt(var + eps)
        y = y * g[None, :, None, None] + be[None, :, None, None]
        return jnp.maximum(y, 0.0)

    x = block(x, p["conv1_w"], p["conv1_b"], p["bn1_g"], p["bn1_b"])
    x = block(x, p["conv2_w"], p["conv2_b"], p["bn2_g"], p["bn2_b"])
    return x


# ==================================== main ==================================

if __name__ == "__main__":
    key = jax.random.PRNGKey(0)
    k_input, k_params = jax.random.split(key)

    B, C_IN, C_OUT, H, W = 2, 4, 32, 16, 16
    x = jax.random.normal(k_input, (B, C_IN, H, W), F32)
    params = init_params(k_params, C_IN, C_OUT)
    kparams = prep_kernel_params(params)

    fwd = jax.jit(lambda inp: u_double_conv(inp, kparams))
    out = jax.block_until_ready(fwd(x))

    assert out.shape == (B, C_OUT, H, W), out.shape
    assert bool(jnp.all(jnp.isfinite(out)))

    ref = ref_u_double_conv(x, params)
    np.testing.assert_allclose(np.asarray(out), np.asarray(ref),
                               rtol=5e-2, atol=5e-2)
    print("KERNEL_OK")
</pallas_src>

<mosaic_0001>
module attributes {stable_mosaic.version = 11 : i64} {
  func.func @_conv3x3_stats_kernel(%arg0: i32, %arg1: i32, %arg2: memref<1x18x18x4xbf16, #tpu.memory_space<vmem>>, %arg3: memref<9x4x32xbf16, #tpu.memory_space<vmem>>, %arg4: memref<1x32xf32, #tpu.memory_space<vmem>>, %arg5: memref<1x8x16x32xf32, #tpu.memory_space<vmem>>, %arg6: memref<1x2x32xf32, #tpu.memory_space<vmem>>) attributes {dimension_semantics = [#tpu.dimension_semantics<parallel>, #tpu.dimension_semantics<arbitrary>], iteration_bounds = array<i64: 2, 2>, scalar_prefetch = 0 : i64, scratch_operands = 0 : i64, tpu.core_type = #tpu.core_type<tc>, window_params = [{transform_indices = @transform_0, window_bounds = array<i64: 1, 18, 18, 4>}, {pipeline_mode = #tpu.pipeline_mode<synchronous>, transform_indices = @transform_1, window_bounds = array<i64: 9, 4, 32>}, {pipeline_mode = #tpu.pipeline_mode<synchronous>, transform_indices = @transform_2, window_bounds = array<i64: 1, 32>}, {transform_indices = @transform_3, window_bounds = array<i64: 1, 8, 16, 32>}, {transform_indices = @transform_4, window_bounds = array<i64: 1, 2, 32>}]} {
    %c8_i32 = arith.constant 8 : i32
    %0 = arith.muli %arg1, %c8_i32 : i32
    %1 = tpu.assume_multiple %0, 8 : i32
    %cst = arith.constant 0.000000e+00 : f32
    %2 = vector.broadcast %cst : f32 to vector<128x32xf32>
    %c0_i32 = arith.constant 0 : i32
    %3 = arith.addi %1, %c0_i32 : i32
    %c0 = arith.constant 0 : index
    %4 = arith.index_cast %3 : i32 to index
    %c0_0 = arith.constant 0 : index
    %c0_1 = arith.constant 0 : index
    %5 = vector.load %arg2[%c0, %4, %c0_0, %c0_1] : memref<1x18x18x4xbf16, #tpu.memory_space<vmem>>, vector<1x8x16x4xbf16>
    %6 = vector.shape_cast %5 : vector<1x8x16x4xbf16> to vector<8x16x4xbf16>
    %7 = vector.shape_cast %6 : vector<8x16x4xbf16> to vector<128x4xbf16>
    %c0_2 = arith.constant 0 : index
    %c0_3 = arith.constant 0 : index
    %c0_4 = arith.constant 0 : index
    %8 = vector.load %arg3[%c0_2, %c0_3, %c0_4] : memref<9x4x32xbf16, #tpu.memory_space<vmem>>, vector<1x4x32xbf16>
    %9 = vector.shape_cast %8 : vector<1x4x32xbf16> to vector<4x32xbf16>
    %cst_5 = arith.constant dense<0.000000e+00> : vector<128x32xf32>
    %10 = tpu.matmul %7, %9, %cst_5 {dimension_numbers = #tpu.dot_dimension_numbers<[1], [0], [0], [1], [0, 0, 1, 1], [], []>} : vector<128x4xbf16>, vector<4x32xbf16>, vector<128x32xf32> -> vector<128x32xf32>
    %11 = arith.addf %2, %10 : vector<128x32xf32>
    %c0_i32_6 = arith.constant 0 : i32
    %12 = arith.addi %1, %c0_i32_6 : i32
    %c0_7 = arith.constant 0 : index
    %13 = arith.index_cast %12 : i32 to index
    %c1 = arith.constant 1 : index
    %c0_8 = arith.constant 0 : index
    %14 = vector.load %arg2[%c0_7, %13, %c1, %c0_8] : memref<1x18x18x4xbf16, #tpu.memory_space<vmem>>, vector<1x8x16x4xbf16>
    %15 = vector.shape_cast %14 : vector<1x8x16x4xbf16> to vector<8x16x4xbf16>
    %16 = vector.shape_cast %15 : vector<8x16x4xbf16> to vector<128x4xbf16>
    %c1_9 = arith.constant 1 : index
    %c0_10 = arith.constant 0 : index
    %c0_11 = arith.constant 0 : index
    %17 = vector.load %arg3[%c1_9, %c0_10, %c0_11] : memref<9x4x32xbf16, #tpu.memory_space<vmem>>, vector<1x4x32xbf16>
    %18 = vector.shape_cast %17 : vector<1x4x32xbf16> to vector<4x32xbf16>
    %cst_12 = arith.constant dense<0.000000e+00> : vector<128x32xf32>
    %19 = tpu.matmul %16, %18, %cst_12 {dimension_numbers = #tpu.dot_dimension_numbers<[1], [0], [0], [1], [0, 0, 1, 1], [], []>} : vector<128x4xbf16>, vector<4x32xbf16>, vector<128x32xf32> -> vector<128x32xf32>
    %20 = arith.addf %11, %19 : vector<128x32xf32>
    %c0_i32_13 = arith.constant 0 : i32
    %21 = arith.addi %1, %c0_i32_13 : i32
    %c0_14 = arith.constant 0 : index
    %22 = arith.index_cast %21 : i32 to index
    %c2 = arith.constant 2 : index
    %c0_15 = arith.constant 0 : index
    %23 = vector.load %arg2[%c0_14, %22, %c2, %c0_15] : memref<1x18x18x4xbf16, #tpu.memory_space<vmem>>, vector<1x8x16x4xbf16>
    %24 = vector.shape_cast %23 : vector<1x8x16x4xbf16> to vector<8x16x4xbf16>
    %25 = vector.shape_cast %24 : vector<8x16x4xbf16> to vector<128x4xbf16>
    %c2_16 = arith.constant 2 : index
    %c0_17 = arith.constant 0 : index
    %c0_18 = arith.constant 0 : index
    %26 = vector.load %arg3[%c2_16, %c0_17, %c0_18] : memref<9x4x32xbf16, #tpu.memory_space<vmem>>, vector<1x4x32xbf16>
    %27 = vector.shape_cast %26 : vector<1x4x32xbf16> to vector<4x32xbf16>
    %cst_19 = arith.constant dense<0.000000e+00> : vector<128x32xf32>
    %28 = tpu.matmul %25, %27, %cst_19 {dimension_numbers = #tpu.dot_dimension_numbers<[1], [0], [0], [1], [0, 0, 1, 1], [], []>} : vector<128x4xbf16>, vector<4x32xbf16>, vector<128x32xf32> -> vector<128x32xf32>
    %29 = arith.addf %20, %28 : vector<128x32xf32>
    %c1_i32 = arith.constant 1 : i32
    %30 = arith.addi %1, %c1_i32 : i32
    %c0_20 = arith.constant 0 : index
    %31 = arith.index_cast %30 : i32 to index
    %c0_21 = arith.constant 0 : index
    %c0_22 = arith.constant 0 : index
    %32 = vector.load %arg2[%c0_20, %31, %c0_21, %c0_22] : memref<1x18x18x4xbf16, #tpu.memory_space<vmem>>, vector<1x8x16x4xbf16>
    %33 = vector.shape_cast %32 : vector<1x8x16x4xbf16> to vector<8x16x4xbf16>
    %34 = vector.shape_cast %33 : vector<8x16x4xbf16> to vector<128x4xbf16>
    %c3 = arith.constant 3 : index
    %c0_23 = arith.constant 0 : index
    %c0_24 = arith.constant 0 : index
    %35 = vector.load %arg3[%c3, %c0_23, %c0_24] : memref<9x4x32xbf16, #tpu.memory_space<vmem>>, vector<1x4x32xbf16>
    %36 = vector.shape_cast %35 : vector<1x4x32xbf16> to vector<4x32xbf16>
    %cst_25 = arith.constant dense<0.000000e+00> : vector<128x32xf32>
    %37 = tpu.matmul %34, %36, %cst_25 {dimension_numbers = #tpu.dot_dimension_numbers<[1], [0], [0], [1], [0, 0, 1, 1], [], []>} : vector<128x4xbf16>, vector<4x32xbf16>, vector<128x32xf32> -> vector<128x32xf32>
    %38 = arith.addf %29, %37 : vector<128x32xf32>
    %c1_i32_26 = arith.constant 1 : i32
    %39 = arith.addi %1, %c1_i32_26 : i32
    %c0_27 = arith.constant 0 : index
    %40 = arith.index_cast %39 : i32 to index
    %c1_28 = arith.constant 1 : index
    %c0_29 = arith.constant 0 : index
    %41 = vector.load %arg2[%c0_27, %40, %c1_28, %c0_29] : memref<1x18x18x4xbf16, #tpu.memory_space<vmem>>, vector<1x8x16x4xbf16>
    %42 = vector.shape_cast %41 : vector<1x8x16x4xbf16> to vector<8x16x4xbf16>
    %43 = vector.shape_cast %42 : vector<8x16x4xbf16> to vector<128x4xbf16>
    %c4 = arith.constant 4 : index
    %c0_30 = arith.constant 0 : index
    %c0_31 = arith.constant 0 : index
    %44 = vector.load %arg3[%c4, %c0_30, %c0_31] : memref<9x4x32xbf16, #tpu.memory_space<vmem>>, vector<1x4x32xbf16>
    %45 = vector.shape_cast %44 : vector<1x4x32xbf16> to vector<4x32xbf16>
    %cst_32 = arith.constant dense<0.000000e+00> : vector<128x32xf32>
    %46 = tpu.matmul %43, %45, %cst_32 {dimension_numbers = #tpu.dot_dimension_numbers<[1], [0], [0], [1], [0, 0, 1, 1], [], []>} : vector<128x4xbf16>, vector<4x32xbf16>, vector<128x32xf32> -> vector<128x32xf32>
    %47 = arith.addf %38, %46 : vector<128x32xf32>
    %c1_i32_33 = arith.constant 1 : i32
    %48 = arith.addi %1, %c1_i32_33 : i32
    %c0_34 = arith.constant 0 : index
    %49 = arith.index_cast %48 : i32 to index
    %c2_35 = arith.constant 2 : index
    %c0_36 = arith.constant 0 : index
    %50 = vector.load %arg2[%c0_34, %49, %c2_35, %c0_36] : memref<1x18x18x4xbf16, #tpu.memory_space<vmem>>, vector<1x8x16x4xbf16>
    %51 = vector.shape_cast %50 : vector<1x8x16x4xbf16> to vector<8x16x4xbf16>
    %52 = vector.shape_cast %51 : vector<8x16x4xbf16> to vector<128x4xbf16>
    %c5 = arith.constant 5 : index
    %c0_37 = arith.constant 0 : index
    %c0_38 = arith.constant 0 : index
    %53 = vector.load %arg3[%c5, %c0_37, %c0_38] : memref<9x4x32xbf16, #tpu.memory_space<vmem>>, vector<1x4x32xbf16>
    %54 = vector.shape_cast %53 : vector<1x4x32xbf16> to vector<4x32xbf16>
    %cst_39 = arith.constant dense<0.000000e+00> : vector<128x32xf32>
    %55 = tpu.matmul %52, %54, %cst_39 {dimension_numbers = #tpu.dot_dimension_numbers<[1], [0], [0], [1], [0, 0, 1, 1], [], []>} : vector<128x4xbf16>, vector<4x32xbf16>, vector<128x32xf32> -> vector<128x32xf32>
    %56 = arith.addf %47, %55 : vector<128x32xf32>
    %c2_i32 = arith.constant 2 : i32
    %57 = arith.addi %1, %c2_i32 : i32
    %c0_40 = arith.constant 0 : index
    %58 = arith.index_cast %57 : i32 to index
    %c0_41 = arith.constant 0 : index
    %c0_42 = arith.constant 0 : index
    %59 = vector.load %arg2[%c0_40, %58, %c0_41, %c0_42] : memref<1x18x18x4xbf16, #tpu.memory_space<vmem>>, vector<1x8x16x4xbf16>
    %60 = vector.shape_cast %59 : vector<1x8x16x4xbf16> to vector<8x16x4xbf16>
    %61 = vector.shape_cast %60 : vector<8x16x4xbf16> to vector<128x4xbf16>
    %c6 = arith.constant 6 : index
    %c0_43 = arith.constant 0 : index
    %c0_44 = arith.constant 0 : index
    %62 = vector.load %arg3[%c6, %c0_43, %c0_44] : memref<9x4x32xbf16, #tpu.memory_space<vmem>>, vector<1x4x32xbf16>
    %63 = vector.shape_cast %62 : vector<1x4x32xbf16> to vector<4x32xbf16>
    %cst_45 = arith.constant dense<0.000000e+00> : vector<128x32xf32>
    %64 = tpu.matmul %61, %63, %cst_45 {dimension_numbers = #tpu.dot_dimension_numbers<[1], [0], [0], [1], [0, 0, 1, 1], [], []>} : vector<128x4xbf16>, vector<4x32xbf16>, vector<128x32xf32> -> vector<128x32xf32>
    %65 = arith.addf %56, %64 : vector<128x32xf32>
    %c2_i32_46 = arith.constant 2 : i32
    %66 = arith.addi %1, %c2_i32_46 : i32
    %c0_47 = arith.constant 0 : index
    %67 = arith.index_cast %66 : i32 to index
    %c1_48 = arith.constant 1 : index
    %c0_49 = arith.constant 0 : index
    %68 = vector.load %arg2[%c0_47, %67, %c1_48, %c0_49] : memref<1x18x18x4xbf16, #tpu.memory_space<vmem>>, vector<1x8x16x4xbf16>
    %69 = vector.shape_cast %68 : vector<1x8x16x4xbf16> to vector<8x16x4xbf16>
    %70 = vector.shape_cast %69 : vector<8x16x4xbf16> to vector<128x4xbf16>
    %c7 = arith.constant 7 : index
    %c0_50 = arith.constant 0 : index
    %c0_51 = arith.constant 0 : index
    %71 = vector.load %arg3[%c7, %c0_50, %c0_51] : memref<9x4x32xbf16, #tpu.memory_space<vmem>>, vector<1x4x32xbf16>
    %72 = vector.shape_cast %71 : vector<1x4x32xbf16> to vector<4x32xbf16>
    %cst_52 = arith.constant dense<0.000000e+00> : vector<128x32xf32>
    %73 = tpu.matmul %70, %72, %cst_52 {dimension_numbers = #tpu.dot_dimension_numbers<[1], [0], [0], [1], [0, 0, 1, 1], [], []>} : vector<128x4xbf16>, vector<4x32xbf16>, vector<128x32xf32> -> vector<128x32xf32>
    %74 = arith.addf %65, %73 : vector<128x32xf32>
    %c2_i32_53 = arith.constant 2 : i32
    %75 = arith.addi %1, %c2_i32_53 : i32
    %c0_54 = arith.constant 0 : index
    %76 = arith.index_cast %75 : i32 to index
    %c2_55 = arith.constant 2 : index
    %c0_56 = arith.constant 0 : index
    %77 = vector.load %arg2[%c0_54, %76, %c2_55, %c0_56] : memref<1x18x18x4xbf16, #tpu.memory_space<vmem>>, vector<1x8x16x4xbf16>
    %78 = vector.shape_cast %77 : vector<1x8x16x4xbf16> to vector<8x16x4xbf16>
    %79 = vector.shape_cast %78 : vector<8x16x4xbf16> to vector<128x4xbf16>
    %c8 = arith.constant 8 : index
    %c0_57 = arith.constant 0 : index
    %c0_58 = arith.constant 0 : index
    %80 = vector.load %arg3[%c8, %c0_57, %c0_58] : memref<9x4x32xbf16, #tpu.memory_space<vmem>>, vector<1x4x32xbf16>
    %81 = vector.shape_cast %80 : vector<1x4x32xbf16> to vector<4x32xbf16>
    %cst_59 = arith.constant dense<0.000000e+00> : vector<128x32xf32>
    %82 = tpu.matmul %79, %81, %cst_59 {dimension_numbers = #tpu.dot_dimension_numbers<[1], [0], [0], [1], [0, 0, 1, 1], [], []>} : vector<128x4xbf16>, vector<4x32xbf16>, vector<128x32xf32> -> vector<128x32xf32>
    %83 = arith.addf %74, %82 : vector<128x32xf32>
    %c0_60 = arith.constant 0 : index
    %c0_61 = arith.constant 0 : index
    %84 = vector.load %arg4[%c0_60, %c0_61] : memref<1x32xf32, #tpu.memory_space<vmem>>, vector<1x32xf32>
    %85 = vector.broadcast %84 : vector<1x32xf32> to vector<128x32xf32>
    %86 = arith.addf %83, %85 : vector<128x32xf32>
    %87 = vector.shape_cast %86 : vector<128x32xf32> to vector<8x16x32xf32>
    %c0_62 = arith.constant 0 : index
    %c0_63 = arith.constant 0 : index
    %c0_64 = arith.constant 0 : index
    %c0_65 = arith.constant 0 : index
    %88 = vector.load %arg5[%c0_62, %c0_63, %c0_64, %c0_65] : memref<1x8x16x32xf32, #tpu.memory_space<vmem>>, vector<1x8x16x32xf32>
    %89 = vector.shape_cast %88 : vector<1x8x16x32xf32> to vector<8x16x32xf32>
    %90 = vector.shape_cast %87 : vector<8x16x32xf32> to vector<1x8x16x32xf32>
    tpu.vector_store %arg5[%c0_62, %c0_63, %c0_64, %c0_65], %90 {strides = array<i32>} : memref<1x8x16x32xf32, #tpu.memory_space<vmem>>, vector<1x8x16x32xf32>,
    %c0_i32_66 = arith.constant 0 : i32
    %91 = arith.cmpi eq, %arg1, %c0_i32_66 : i32
    %92 = arith.extui %91 : i1 to i32
    %c0_i32_67 = arith.constant 0 : i32
    %93 = arith.cmpi ne, %92, %c0_i32_67 : i32
    scf.if %93 {
      %cst_76 = arith.constant 0.000000e+00 : f32
      %106 = vector.broadcast %cst_76 : f32 to vector<1x2x32xf32>
      %c0_77 = arith.constant 0 : index
      %c0_78 = arith.constant 0 : index
      %c0_79 = arith.constant 0 : index
      %107 = vector.load %arg6[%c0_77, %c0_78, %c0_79] : memref<1x2x32xf32, #tpu.memory_space<vmem>>, vector<1x2x32xf32>
      tpu.vector_store %arg6[%c0_77, %c0_78, %c0_79], %106 {strides = array<i32>} : memref<1x2x32xf32, #tpu.memory_space<vmem>>, vector<1x2x32xf32>,
    } else {
    }
    %cst_68 = arith.constant dense<0.000000e+00> : vector<32xf32>
    %94 = vector.multi_reduction <add>, %86, %cst_68 [0] : vector<128x32xf32> to vector<32xf32>
    %95 = vector.shape_cast %94 : vector<32xf32> to vector<1x32xf32>
    %96 = arith.mulf %86, %86 : vector<128x32xf32>
    %cst_69 = arith.constant dense<0.000000e+00> : vector<32xf32>
    %97 = vector.multi_reduction <add>, %96, %cst_69 [0] : vector<128x32xf32> to vector<32xf32>
    %98 = vector.shape_cast %97 : vector<32xf32> to vector<1x32xf32>
    %c0_70 = arith.constant 0 : index
    %c0_71 = arith.constant 0 : index
    %c0_72 = arith.constant 0 : index
    %99 = vector.load %arg6[%c0_70, %c0_71, %c0_72] : memref<1x2x32xf32, #tpu.memory_space<vmem>>, vector<1x2x32xf32>
    %100 = vector.shape_cast %99 : vector<1x2x32xf32> to vector<2x32xf32>
    %101 = tpu.concatenate %95, %98 in 0 : vector<1x32xf32>, vector<1x32xf32> -> vector<2x32xf32>
    %102 = arith.addf %100, %101 : vector<2x32xf32>
    %c0_73 = arith.constant 0 : index
    %c0_74 = arith.constant 0 : index
    %c0_75 = arith.constant 0 : index
    %103 = vector.load %arg6[%c0_73, %c0_74, %c0_75] : memref<1x2x32xf32, #tpu.memory_space<vmem>>, vector<1x2x32xf32>
    %104 = vector.shape_cast %103 : vector<1x2x32xf32> to vector<2x32xf32>
    %105 = vector.shape_cast %102 : vector<2x32xf32> to vector<1x2x32xf32>
    tpu.vector_store %arg6[%c0_73, %c0_74, %c0_75], %105 {strides = array<i32>} : memref<1x2x32xf32, #tpu.memory_space<vmem>>, vector<1x2x32xf32>,
    return
  }
  func.func @transform_0(%arg0: i32, %arg1: i32) -> (i32, i32, i32, i32) {
    %c0_i32 = arith.constant 0 : i32
    %c0_i32_0 = arith.constant 0 : i32
    %c0_i32_1 = arith.constant 0 : i32
    %c0_i32_2 = arith.constant 0 : i32
    return %arg0, %c0_i32, %c0_i32_0, %c0_i32_1 : i32, i32, i32, i32
  }
  func.func @transform_1(%arg0: i32, %arg1: i32) -> (i32, i32, i32) {
    %c0_i32 = arith.constant 0 : i32
    %c0_i32_0 = arith.constant 0 : i32
    %c0_i32_1 = arith.constant 0 : i32
    %c0_i32_2 = arith.constant 0 : i32
    return %c0_i32, %c0_i32_0, %c0_i32_1 : i32, i32, i32
  }
  func.func @transform_2(%arg0: i32, %arg1: i32) -> (i32, i32) {
    %c0_i32 = arith.constant 0 : i32
    %c0_i32_0 = arith.constant 0 : i32
    %c0_i32_1 = arith.constant 0 : i32
    return %c0_i32, %c0_i32_0 : i32, i32
  }
  func.func @transform_3(%arg0: i32, %arg1: i32) -> (i32, i32, i32, i32) {
    %c0_i32 = arith.constant 0 : i32
    %c0_i32_0 = arith.constant 0 : i32
    %c0_i32_1 = arith.constant 0 : i32
    return %arg0, %arg1, %c0_i32, %c0_i32_0 : i32, i32, i32, i32
  }
  func.func @transform_4(%arg0: i32, %arg1: i32) -> (i32, i32, i32) {
    %c0_i32 = arith.constant 0 : i32
    %c0_i32_0 = arith.constant 0 : i32
    %c0_i32_1 = arith.constant 0 : i32
    return %arg0, %c0_i32, %c0_i32_0 : i32, i32, i32
  }
}

module attributes {stable_mosaic.version = 11 : i64} {
  func.func @_bn_relu_kernel(%arg0: i32, %arg1: i32, %arg2: memref<1x8x16x32xf32, #tpu.memory_space<vmem>>, %arg3: memref<2x32xf32, #tpu.memory_space<vmem>>, %arg4: memref<1x32xf32, #tpu.memory_space<vmem>>, %arg5: memref<1x32xf32, #tpu.memory_space<vmem>>, %arg6: memref<1x8x16x32xf32, #tpu.memory_space<vmem>>) attributes {dimension_semantics = [#tpu.dimension_semantics<parallel>, #tpu.dimension_semantics<parallel>], iteration_bounds = array<i64: 2, 2>, scalar_prefetch = 0 : i64, scratch_operands = 0 : i64, tpu.core_type = #tpu.core_type<tc>, window_params = [{transform_indices = @transform_0, window_bounds = array<i64: 1, 8, 16, 32>}, {pipeline_mode = #tpu.pipeline_mode<synchronous>, transform_indices = @transform_1, window_bounds = array<i64: 2, 32>}, {pipeline_mode = #tpu.pipeline_mode<synchronous>, transform_indices = @transform_2, window_bounds = array<i64: 1, 32>}, {pipeline_mode = #tpu.pipeline_mode<synchronous>, transform_indices = @transform_3, window_bounds = array<i64: 1, 32>}, {transform_indices = @transform_4, window_bounds = array<i64: 1, 8, 16, 32>}]} {
    %c0 = arith.constant 0 : index
    %c0_0 = arith.constant 0 : index
    %0 = vector.load %arg3[%c0, %c0_0] : memref<2x32xf32, #tpu.memory_space<vmem>>, vector<1x32xf32>
    %cst = arith.constant 0.001953125 : f32
    %1 = vector.broadcast %cst : f32 to vector<1x32xf32>
    %2 = arith.mulf %0, %1 : vector<1x32xf32>
    %c1 = arith.constant 1 : index
    %c0_1 = arith.constant 0 : index
    %3 = vector.load %arg3[%c1, %c0_1] : memref<2x32xf32, #tpu.memory_space<vmem>>, vector<1x32xf32>
    %cst_2 = arith.constant 0.001953125 : f32
    %4 = vector.broadcast %cst_2 : f32 to vector<1x32xf32>
    %5 = arith.mulf %3, %4 : vector<1x32xf32>
    %6 = arith.mulf %2, %2 : vector<1x32xf32>
    %7 = arith.subf %5, %6 : vector<1x32xf32>
    %cst_3 = arith.constant 0.000000e+00 : f32
    %8 = vector.broadcast %cst_3 : f32 to vector<1x32xf32>
    %9 = arith.maximumf %7, %8 : vector<1x32xf32>
    %cst_4 = arith.constant 9.99999974E-6 : f32
    %10 = vector.broadcast %cst_4 : f32 to vector<1x32xf32>
    %11 = arith.addf %9, %10 : vector<1x32xf32>
    %12 = math.rsqrt %11 : vector<1x32xf32>
    %c0_5 = arith.constant 0 : index
    %c0_6 = arith.constant 0 : index
    %13 = vector.load %arg4[%c0_5, %c0_6] : memref<1x32xf32, #tpu.memory_space<vmem>>, vector<1x32xf32>
    %14 = arith.mulf %13, %12 : vector<1x32xf32>
    %c0_7 = arith.constant 0 : index
    %c0_8 = arith.constant 0 : index
    %15 = vector.load %arg5[%c0_7, %c0_8] : memref<1x32xf32, #tpu.memory_space<vmem>>, vector<1x32xf32>
    %16 = arith.mulf %2, %14 : vector<1x32xf32>
    %17 = arith.subf %15, %16 : vector<1x32xf32>
    %c0_9 = arith.constant 0 : index
    %c0_10 = arith.constant 0 : index
    %c0_11 = arith.constant 0 : index
    %c0_12 = arith.constant 0 : index
    %18 = vector.load %arg2[%c0_9, %c0_10, %c0_11, %c0_12] : memref<1x8x16x32xf32, #tpu.memory_space<vmem>>, vector<1x8x16x32xf32>
    %19 = vector.shape_cast %18 : vector<1x8x16x32xf32> to vector<8x16x32xf32>
    %20 = vector.shape_cast %14 : vector<1x32xf32> to vector<1x1x32xf32>
    %21 = vector.broadcast %20 : vector<1x1x32xf32> to vector<8x16x32xf32>
    %22 = arith.mulf %19, %21 : vector<8x16x32xf32>
    %23 = vector.shape_cast %17 : vector<1x32xf32> to vector<1x1x32xf32>
    %24 = vector.broadcast %23 : vector<1x1x32xf32> to vector<8x16x32xf32>
    %25 = arith.addf %22, %24 : vector<8x16x32xf32>
    %cst_13 = arith.constant 0.000000e+00 : f32
    %26 = vector.broadcast %cst_13 : f32 to vector<8x16x32xf32>
    %27 = arith.maximumf %25, %26 : vector<8x16x32xf32>
    %c0_14 = arith.constant 0 : index
    %c0_15 = arith.constant 0 : index
    %c0_16 = arith.constant 0 : index
    %c0_17 = arith.constant 0 : index
    %28 = vector.load %arg6[%c0_14, %c0_15, %c0_16, %c0_17] : memref<1x8x16x32xf32, #tpu.memory_space<vmem>>, vector<1x8x16x32xf32>
    %29 = vector.shape_cast %28 : vector<1x8x16x32xf32> to vector<8x16x32xf32>
    %30 = vector.shape_cast %27 : vector<8x16x32xf32> to vector<1x8x16x32xf32>
    tpu.vector_store %arg6[%c0_14, %c0_15, %c0_16, %c0_17], %30 {strides = array<i32>} : memref<1x8x16x32xf32, #tpu.memory_space<vmem>>, vector<1x8x16x32xf32>,
    return
  }
  func.func @transform_0(%arg0: i32, %arg1: i32) -> (i32, i32, i32, i32) {
    %c0_i32 = arith.constant 0 : i32
    %c0_i32_0 = arith.constant 0 : i32
    %c0_i32_1 = arith.constant 0 : i32
    return %arg0, %arg1, %c0_i32, %c0_i32_0 : i32, i32, i32, i32
  }
  func.func @transform_1(%arg0: i32, %arg1: i32) -> (i32, i32) {
    %c0_i32 = arith.constant 0 : i32
    %c0_i32_0 = arith.constant 0 : i32
    %c0_i32_1 = arith.constant 0 : i32
    return %c0_i32, %c0_i32_0 : i32, i32
  }
  func.func @transform_2(%arg0: i32, %arg1: i32) -> (i32, i32) {
    %c0_i32 = arith.constant 0 : i32
    %c0_i32_0 = arith.constant 0 : i32
    %c0_i32_1 = arith.constant 0 : i32
    return %c0_i32, %c0_i32_0 : i32, i32
  }
  func.func @transform_3(%arg0: i32, %arg1: i32) -> (i32, i32) {
    %c0_i32 = arith.constant 0 : i32
    %c0_i32_0 = arith.constant 0 : i32
    %c0_i32_1 = arith.constant 0 : i32
    return %c0_i32, %c0_i32_0 : i32, i32
  }
  func.func @transform_4(%arg0: i32, %arg1: i32) -> (i32, i32, i32, i32) {
    %c0_i32 = arith.constant 0 : i32
    %c0_i32_0 = arith.constant 0 : i32
    %c0_i32_1 = arith.constant 0 : i32
    return %arg0, %arg1, %c0_i32, %c0_i32_0 : i32, i32, i32, i32
  }
}

module attributes {stable_mosaic.version = 11 : i64} {
  func.func @_bn_relu_kernel(%arg0: i32, %arg1: i32, %arg2: memref<1x8x16x32xf32, #tpu.memory_space<vmem>>, %arg3: memref<2x32xf32, #tpu.memory_space<vmem>>, %arg4: memref<1x32xf32, #tpu.memory_space<vmem>>, %arg5: memref<1x32xf32, #tpu.memory_space<vmem>>, %arg6: memref<1x8x16x32xf32, #tpu.memory_space<vmem>>) attributes {dimension_semantics = [#tpu.dimension_semantics<parallel>, #tpu.dimension_semantics<parallel>], iteration_bounds = array<i64: 2, 2>, scalar_prefetch = 0 : i64, scratch_operands = 0 : i64, tpu.core_type = #tpu.core_type<tc>, window_params = [{transform_indices = @transform_0, window_bounds = array<i64: 1, 8, 16, 32>}, {pipeline_mode = #tpu.pipeline_mode<synchronous>, transform_indices = @transform_1, window_bounds = array<i64: 2, 32>}, {pipeline_mode = #tpu.pipeline_mode<synchronous>, transform_indices = @transform_2, window_bounds = array<i64: 1, 32>}, {pipeline_mode = #tpu.pipeline_mode<synchronous>, transform_indices = @transform_3, window_bounds = array<i64: 1, 32>}, {transform_indices = @transform_4, window_bounds = array<i64: 1, 8, 16, 32>}]} {
    %c0 = arith.constant 0 : index
    %c0_0 = arith.constant 0 : index
    %0 = vector.load %arg3[%c0, %c0_0] : memref<2x32xf32, #tpu.memory_space<vmem>>, vector<1x32xf32>
    %cst = arith.constant 0.001953125 : f32
    %1 = vector.broadcast %cst : f32 to vector<1x32xf32>
    %2 = arith.mulf %0, %1 : vector<1x32xf32>
    %c1 = arith.constant 1 : index
    %c0_1 = arith.constant 0 : index
    %3 = vector.load %arg3[%c1, %c0_1] : memref<2x32xf32, #tpu.memory_space<vmem>>, vector<1x32xf32>
    %cst_2 = arith.constant 0.001953125 : f32
    %4 = vector.broadcast %cst_2 : f32 to vector<1x32xf32>
    %5 = arith.mulf %3, %4 : vector<1x32xf32>
    %6 = arith.mulf %2, %2 : vector<1x32xf32>
    %7 = arith.subf %5, %6 : vector<1x32xf32>
    %cst_3 = arith.constant 0.000000e+00 : f32
    %8 = vector.broadcast %cst_3 : f32 to vector<1x32xf32>
    %9 = arith.maximumf %7, %8 : vector<1x32xf32>
    %cst_4 = arith.constant 9.99999974E-6 : f32
    %10 = vector.broadcast %cst_4 : f32 to vector<1x32xf32>
    %11 = arith.addf %9, %10 : vector<1x32xf32>
    %12 = math.rsqrt %11 : vector<1x32xf32>
    %c0_5 = arith.constant 0 : index
    %c0_6 = arith.constant 0 : index
    %13 = vector.load %arg4[%c0_5, %c0_6] : memref<1x32xf32, #tpu.memory_space<vmem>>, vector<1x32xf32>
    %14 = arith.mulf %13, %12 : vector<1x32xf32>
    %c0_7 = arith.constant 0 : index
    %c0_8 = arith.constant 0 : index
    %15 = vector.load %arg5[%c0_7, %c0_8] : memref<1x32xf32, #tpu.memory_space<vmem>>, vector<1x32xf32>
    %16 = arith.mulf %2, %14 : vector<1x32xf32>
    %17 = arith.subf %15, %16 : vector<1x32xf32>
    %c0_9 = arith.constant 0 : index
    %c0_10 = arith.constant 0 : index
    %c0_11 = arith.constant 0 : index
    %c0_12 = arith.constant 0 : index
    %18 = vector.load %arg2[%c0_9, %c0_10, %c0_11, %c0_12] : memref<1x8x16x32xf32, #tpu.memory_space<vmem>>, vector<1x8x16x32xf32>
    %19 = vector.shape_cast %18 : vector<1x8x16x32xf32> to vector<8x16x32xf32>
    %20 = vector.shape_cast %14 : vector<1x32xf32> to vector<1x1x32xf32>
    %21 = vector.broadcast %20 : vector<1x1x32xf32> to vector<8x16x32xf32>
    %22 = arith.mulf %19, %21 : vector<8x16x32xf32>
    %23 = vector.shape_cast %17 : vector<1x32xf32> to vector<1x1x32xf32>
    %24 = vector.broadcast %23 : vector<1x1x32xf32> to vector<8x16x32xf32>
    %25 = arith.addf %22, %24 : vector<8x16x32xf32>
    %cst_13 = arith.constant 0.000000e+00 : f32
    %26 = vector.broadcast %cst_13 : f32 to vector<8x16x32xf32>
    %27 = arith.maximumf %25, %26 : vector<8x16x32xf32>
    %c0_14 = arith.constant 0 : index
    %c0_15 = arith.constant 0 : index
    %c0_16 = arith.constant 0 : index
    %c0_17 = arith.constant 0 : index
    %28 = vector.load %arg6[%c0_14, %c0_15, %c0_16, %c0_17] : memref<1x8x16x32xf32, #tpu.memory_space<vmem>>, vector<1x8x16x32xf32>
    %29 = vector.shape_cast %28 : vector<1x8x16x32xf32> to vector<8x16x32xf32>
    %30 = vector.shape_cast %27 : vector<8x16x32xf32> to vector<1x8x16x32xf32>
    tpu.vector_store %arg6[%c0_14, %c0_15, %c0_16, %c0_17], %30 {strides = array<i32>} : memref<1x8x16x32xf32, #tpu.memory_space<vmem>>, vector<1x8x16x32xf32>,
    return
  }
  func.func @transform_0(%arg0: i32, %arg1: i32) -> (i32, i32, i32, i32) {
    %c0_i32 = arith.constant 0 : i32
    %c0_i32_0 = arith.constant 0 : i32
    %c0_i32_1 = arith.constant 0 : i32
    return %arg0, %arg1, %c0_i32, %c0_i32_0 : i32, i32, i32, i32
  }
  func.func @transform_1(%arg0: i32, %arg1: i32) -> (i32, i32) {
    %c0_i32 = arith.constant 0 : i32
    %c0_i32_0 = arith.constant 0 : i32
    %c0_i32_1 = arith.constant 0 : i32
    return %c0_i32, %c0_i32_0 : i32, i32
  }
  func.func @transform_2(%arg0: i32, %arg1: i32) -> (i32, i32) {
    %c0_i32 = arith.constant 0 : i32
    %c0_i32_0 = arith.constant 0 : i32
    %c0_i32_1 = arith.constant 0 : i32
    return %c0_i32, %c0_i32_0 : i32, i32
  }
  func.func @transform_3(%arg0: i32, %arg1: i32) -> (i32, i32) {
    %c0_i32 = arith.constant 0 : i32
    %c0_i32_0 = arith.constant 0 : i32
    %c0_i32_1 = arith.constant 0 : i32
    return %c0_i32, %c0_i32_0 : i32, i32
  }
  func.func @transform_4(%arg0: i32, %arg1: i32) -> (i32, i32, i32, i32) {
    %c0_i32 = arith.constant 0 : i32
    %c0_i32_0 = arith.constant 0 : i32
    %c0_i32_1 = arith.constant 0 : i32
    return %arg0, %arg1, %c0_i32, %c0_i32_0 : i32, i32, i32, i32
  }
}

module attributes {stable_mosaic.version = 11 : i64} {
  func.func @_conv3x3_stats_kernel(%arg0: i32, %arg1: i32, %arg2: memref<1x18x18x32xbf16, #tpu.memory_space<vmem>>, %arg3: memref<9x32x32xbf16, #tpu.memory_space<vmem>>, %arg4: memref<1x32xf32, #tpu.memory_space<vmem>>, %arg5: memref<1x8x16x32xf32, #tpu.memory_space<vmem>>, %arg6: memref<1x2x32xf32, #tpu.memory_space<vmem>>) attributes {dimension_semantics = [#tpu.dimension_semantics<parallel>, #tpu.dimension_semantics<arbitrary>], iteration_bounds = array<i64: 2, 2>, scalar_prefetch = 0 : i64, scratch_operands = 0 : i64, tpu.core_type = #tpu.core_type<tc>, window_params = [{transform_indices = @transform_0, window_bounds = array<i64: 1, 18, 18, 32>}, {pipeline_mode = #tpu.pipeline_mode<synchronous>, transform_indices = @transform_1, window_bounds = array<i64: 9, 32, 32>}, {pipeline_mode = #tpu.pipeline_mode<synchronous>, transform_indices = @transform_2, window_bounds = array<i64: 1, 32>}, {transform_indices = @transform_3, window_bounds = array<i64: 1, 8, 16, 32>}, {transform_indices = @transform_4, window_bounds = array<i64: 1, 2, 32>}]} {
    %c8_i32 = arith.constant 8 : i32
    %0 = arith.muli %arg1, %c8_i32 : i32
    %1 = tpu.assume_multiple %0, 8 : i32
    %cst = arith.constant 0.000000e+00 : f32
    %2 = vector.broadcast %cst : f32 to vector<128x32xf32>
    %c0_i32 = arith.constant 0 : i32
    %3 = arith.addi %1, %c0_i32 : i32
    %c0 = arith.constant 0 : index
    %4 = arith.index_cast %3 : i32 to index
    %c0_0 = arith.constant 0 : index
    %c0_1 = arith.constant 0 : index
    %5 = vector.load %arg2[%c0, %4, %c0_0, %c0_1] : memref<1x18x18x32xbf16, #tpu.memory_space<vmem>>, vector<1x8x16x32xbf16>
    %6 = vector.shape_cast %5 : vector<1x8x16x32xbf16> to vector<8x16x32xbf16>
    %7 = vector.shape_cast %6 : vector<8x16x32xbf16> to vector<128x32xbf16>
    %c0_2 = arith.constant 0 : index
    %c0_3 = arith.constant 0 : index
    %c0_4 = arith.constant 0 : index
    %8 = vector.load %arg3[%c0_2, %c0_3, %c0_4] : memref<9x32x32xbf16, #tpu.memory_space<vmem>>, vector<1x32x32xbf16>
    %9 = vector.shape_cast %8 : vector<1x32x32xbf16> to vector<32x32xbf16>
    %cst_5 = arith.constant dense<0.000000e+00> : vector<128x32xf32>
    %10 = tpu.matmul %7, %9, %cst_5 {dimension_numbers = #tpu.dot_dimension_numbers<[1], [0], [0], [1], [0, 0, 1, 1], [], []>} : vector<128x32xbf16>, vector<32x32xbf16>, vector<128x32xf32> -> vector<128x32xf32>
    %11 = arith.addf %2, %10 : vector<128x32xf32>
    %c0_i32_6 = arith.constant 0 : i32
    %12 = arith.addi %1, %c0_i32_6 : i32
    %c0_7 = arith.constant 0 : index
    %13 = arith.index_cast %12 : i32 to index
    %c1 = arith.constant 1 : index
    %c0_8 = arith.constant 0 : index
    %14 = vector.load %arg2[%c0_7, %13, %c1, %c0_8] : memref<1x18x18x32xbf16, #tpu.memory_space<vmem>>, vector<1x8x16x32xbf16>
    %15 = vector.shape_cast %14 : vector<1x8x16x32xbf16> to vector<8x16x32xbf16>
    %16 = vector.shape_cast %15 : vector<8x16x32xbf16> to vector<128x32xbf16>
    %c1_9 = arith.constant 1 : index
    %c0_10 = arith.constant 0 : index
    %c0_11 = arith.constant 0 : index
    %17 = vector.load %arg3[%c1_9, %c0_10, %c0_11] : memref<9x32x32xbf16, #tpu.memory_space<vmem>>, vector<1x32x32xbf16>
    %18 = vector.shape_cast %17 : vector<1x32x32xbf16> to vector<32x32xbf16>
    %cst_12 = arith.constant dense<0.000000e+00> : vector<128x32xf32>
    %19 = tpu.matmul %16, %18, %cst_12 {dimension_numbers = #tpu.dot_dimension_numbers<[1], [0], [0], [1], [0, 0, 1, 1], [], []>} : vector<128x32xbf16>, vector<32x32xbf16>, vector<128x32xf32> -> vector<128x32xf32>
    %20 = arith.addf %11, %19 : vector<128x32xf32>
    %c0_i32_13 = arith.constant 0 : i32
    %21 = arith.addi %1, %c0_i32_13 : i32
    %c0_14 = arith.constant 0 : index
    %22 = arith.index_cast %21 : i32 to index
    %c2 = arith.constant 2 : index
    %c0_15 = arith.constant 0 : index
    %23 = vector.load %arg2[%c0_14, %22, %c2, %c0_15] : memref<1x18x18x32xbf16, #tpu.memory_space<vmem>>, vector<1x8x16x32xbf16>
    %24 = vector.shape_cast %23 : vector<1x8x16x32xbf16> to vector<8x16x32xbf16>
    %25 = vector.shape_cast %24 : vector<8x16x32xbf16> to vector<128x32xbf16>
    %c2_16 = arith.constant 2 : index
    %c0_17 = arith.constant 0 : index
    %c0_18 = arith.constant 0 : index
    %26 = vector.load %arg3[%c2_16, %c0_17, %c0_18] : memref<9x32x32xbf16, #tpu.memory_space<vmem>>, vector<1x32x32xbf16>
    %27 = vector.shape_cast %26 : vector<1x32x32xbf16> to vector<32x32xbf16>
    %cst_19 = arith.constant dense<0.000000e+00> : vector<128x32xf32>
    %28 = tpu.matmul %25, %27, %cst_19 {dimension_numbers = #tpu.dot_dimension_numbers<[1], [0], [0], [1], [0, 0, 1, 1], [], []>} : vector<128x32xbf16>, vector<32x32xbf16>, vector<128x32xf32> -> vector<128x32xf32>
    %29 = arith.addf %20, %28 : vector<128x32xf32>
    %c1_i32 = arith.constant 1 : i32
    %30 = arith.addi %1, %c1_i32 : i32
    %c0_20 = arith.constant 0 : index
    %31 = arith.index_cast %30 : i32 to index
    %c0_21 = arith.constant 0 : index
    %c0_22 = arith.constant 0 : index
    %32 = vector.load %arg2[%c0_20, %31, %c0_21, %c0_22] : memref<1x18x18x32xbf16, #tpu.memory_space<vmem>>, vector<1x8x16x32xbf16>
    %33 = vector.shape_cast %32 : vector<1x8x16x32xbf16> to vector<8x16x32xbf16>
    %34 = vector.shape_cast %33 : vector<8x16x32xbf16> to vector<128x32xbf16>
    %c3 = arith.constant 3 : index
    %c0_23 = arith.constant 0 : index
    %c0_24 = arith.constant 0 : index
    %35 = vector.load %arg3[%c3, %c0_23, %c0_24] : memref<9x32x32xbf16, #tpu.memory_space<vmem>>, vector<1x32x32xbf16>
    %36 = vector.shape_cast %35 : vector<1x32x32xbf16> to vector<32x32xbf16>
    %cst_25 = arith.constant dense<0.000000e+00> : vector<128x32xf32>
    %37 = tpu.matmul %34, %36, %cst_25 {dimension_numbers = #tpu.dot_dimension_numbers<[1], [0], [0], [1], [0, 0, 1, 1], [], []>} : vector<128x32xbf16>, vector<32x32xbf16>, vector<128x32xf32> -> vector<128x32xf32>
    %38 = arith.addf %29, %37 : vector<128x32xf32>
    %c1_i32_26 = arith.constant 1 : i32
    %39 = arith.addi %1, %c1_i32_26 : i32
    %c0_27 = arith.constant 0 : index
    %40 = arith.index_cast %39 : i32 to index
    %c1_28 = arith.constant 1 : index
    %c0_29 = arith.constant 0 : index
    %41 = vector.load %arg2[%c0_27, %40, %c1_28, %c0_29] : memref<1x18x18x32xbf16, #tpu.memory_space<vmem>>, vector<1x8x16x32xbf16>
    %42 = vector.shape_cast %41 : vector<1x8x16x32xbf16> to vector<8x16x32xbf16>
    %43 = vector.shape_cast %42 : vector<8x16x32xbf16> to vector<128x32xbf16>
    %c4 = arith.constant 4 : index
    %c0_30 = arith.constant 0 : index
    %c0_31 = arith.constant 0 : index
    %44 = vector.load %arg3[%c4, %c0_30, %c0_31] : memref<9x32x32xbf16, #tpu.memory_space<vmem>>, vector<1x32x32xbf16>
    %45 = vector.shape_cast %44 : vector<1x32x32xbf16> to vector<32x32xbf16>
    %cst_32 = arith.constant dense<0.000000e+00> : vector<128x32xf32>
    %46 = tpu.matmul %43, %45, %cst_32 {dimension_numbers = #tpu.dot_dimension_numbers<[1], [0], [0], [1], [0, 0, 1, 1], [], []>} : vector<128x32xbf16>, vector<32x32xbf16>, vector<128x32xf32> -> vector<128x32xf32>
    %47 = arith.addf %38, %46 : vector<128x32xf32>
    %c1_i32_33 = arith.constant 1 : i32
    %48 = arith.addi %1, %c1_i32_33 : i32
    %c0_34 = arith.constant 0 : index
    %49 = arith.index_cast %48 : i32 to index
    %c2_35 = arith.constant 2 : index
    %c0_36 = arith.constant 0 : index
    %50 = vector.load %arg2[%c0_34, %49, %c2_35, %c0_36] : memref<1x18x18x32xbf16, #tpu.memory_space<vmem>>, vector<1x8x16x32xbf16>
    %51 = vector.shape_cast %50 : vector<1x8x16x32xbf16> to vector<8x16x32xbf16>
    %52 = vector.shape_cast %51 : vector<8x16x32xbf16> to vector<128x32xbf16>
    %c5 = arith.constant 5 : index
    %c0_37 = arith.constant 0 : index
    %c0_38 = arith.constant 0 : index
    %53 = vector.load %arg3[%c5, %c0_37, %c0_38] : memref<9x32x32xbf16, #tpu.memory_space<vmem>>, vector<1x32x32xbf16>
    %54 = vector.shape_cast %53 : vector<1x32x32xbf16> to vector<32x32xbf16>
    %cst_39 = arith.constant dense<0.000000e+00> : vector<128x32xf32>
    %55 = tpu.matmul %52, %54, %cst_39 {dimension_numbers = #tpu.dot_dimension_numbers<[1], [0], [0], [1], [0, 0, 1, 1], [], []>} : vector<128x32xbf16>, vector<32x32xbf16>, vector<128x32xf32> -> vector<128x32xf32>
    %56 = arith.addf %47, %55 : vector<128x32xf32>
    %c2_i32 = arith.constant 2 : i32
    %57 = arith.addi %1, %c2_i32 : i32
    %c0_40 = arith.constant 0 : index
    %58 = arith.index_cast %57 : i32 to index
    %c0_41 = arith.constant 0 : index
    %c0_42 = arith.constant 0 : index
    %59 = vector.load %arg2[%c0_40, %58, %c0_41, %c0_42] : memref<1x18x18x32xbf16, #tpu.memory_space<vmem>>, vector<1x8x16x32xbf16>
    %60 = vector.shape_cast %59 : vector<1x8x16x32xbf16> to vector<8x16x32xbf16>
    %61 = vector.shape_cast %60 : vector<8x16x32xbf16> to vector<128x32xbf16>
    %c6 = arith.constant 6 : index
    %c0_43 = arith.constant 0 : index
    %c0_44 = arith.constant 0 : index
    %62 = vector.load %arg3[%c6, %c0_43, %c0_44] : memref<9x32x32xbf16, #tpu.memory_space<vmem>>, vector<1x32x32xbf16>
    %63 = vector.shape_cast %62 : vector<1x32x32xbf16> to vector<32x32xbf16>
    %cst_45 = arith.constant dense<0.000000e+00> : vector<128x32xf32>
    %64 = tpu.matmul %61, %63, %cst_45 {dimension_numbers = #tpu.dot_dimension_numbers<[1], [0], [0], [1], [0, 0, 1, 1], [], []>} : vector<128x32xbf16>, vector<32x32xbf16>, vector<128x32xf32> -> vector<128x32xf32>
    %65 = arith.addf %56, %64 : vector<128x32xf32>
    %c2_i32_46 = arith.constant 2 : i32
    %66 = arith.addi %1, %c2_i32_46 : i32
    %c0_47 = arith.constant 0 : index
    %67 = arith.index_cast %66 : i32 to index
    %c1_48 = arith.constant 1 : index
    %c0_49 = arith.constant 0 : index
    %68 = vector.load %arg2[%c0_47, %67, %c1_48, %c0_49] : memref<1x18x18x32xbf16, #tpu.memory_space<vmem>>, vector<1x8x16x32xbf16>
    %69 = vector.shape_cast %68 : vector<1x8x16x32xbf16> to vector<8x16x32xbf16>
    %70 = vector.shape_cast %69 : vector<8x16x32xbf16> to vector<128x32xbf16>
    %c7 = arith.constant 7 : index
    %c0_50 = arith.constant 0 : index
    %c0_51 = arith.constant 0 : index
    %71 = vector.load %arg3[%c7, %c0_50, %c0_51] : memref<9x32x32xbf16, #tpu.memory_space<vmem>>, vector<1x32x32xbf16>
    %72 = vector.shape_cast %71 : vector<1x32x32xbf16> to vector<32x32xbf16>
    %cst_52 = arith.constant dense<0.000000e+00> : vector<128x32xf32>
    %73 = tpu.matmul %70, %72, %cst_52 {dimension_numbers = #tpu.dot_dimension_numbers<[1], [0], [0], [1], [0, 0, 1, 1], [], []>} : vector<128x32xbf16>, vector<32x32xbf16>, vector<128x32xf32> -> vector<128x32xf32>
    %74 = arith.addf %65, %73 : vector<128x32xf32>
    %c2_i32_53 = arith.constant 2 : i32
    %75 = arith.addi %1, %c2_i32_53 : i32
    %c0_54 = arith.constant 0 : index
    %76 = arith.index_cast %75 : i32 to index
    %c2_55 = arith.constant 2 : index
    %c0_56 = arith.constant 0 : index
    %77 = vector.load %arg2[%c0_54, %76, %c2_55, %c0_56] : memref<1x18x18x32xbf16, #tpu.memory_space<vmem>>, vector<1x8x16x32xbf16>
    %78 = vector.shape_cast %77 : vector<1x8x16x32xbf16> to vector<8x16x32xbf16>
    %79 = vector.shape_cast %78 : vector<8x16x32xbf16> to vector<128x32xbf16>
    %c8 = arith.constant 8 : index
    %c0_57 = arith.constant 0 : index
    %c0_58 = arith.constant 0 : index
    %80 = vector.load %arg3[%c8, %c0_57, %c0_58] : memref<9x32x32xbf16, #tpu.memory_space<vmem>>, vector<1x32x32xbf16>
    %81 = vector.shape_cast %80 : vector<1x32x32xbf16> to vector<32x32xbf16>
    %cst_59 = arith.constant dense<0.000000e+00> : vector<128x32xf32>
    %82 = tpu.matmul %79, %81, %cst_59 {dimension_numbers = #tpu.dot_dimension_numbers<[1], [0], [0], [1], [0, 0, 1, 1], [], []>} : vector<128x32xbf16>, vector<32x32xbf16>, vector<128x32xf32> -> vector<128x32xf32>
    %83 = arith.addf %74, %82 : vector<128x32xf32>
    %c0_60 = arith.constant 0 : index
    %c0_61 = arith.constant 0 : index
    %84 = vector.load %arg4[%c0_60, %c0_61] : memref<1x32xf32, #tpu.memory_space<vmem>>, vector<1x32xf32>
    %85 = vector.broadcast %84 : vector<1x32xf32> to vector<128x32xf32>
    %86 = arith.addf %83, %85 : vector<128x32xf32>
    %87 = vector.shape_cast %86 : vector<128x32xf32> to vector<8x16x32xf32>
    %c0_62 = arith.constant 0 : index
    %c0_63 = arith.constant 0 : index
    %c0_64 = arith.constant 0 : index
    %c0_65 = arith.constant 0 : index
    %88 = vector.load %arg5[%c0_62, %c0_63, %c0_64, %c0_65] : memref<1x8x16x32xf32, #tpu.memory_space<vmem>>, vector<1x8x16x32xf32>
    %89 = vector.shape_cast %88 : vector<1x8x16x32xf32> to vector<8x16x32xf32>
    %90 = vector.shape_cast %87 : vector<8x16x32xf32> to vector<1x8x16x32xf32>
    tpu.vector_store %arg5[%c0_62, %c0_63, %c0_64, %c0_65], %90 {strides = array<i32>} : memref<1x8x16x32xf32, #tpu.memory_space<vmem>>, vector<1x8x16x32xf32>,
    %c0_i32_66 = arith.constant 0 : i32
    %91 = arith.cmpi eq, %arg1, %c0_i32_66 : i32
    %92 = arith.extui %91 : i1 to i32
    %c0_i32_67 = arith.constant 0 : i32
    %93 = arith.cmpi ne, %92, %c0_i32_67 : i32
    scf.if %93 {
      %cst_76 = arith.constant 0.000000e+00 : f32
      %106 = vector.broadcast %cst_76 : f32 to vector<1x2x32xf32>
      %c0_77 = arith.constant 0 : index
      %c0_78 = arith.constant 0 : index
      %c0_79 = arith.constant 0 : index
      %107 = vector.load %arg6[%c0_77, %c0_78, %c0_79] : memref<1x2x32xf32, #tpu.memory_space<vmem>>, vector<1x2x32xf32>
      tpu.vector_store %arg6[%c0_77, %c0_78, %c0_79], %106 {strides = array<i32>} : memref<1x2x32xf32, #tpu.memory_space<vmem>>, vector<1x2x32xf32>,
    } else {
    }
    %cst_68 = arith.constant dense<0.000000e+00> : vector<32xf32>
    %94 = vector.multi_reduction <add>, %86, %cst_68 [0] : vector<128x32xf32> to vector<32xf32>
    %95 = vector.shape_cast %94 : vector<32xf32> to vector<1x32xf32>
    %96 = arith.mulf %86, %86 : vector<128x32xf32>
    %cst_69 = arith.constant dense<0.000000e+00> : vector<32xf32>
    %97 = vector.multi_reduction <add>, %96, %cst_69 [0] : vector<128x32xf32> to vector<32xf32>
    %98 = vector.shape_cast %97 : vector<32xf32> to vector<1x32xf32>
    %c0_70 = arith.constant 0 : index
    %c0_71 = arith.constant 0 : index
    %c0_72 = arith.constant 0 : index
    %99 = vector.load %arg6[%c0_70, %c0_71, %c0_72] : memref<1x2x32xf32, #tpu.memory_space<vmem>>, vector<1x2x32xf32>
    %100 = vector.shape_cast %99 : vector<1x2x32xf32> to vector<2x32xf32>
    %101 = tpu.concatenate %95, %98 in 0 : vector<1x32xf32>, vector<1x32xf32> -> vector<2x32xf32>
    %102 = arith.addf %100, %101 : vector<2x32xf32>
    %c0_73 = arith.constant 0 : index
    %c0_74 = arith.constant 0 : index
    %c0_75 = arith.constant 0 : index
    %103 = vector.load %arg6[%c0_73, %c0_74, %c0_75] : memref<1x2x32xf32, #tpu.memory_space<vmem>>, vector<1x2x32xf32>
    %104 = vector.shape_cast %103 : vector<1x2x32xf32> to vector<2x32xf32>
    %105 = vector.shape_cast %102 : vector<2x32xf32> to vector<1x2x32xf32>
    tpu.vector_store %arg6[%c0_73, %c0_74, %c0_75], %105 {strides = array<i32>} : memref<1x2x32xf32, #tpu.memory_space<vmem>>, vector<1x2x32xf32>,
    return
  }
  func.func @transform_0(%arg0: i32, %arg1: i32) -> (i32, i32, i32, i32) {
    %c0_i32 = arith.constant 0 : i32
    %c0_i32_0 = arith.constant 0 : i32
    %c0_i32_1 = arith.constant 0 : i32
    %c0_i32_2 = arith.constant 0 : i32
    return %arg0, %c0_i32, %c0_i32_0, %c0_i32_1 : i32, i32, i32, i32
  }
  func.func @transform_1(%arg0: i32, %arg1: i32) -> (i32, i32, i32) {
    %c0_i32 = arith.constant 0 : i32
    %c0_i32_0 = arith.constant 0 : i32
    %c0_i32_1 = arith.constant 0 : i32
    %c0_i32_2 = arith.constant 0 : i32
    return %c0_i32, %c0_i32_0, %c0_i32_1 : i32, i32, i32
  }
  func.func @transform_2(%arg0: i32, %arg1: i32) -> (i32, i32) {
    %c0_i32 = arith.constant 0 : i32
    %c0_i32_0 = arith.constant 0 : i32
    %c0_i32_1 = arith.constant 0 : i32
    return %c0_i32, %c0_i32_0 : i32, i32
  }
  func.func @transform_3(%arg0: i32, %arg1: i32) -> (i32, i32, i32, i32) {
    %c0_i32 = arith.constant 0 : i32
    %c0_i32_0 = arith.constant 0 : i32
    %c0_i32_1 = arith.constant 0 : i32
    return %arg0, %arg1, %c0_i32, %c0_i32_0 : i32, i32, i32, i32
  }
  func.func @transform_4(%arg0: i32, %arg1: i32) -> (i32, i32, i32) {
    %c0_i32 = arith.constant 0 : i32
    %c0_i32_0 = arith.constant 0 : i32
    %c0_i32_1 = arith.constant 0 : i32
    return %arg0, %c0_i32, %c0_i32_0 : i32, i32, i32
  }
}

</mosaic_0001>

<llo_original>
// kernel: _lambda_.5
$region0: #{_lambda_.5}
  #allocation0 [shape = 'u32[]', space=smem, size = 0x4, offset = 0x4, fixed_abs, tag = 'smem constant byte address 0x4 - core index']
  #allocation1 [shape = 'u32[72,128]{1,0:T(1,128)}', space=vmem, size = 0x9000, scoped, tag = 'internal scratch']
  %s0 = inlined_call_operand.vmem [shape: f32[2,16,16,32], index: 0, kind: input, shape index: {}]
  %s1 = inlined_call_operand.vmem [shape: f32[2,32], index: 1, kind: input, shape index: {}]
  %s2 = inlined_call_operand.vmem [shape: f32[1,32], index: 2, kind: input, shape index: {}]
  %s3 = inlined_call_operand.vmem [shape: f32[1,32], index: 3, kind: input, shape index: {}]
  %s4 = inlined_call_operand.vmem [shape: f32[2,16,16,32], index: 4, kind: output, shape index: {}]
  %s5 = sld [smem:[#allocation0]]
  $region49: #{_lambda_.5} parent=0
    _
  %s7 = ssub.s32 1, %s5
  %s8 = scalar_select 0, %s7, %s5
  loop: start=0, step=1, limit=6
  $region2: #{_lambda_.5} parent=0 // loop_pre_header
    _
  $region3: #{_lambda_.5} parent=0 // loop_header
    %s10 = sphi 0, %s14
    %p11 = scmp.ge.s32.totalorder %s10, 6
    %s17 = sphi 0, %s29
    %s18 = sphi 0, %s25
    %s19 = sphi 0, %s17
    %s20 = sphi 0, %s18
    %s21 = sphi 0, %s19
    %s22 = sphi 0, %s20
    %s34 = sphi 0, %s36
    %s37 = sphi 0, %s34
    %s38 = sphi 0, %s37
    %s54 = sphi 0, %s38
    %s58 = sphi 0, %s58
    %s60 = sphi 0, %s58
    %s61 = sphi 0, %s60
    %s75 = sphi 0, %s61
    %s79 = sphi 0, %s79
    %s81 = sphi 0, %s79
    %s82 = sphi 0, %s81
    %s96 = sphi 0, %s82
    %s100 = sphi 0, %s100
    %s102 = sphi 0, %s100
    %s103 = sphi 0, %s102
    %s117 = sphi 0, %s103
    %s125 = sphi 0, %s127
    %s128 = sphi 0, %s125
    %s129 = sphi 0, %s128
    %s145 = sphi 0, %s129
  $region4: #{_lambda_.5} parent=0 // loop_header_branch
    %13 = sbr.rel (%p11) target = $region8
  $region5: #{_lambda_.5} parent=0 // loop_body
    %s15 = ssub.s32 %s10, 1
    %s16 = ssub.s32 %s10, 2
    %s23 = sadd.s32 1, %s18
    %p24 = scmp.ge.s32.totalorder %s23, 2
    %s25 = scalar_select %p24, 0, %s23
    %s26 = sadd.s32 1, %s17
    %s27 = scalar_select %p24, %s26, %s17
    %p28 = scmp.ge.s32.totalorder %s27, 2
    %s29 = scalar_select %p28, 0, %s27
    %s30 = ssub.s32 %s17, %s29
    %s31 = ssub.s32 %s18, %s25
    %s32 = sor.u32 %s30, %s31
    %p33 = scmp.eq.s32.totalorder %s32, 0
    %s35 = sadd.s32 %s34, 1
    %s36 = scalar_select %p33, %s34, %s35
    %p39 = pneg %p33
    %p40 = scmp.eq.s32.totalorder %s10, 3
    %p41 = por %p39, %p40
    %p42 = scmp.ne.s32.totalorder %s34, %s37
    %p43 = scmp.eq.s32.totalorder %s10, 0
    %p44 = por %p42, %p43
    %p45 = scmp.ne.s32.totalorder %s34, %s37
    %p46 = scmp.eq.s32.totalorder %s15, 3
    %p47 = por %p45, %p46
    %p48 = scmp.ne.s32.totalorder %s37, %s38
    %p49 = scmp.eq.s32.totalorder %s15, 0
    %p50 = por %p48, %p49
    %p51 = scmp.ne.s32.totalorder %s37, %s38
    %p52 = scmp.eq.s32.totalorder %s16, 3
    %p53 = por %p51, %p52
    %p55 = scmp.ne.s32.totalorder %s38, %s54
    %p56 = scmp.eq.s32.totalorder %s16, 0
    %p57 = por %p55, %p56
    %s59 = sadd.s32 %s58, 1
    %p62 = scmp.eq.s32.totalorder %s10, 3
    %p63 = scmp.ne.s32.totalorder %s58, %s60
    %p64 = scmp.eq.s32.totalorder %s10, 0
    %p65 = por %p63, %p64
    %p66 = scmp.ne.s32.totalorder %s58, %s60
    %p67 = scmp.eq.s32.totalorder %s15, 3
    %p68 = por %p66, %p67
    %p69 = scmp.ne.s32.totalorder %s60, %s61
    %p70 = scmp.eq.s32.totalorder %s15, 0
    %p71 = por %p69, %p70
    %p72 = scmp.ne.s32.totalorder %s60, %s61
    %p73 = scmp.eq.s32.totalorder %s16, 3
    %p74 = por %p72, %p73
    %p76 = scmp.ne.s32.totalorder %s61, %s75
    %p77 = scmp.eq.s32.totalorder %s16, 0
    %p78 = por %p76, %p77
    %s80 = sadd.s32 %s79, 1
    %p83 = scmp.eq.s32.totalorder %s10, 3
    %p84 = scmp.ne.s32.totalorder %s79, %s81
    %p85 = scmp.eq.s32.totalorder %s10, 0
    %p86 = por %p84, %p85
    %p87 = scmp.ne.s32.totalorder %s79, %s81
    %p88 = scmp.eq.s32.totalorder %s15, 3
    %p89 = por %p87, %p88
    %p90 = scmp.ne.s32.totalorder %s81, %s82
    %p91 = scmp.eq.s32.totalorder %s15, 0
    %p92 = por %p90, %p91
    %p93 = scmp.ne.s32.totalorder %s81, %s82
    %p94 = scmp.eq.s32.totalorder %s16, 3
    %p95 = por %p93, %p94
    %p97 = scmp.ne.s32.totalorder %s82, %s96
    %p98 = scmp.eq.s32.totalorder %s16, 0
    %p99 = por %p97, %p98
    %s101 = sadd.s32 %s100, 1
    %p104 = scmp.eq.s32.totalorder %s10, 3
    %p105 = scmp.ne.s32.totalorder %s100, %s102
    %p106 = scmp.eq.s32.totalorder %s10, 0
    %p107 = por %p105, %p106
    %p108 = scmp.ne.s32.totalorder %s100, %s102
    %p109 = scmp.eq.s32.totalorder %s15, 3
    %p110 = por %p108, %p109
    %p111 = scmp.ne.s32.totalorder %s102, %s103
    %p112 = scmp.eq.s32.totalorder %s15, 0
    %p113 = por %p111, %p112
    %p114 = scmp.ne.s32.totalorder %s102, %s103
    %p115 = scmp.eq.s32.totalorder %s16, 3
    %p116 = por %p114, %p115
    %p118 = scmp.ne.s32.totalorder %s103, %s117
    %p119 = scmp.eq.s32.totalorder %s16, 0
    %p120 = por %p118, %p119
    %s121 = ssub.s32 %s17, %s29
    %s122 = ssub.s32 %s18, %s25
    %s123 = sor.u32 %s121, %s122
    %p124 = scmp.eq.s32.totalorder %s123, 0
    %s126 = sadd.s32 %s125, 1
    %s127 = scalar_select %p124, %s125, %s126
    %p130 = pneg %p124
    %p131 = scmp.eq.s32.totalorder %s10, 3
    %p132 = por %p130, %p131
    %p133 = scmp.ne.s32.totalorder %s125, %s128
    %p134 = scmp.eq.s32.totalorder %s10, 0
    %p135 = por %p133, %p134
    %p136 = scmp.ne.s32.totalorder %s125, %s128
    %p137 = scmp.eq.s32.totalorder %s15, 3
    %p138 = por %p136, %p137
    %p139 = scmp.ne.s32.totalorder %s128, %s129
    %p140 = scmp.eq.s32.totalorder %s15, 0
    %p141 = por %p139, %p140
    %p142 = scmp.ne.s32.totalorder %s128, %s129
    %p143 = scmp.eq.s32.totalorder %s16, 3
    %p144 = por %p142, %p143
    %p146 = scmp.ne.s32.totalorder %s129, %s145
    %p147 = scmp.eq.s32.totalorder %s16, 0
    %p148 = por %p146, %p147
    %p149 = scmp.le.s32.totalorder 1, %s10
    %p150 = scmp.lt.s32.totalorder %s10, 5
    %p151 = pnand %p149, %p150
    %p152 = pneg %p151
    // Predicated region
    $region9: #{_lambda_.5} parent=5 // pred_check
      _
    $region10: #{_lambda_.5} parent=5 // pred_check_branch
      %154 = sbr.rel (%p151) target = $region12
    $region11: #{_lambda_.5} parent=5 // pred_region
      %s155 = ssub.s32 %s10, 1
      // Predicated region
      $region13: #{_lambda_.5} parent=11 // pred_check
        %p156 = pneg %p71
      $region14: #{_lambda_.5} parent=11 // pred_check_branch
        %158 = sbr.rel (%p156) target = $region16
      $region15: #{_lambda_.5} parent=11 // pred_region
        _
      $region16: #{_lambda_.5} parent=11 // pred_fallthru
        _
      // Predicated region
      $region17: #{_lambda_.5} parent=11 // pred_check
        %p159 = pneg %p92
      $region18: #{_lambda_.5} parent=11 // pred_check_branch
        %161 = sbr.rel (%p159) target = $region20
      $region19: #{_lambda_.5} parent=11 // pred_region
        _
      $region20: #{_lambda_.5} parent=11 // pred_fallthru
        _
      // Predicated region
      $region21: #{_lambda_.5} parent=11 // pred_check
        %p162 = pneg %p113
      $region22: #{_lambda_.5} parent=11 // pred_check_branch
        %164 = sbr.rel (%p162) target = $region24
      $region23: #{_lambda_.5} parent=11 // pred_region
        _
      $region24: #{_lambda_.5} parent=11 // pred_fallthru
        _
    $region12: #{_lambda_.5} parent=5 // pred_fallthru
      _
    %p165 = scmp.lt.s32.totalorder %s10, 4
    // Predicated region
    $region25: #{_lambda_.5} parent=5 // pred_check
      %p166 = pneg %p165
    $region26: #{_lambda_.5} parent=5 // pred_check_branch
      %168 = sbr.rel (%p166) target = $region28
    $region27: #{_lambda_.5} parent=5 // pred_region
      // Predicated region
      $region29: #{_lambda_.5} parent=27 // pred_check
        %p169 = pneg %p44
      $region30: #{_lambda_.5} parent=27 // pred_check_branch
        %171 = sbr.rel (%p169) target = $region32
      $region31: #{_lambda_.5} parent=27 // pred_region
        %s172 = smul.u32 8, %s18
        %p173 = scmp.lt.s32.totalorder %s17, 1
        %s174 = scalar_select %p173, %s17, 1
        %p175 = scmp.lt.s32.totalorder %s172, 15
        %s176 = scalar_select %p175, %s172, 15
        %s177 = smul.addr %s176, 2
        %s178 = smul.addr %s174, 32
        %s179 = sadd.s32 %s177, %s178
        %s180 = smul.addr %s179, 8
        %s181 = scalar_lea.vmem %s0, %s180
        %s182 = smul.u32 8, %s18
      $region32: #{_lambda_.5} parent=27 // pred_fallthru
        _
    $region28: #{_lambda_.5} parent=5 // pred_fallthru
      _
    %p183 = scmp.le.s32.totalorder 1, %s10
    %p184 = scmp.lt.s32.totalorder %s10, 5
    %p185 = pnand %p183, %p184
    %p186 = pneg %p185
    // Predicated region
    $region33: #{_lambda_.5} parent=5 // pred_check
      _
    $region34: #{_lambda_.5} parent=5 // pred_check_branch
      %188 = sbr.rel (%p185) target = $region36
    $region35: #{_lambda_.5} parent=5 // pred_region
      %s189 = ssub.s32 %s10, 1
      %s190 = smul.u32 8, %s20
      %p191 = scmp.lt.s32.totalorder %s19, 1
      %s192 = scalar_select %p191, %s19, 1
      %p193 = scmp.lt.s32.totalorder %s190, 15
      %s194 = scalar_select %p193, %s190, 15
      %s195 = smul.addr %s194, 2
      %s196 = smul.addr %s192, 32
      %s197 = sadd.s32 %s195, %s196
      %s198 = smul.addr %s197, 8
      %s199 = scalar_lea.vmem %s0, %s198
      %p200 = pneg %p50
      %p201 = pneg %p47
      %p202 = pneg %p71
      %p203 = pneg %p68
      %p204 = pneg %p92
      %p205 = pneg %p89
      %p206 = pneg %p113
      %p207 = pneg %p110
      %p208 = pneg %p141
      %p209 = pneg %p138
      %s210 = smul.u32 8, %s20
      %p211 = scmp.lt.s32.totalorder %s19, 1
      %s212 = scalar_select %p211, %s19, 1
      %p213 = scmp.lt.s32.totalorder %s210, 15
      %s214 = scalar_select %p213, %s210, 15
      %s215 = smul.addr %s214, 2
      %s216 = smul.addr %s212, 32
      %s217 = sadd.s32 %s215, %s216
      %s218 = smul.addr %s217, 8
      %s219 = scalar_lea.vmem %s4, %s218
      %s220 = smul.u32 8, %s20
      %p221 = scmp.lt.s32.totalorder %s19, 1
      %s222 = scalar_select %p221, %s19, 1
      %p223 = scmp.lt.s32.totalorder %s220, 15
      %s224 = scalar_select %p223, %s220, 15
      %s225 = smul.addr %s224, 2
      %s226 = smul.addr %s222, 32
      %s227 = sadd.s32 %s225, %s226
      %s228 = smul.addr %s227, 8
      %s229 = scalar_lea.vmem %s0, %s228
      %s230 = smul.u32 8, %s20
      %s231 = smul.u32 8, %s20
      %p232 = scmp.lt.s32.totalorder %s19, 1
      %s233 = scalar_select %p232, %s19, 1
      %p234 = scmp.lt.s32.totalorder %s231, 15
      %s235 = scalar_select %p234, %s231, 15
      %s236 = smul.addr %s235, 2
      %s237 = smul.addr %s233, 32
      %s238 = sadd.s32 %s236, %s237
      %s239 = smul.addr %s238, 8
      %s240 = scalar_lea.vmem %s4, %s239
      %s241 = smul.u32 8, %s20
      %v242 = vld [vmem:[%s1] sm:$0x1]
      %v243 = vmul.f32 %v242, 0.001953125
      %v244 = vld [vmem:[%s1 + $0x1] sm:$0x1]
      %v245 = vmul.f32 %v244, 0.001953125
      %v246 = vmul.f32 %v243, %v243
      %v247 = vsub.f32 %v245, %v246
      %v248 = vmax.f32 %v247, 0.0
      %v249 = vadd.f32 %v248, 1e-05
      %v250 = vrsqrt.pop %v249
      %v251 = vmul.f32 %v250, %v249
      %v252 = vmul.f32 %v251, %v250
      %v253 = vmul.f32 0.5, %v252
      %v254 = vsub.f32 1.5, %v253
      %v255 = vmul.f32 %v250, %v254
      %vm256 = vweird.f32 %v249
      %vm257 = vweird.f32 %v250
      %vm258 = vmor %vm256, %vm257
      %v259 = vsel %vm258, %v250, %v255
      %v260 = vld [vmem:[%s2] sm:$0x1]
      %v261 = vmul.f32 %v260, %v259
      %v262 = vld [vmem:[%s3] sm:$0x1]
      %v263 = vmul.f32 %v243, %v261
      %v264 = vsub.f32 %v262, %v263
      %v265 = vld [vmem:[%s229] sm:$0xff]
      %v266 = vld [vmem:[%s229 + $0x8] sm:$0xff]
      %v267 = vld [vmem:[%s229 + $0x10] sm:$0xff]
      %v268 = vld [vmem:[%s229 + $0x18] sm:$0xff]
      %v269 = vld [vmem:[%s229 + $0x20] sm:$0xff]
      %v270 = vld [vmem:[%s229 + $0x28] sm:$0xff]
      %v271 = vld [vmem:[%s229 + $0x30] sm:$0xff]
      %v272 = vld [vmem:[%s229 + $0x38] sm:$0xff]
      %v273 = vld [vmem:[%s229 + $0x40] sm:$0xff]
      %v274 = vld [vmem:[%s229 + $0x48] sm:$0xff]
      %v275 = vld [vmem:[%s229 + $0x50] sm:$0xff]
      %v276 = vld [vmem:[%s229 + $0x58] sm:$0xff]
      %v277 = vld [vmem:[%s229 + $0x60] sm:$0xff]
      %v278 = vld [vmem:[%s229 + $0x68] sm:$0xff]
      %v279 = vld [vmem:[%s229 + $0x70] sm:$0xff]
      %v280 = vld [vmem:[%s229 + $0x78] sm:$0xff]
      %v282 = vperm.slane %v261, 0
      %v284 = vmul.f32 %v265, %v282
      %v285 = vmul.f32 %v266, %v282
      %v286 = vmul.f32 %v267, %v282
      %v287 = vmul.f32 %v268, %v282
      %v288 = vmul.f32 %v269, %v282
      %v289 = vmul.f32 %v270, %v282
      %v290 = vmul.f32 %v271, %v282
      %v291 = vmul.f32 %v272, %v282
      %v292 = vmul.f32 %v273, %v282
      %v293 = vmul.f32 %v274, %v282
      %v294 = vmul.f32 %v275, %v282
      %v295 = vmul.f32 %v276, %v282
      %v296 = vmul.f32 %v277, %v282
      %v297 = vmul.f32 %v278, %v282
      %v298 = vmul.f32 %v279, %v282
      %v299 = vmul.f32 %v280, %v282
      %v301 = vperm.slane %v264, 0
      %v303 = vadd.f32 %v284, %v301
      %v304 = vadd.f32 %v285, %v301
      %v305 = vadd.f32 %v286, %v301
      %v306 = vadd.f32 %v287, %v301
      %v307 = vadd.f32 %v288, %v301
      %v308 = vadd.f32 %v289, %v301
      %v309 = vadd.f32 %v290, %v301
      %v310 = vadd.f32 %v291, %v301
      %v311 = vadd.f32 %v292, %v301
      %v312 = vadd.f32 %v293, %v301
      %v313 = vadd.f32 %v294, %v301
      %v314 = vadd.f32 %v295, %v301
      %v315 = vadd.f32 %v296, %v301
      %v316 = vadd.f32 %v297, %v301
      %v317 = vadd.f32 %v298, %v301
      %v318 = vadd.f32 %v299, %v301
      %v319 = vmax.f32 %v303, 0.0
      %v320 = vmax.f32 %v304, 0.0
      %v321 = vmax.f32 %v305, 0.0
      %v322 = vmax.f32 %v306, 0.0
      %v323 = vmax.f32 %v307, 0.0
      %v324 = vmax.f32 %v308, 0.0
      %v325 = vmax.f32 %v309, 0.0
      %v326 = vmax.f32 %v310, 0.0
      %v327 = vmax.f32 %v311, 0.0
      %v328 = vmax.f32 %v312, 0.0
      %v329 = vmax.f32 %v313, 0.0
      %v330 = vmax.f32 %v314, 0.0
      %v331 = vmax.f32 %v315, 0.0
      %v332 = vmax.f32 %v316, 0.0
      %v333 = vmax.f32 %v317, 0.0
      %v334 = vmax.f32 %v318, 0.0
      %vm335 = vcmask 261120
      %336 = vst.msk [vmem:[%s240] sm:$0xff] %vm335, %v319
      %337 = vst.msk [vmem:[%s240 + $0x8] sm:$0xff] %vm335, %v320
      %338 = vst.msk [vmem:[%s240 + $0x10] sm:$0xff] %vm335, %v321
      %339 = vst.msk [vmem:[%s240 + $0x18] sm:$0xff] %vm335, %v322
      %340 = vst.msk [vmem:[%s240 + $0x20] sm:$0xff] %vm335, %v323
      %341 = vst.msk [vmem:[%s240 + $0x28] sm:$0xff] %vm335, %v324
      %342 = vst.msk [vmem:[%s240 + $0x30] sm:$0xff] %vm335, %v325
      %343 = vst.msk [vmem:[%s240 + $0x38] sm:$0xff] %vm335, %v326
      %344 = vst.msk [vmem:[%s240 + $0x40] sm:$0xff] %vm335, %v327
      %345 = vst.msk [vmem:[%s240 + $0x48] sm:$0xff] %vm335, %v328
      %346 = vst.msk [vmem:[%s240 + $0x50] sm:$0xff] %vm335, %v329
      %347 = vst.msk [vmem:[%s240 + $0x58] sm:$0xff] %vm335, %v330
      %348 = vst.msk [vmem:[%s240 + $0x60] sm:$0xff] %vm335, %v331
      %349 = vst.msk [vmem:[%s240 + $0x68] sm:$0xff] %vm335, %v332
      %350 = vst.msk [vmem:[%s240 + $0x70] sm:$0xff] %vm335, %v333
      %351 = vst.msk [vmem:[%s240 + $0x78] sm:$0xff] %vm335, %v334
      %s352 = smul.u32 8, %s20
      %p353 = scmp.lt.s32.totalorder %s19, 1
      %s354 = scalar_select %p353, %s19, 1
      %p355 = scmp.lt.s32.totalorder %s352, 15
      %s356 = scalar_select %p355, %s352, 15
      %s357 = smul.addr %s356, 2
      %s358 = smul.addr %s354, 32
      %s359 = sadd.s32 %s357, %s358
      %s360 = smul.addr %s359, 8
      %s361 = scalar_lea.vmem %s4, %s360
      // Predicated region
      $region37: #{_lambda_.5} parent=35 // pred_check
        %p362 = pneg %p138
      $region38: #{_lambda_.5} parent=35 // pred_check_branch
        %364 = sbr.rel (%p362) target = $region40
      $region39: #{_lambda_.5} parent=35 // pred_region
        %s365 = smul.u32 8, %s20
      $region40: #{_lambda_.5} parent=35 // pred_fallthru
        _
    $region36: #{_lambda_.5} parent=5 // pred_fallthru
      _
    %p366 = scmp.le.s32.totalorder 2, %s10
    // Predicated region
    $region41: #{_lambda_.5} parent=5 // pred_check
      %p367 = pneg %p366
    $region42: #{_lambda_.5} parent=5 // pred_check_branch
      %369 = sbr.rel (%p367) target = $region44
    $region43: #{_lambda_.5} parent=5 // pred_region
      %s370 = ssub.s32 %s10, 2
      // Predicated region
      $region45: #{_lambda_.5} parent=43 // pred_check
        %p371 = pneg %p144
      $region46: #{_lambda_.5} parent=43 // pred_check_branch
        %373 = sbr.rel (%p371) target = $region48
      $region47: #{_lambda_.5} parent=43 // pred_region
        %s374 = smul.u32 8, %s22
        %p375 = scmp.lt.s32.totalorder %s21, 1
        %s376 = scalar_select %p375, %s21, 1
        %p377 = scmp.lt.s32.totalorder %s374, 15
        %s378 = scalar_select %p377, %s374, 15
        %s379 = smul.addr %s378, 2
        %s380 = smul.addr %s376, 32
        %s381 = sadd.s32 %s379, %s380
        %s382 = smul.addr %s381, 8
        %s383 = scalar_lea.vmem %s4, %s382
      $region48: #{_lambda_.5} parent=43 // pred_fallthru
        _
    $region44: #{_lambda_.5} parent=5 // pred_fallthru
      _
  $region6: #{_lambda_.5} parent=0 // loop_footer
    %s14 = sadd.s32 1, %s10
  $region7: #{_lambda_.5} parent=0 // loop_footer_branch
    %9 = sbr.rel target = $region3
  $region8: #{_lambda_.5} parent=0 // loop_exit
    _

// kernel: _lambda_.7
$region0: #{_lambda_.7}
  #allocation0 [shape = 'u32[]', space=smem, size = 0x4, offset = 0x4, fixed_abs, tag = 'smem constant byte address 0x4 - core index']
  #allocation1 [shape = 'u32[72,128]{1,0:T(1,128)}', space=vmem, size = 0x9000, scoped, tag = 'internal scratch']
  %s0 = inlined_call_operand.vmem [shape: f32[2,16,16,32], index: 0, kind: input, shape index: {}]
  %s1 = inlined_call_operand.vmem [shape: f32[2,32], index: 1, kind: input, shape index: {}]
  %s2 = inlined_call_operand.vmem [shape: f32[1,32], index: 2, kind: input, shape index: {}]
  %s3 = inlined_call_operand.vmem [shape: f32[1,32], index: 3, kind: input, shape index: {}]
  %s4 = inlined_call_operand.hbm [shape: f32[2,16,16,32], index: 4, kind: output, shape index: {}]
  %s5 = sld [smem:[#allocation0]]
  $region49: #{_lambda_.7} parent=0
    _
  %s7 = ssub.s32 1, %s5
  %s8 = scalar_select 0, %s7, %s5
  $region1: #{_lambda_.7} parent=0
    #allocation2 [shape = 'u8[131072]{0}', space=vmem, size = 0x20000, scoped, tag = 'output window, operand 0']
    #allocation3 [shape = 's32[2]{0}', space=sflag, size = 0x8, scoped, tag = 'scoped memory for _lambda_.7']
    %9 = vsyncpa [#allocation3], 0
    %s10 = scalar_lea.sflag [#allocation3], 1
    %11 = vsyncpa %s10, 0
    loop: start=0, step=1, limit=6
    $region2: #{_lambda_.7} parent=1 // loop_pre_header
      _
    $region3: #{_lambda_.7} parent=1 // loop_header
      %s13 = sphi 0, %s17
      %p14 = scmp.ge.s32.totalorder %s13, 6
      %s20 = sphi 0, %s32
      %s21 = sphi 0, %s28
      %s22 = sphi 0, %s20
      %s23 = sphi 0, %s21
      %s24 = sphi 0, %s22
      %s25 = sphi 0, %s23
      %s37 = sphi 0, %s39
      %s40 = sphi 0, %s37
      %s41 = sphi 0, %s40
      %s57 = sphi 0, %s41
      %s61 = sphi 0, %s61
      %s63 = sphi 0, %s61
      %s64 = sphi 0, %s63
      %s78 = sphi 0, %s64
      %s82 = sphi 0, %s82
      %s84 = sphi 0, %s82
      %s85 = sphi 0, %s84
      %s99 = sphi 0, %s85
      %s103 = sphi 0, %s103
      %s105 = sphi 0, %s103
      %s106 = sphi 0, %s105
      %s120 = sphi 0, %s106
      %s128 = sphi 0, %s130
      %s131 = sphi 0, %s128
      %s132 = sphi 0, %s131
      %s148 = sphi 0, %s132
    $region4: #{_lambda_.7} parent=1 // loop_header_branch
      %16 = sbr.rel (%p14) target = $region8
    $region5: #{_lambda_.7} parent=1 // loop_body
      %s18 = ssub.s32 %s13, 1
      %s19 = ssub.s32 %s13, 2
      %s26 = sadd.s32 1, %s21
      %p27 = scmp.ge.s32.totalorder %s26, 2
      %s28 = scalar_select %p27, 0, %s26
      %s29 = sadd.s32 1, %s20
      %s30 = scalar_select %p27, %s29, %s20
      %p31 = scmp.ge.s32.totalorder %s30, 2
      %s32 = scalar_select %p31, 0, %s30
      %s33 = ssub.s32 %s20, %s32
      %s34 = ssub.s32 %s21, %s28
      %s35 = sor.u32 %s33, %s34
      %p36 = scmp.eq.s32.totalorder %s35, 0
      %s38 = sadd.s32 %s37, 1
      %s39 = scalar_select %p36, %s37, %s38
      %p42 = pneg %p36
      %p43 = scmp.eq.s32.totalorder %s13, 3
      %p44 = por %p42, %p43
      %p45 = scmp.ne.s32.totalorder %s37, %s40
      %p46 = scmp.eq.s32.totalorder %s13, 0
      %p47 = por %p45, %p46
      %p48 = scmp.ne.s32.totalorder %s37, %s40
      %p49 = scmp.eq.s32.totalorder %s18, 3
      %p50 = por %p48, %p49
      %p51 = scmp.ne.s32.totalorder %s40, %s41
      %p52 = scmp.eq.s32.totalorder %s18, 0
      %p53 = por %p51, %p52
      %p54 = scmp.ne.s32.totalorder %s40, %s41
      %p55 = scmp.eq.s32.totalorder %s19, 3
      %p56 = por %p54, %p55
      %p58 = scmp.ne.s32.totalorder %s41, %s57
      %p59 = scmp.eq.s32.totalorder %s19, 0
      %p60 = por %p58, %p59
      %s62 = sadd.s32 %s61, 1
      %p65 = scmp.eq.s32.totalorder %s13, 3
      %p66 = scmp.ne.s32.totalorder %s61, %s63
      %p67 = scmp.eq.s32.totalorder %s13, 0
      %p68 = por %p66, %p67
      %p69 = scmp.ne.s32.totalorder %s61, %s63
      %p70 = scmp.eq.s32.totalorder %s18, 3
      %p71 = por %p69, %p70
      %p72 = scmp.ne.s32.totalorder %s63, %s64
      %p73 = scmp.eq.s32.totalorder %s18, 0
      %p74 = por %p72, %p73
      %p75 = scmp.ne.s32.totalorder %s63, %s64
      %p76 = scmp.eq.s32.totalorder %s19, 3
      %p77 = por %p75, %p76
      %p79 = scmp.ne.s32.totalorder %s64, %s78
      %p80 = scmp.eq.s32.totalorder %s19, 0
      %p81 = por %p79, %p80
      %s83 = sadd.s32 %s82, 1
      %p86 = scmp.eq.s32.totalorder %s13, 3
      %p87 = scmp.ne.s32.totalorder %s82, %s84
      %p88 = scmp.eq.s32.totalorder %s13, 0
      %p89 = por %p87, %p88
      %p90 = scmp.ne.s32.totalorder %s82, %s84
      %p91 = scmp.eq.s32.totalorder %s18, 3
      %p92 = por %p90, %p91
      %p93 = scmp.ne.s32.totalorder %s84, %s85
      %p94 = scmp.eq.s32.totalorder %s18, 0
      %p95 = por %p93, %p94
      %p96 = scmp.ne.s32.totalorder %s84, %s85
      %p97 = scmp.eq.s32.totalorder %s19, 3
      %p98 = por %p96, %p97
      %p100 = scmp.ne.s32.totalorder %s85, %s99
      %p101 = scmp.eq.s32.totalorder %s19, 0
      %p102 = por %p100, %p101
      %s104 = sadd.s32 %s103, 1
      %p107 = scmp.eq.s32.totalorder %s13, 3
      %p108 = scmp.ne.s32.totalorder %s103, %s105
      %p109 = scmp.eq.s32.totalorder %s13, 0
      %p110 = por %p108, %p109
      %p111 = scmp.ne.s32.totalorder %s103, %s105
      %p112 = scmp.eq.s32.totalorder %s18, 3
      %p113 = por %p111, %p112
      %p114 = scmp.ne.s32.totalorder %s105, %s106
      %p115 = scmp.eq.s32.totalorder %s18, 0
      %p116 = por %p114, %p115
      %p117 = scmp.ne.s32.totalorder %s105, %s106
      %p118 = scmp.eq.s32.totalorder %s19, 3
      %p119 = por %p117, %p118
      %p121 = scmp.ne.s32.totalorder %s106, %s120
      %p122 = scmp.eq.s32.totalorder %s19, 0
      %p123 = por %p121, %p122
      %s124 = ssub.s32 %s20, %s32
      %s125 = ssub.s32 %s21, %s28
      %s126 = sor.u32 %s124, %s125
      %p127 = scmp.eq.s32.totalorder %s126, 0
      %s129 = sadd.s32 %s128, 1
      %s130 = scalar_select %p127, %s128, %s129
      %p133 = pneg %p127
      %p134 = scmp.eq.s32.totalorder %s13, 3
      %p135 = por %p133, %p134
      %p136 = scmp.ne.s32.totalorder %s128, %s131
      %p137 = scmp.eq.s32.totalorder %s13, 0
      %p138 = por %p136, %p137
      %p139 = scmp.ne.s32.totalorder %s128, %s131
      %p140 = scmp.eq.s32.totalorder %s18, 3
      %p141 = por %p139, %p140
      %p142 = scmp.ne.s32.totalorder %s131, %s132
      %p143 = scmp.eq.s32.totalorder %s18, 0
      %p144 = por %p142, %p143
      %p145 = scmp.ne.s32.totalorder %s131, %s132
      %p146 = scmp.eq.s32.totalorder %s19, 3
      %p147 = por %p145, %p146
      %p149 = scmp.ne.s32.totalorder %s132, %s148
      %p150 = scmp.eq.s32.totalorder %s19, 0
      %p151 = por %p149, %p150
      %p152 = scmp.le.s32.totalorder 1, %s13
      %p153 = scmp.lt.s32.totalorder %s13, 5
      %p154 = pnand %p152, %p153
      %p155 = pneg %p154
      // Predicated region
      $region9: #{_lambda_.7} parent=5 // pred_check
        _
      $region10: #{_lambda_.7} parent=5 // pred_check_branch
        %157 = sbr.rel (%p154) target = $region12
      $region11: #{_lambda_.7} parent=5 // pred_region
        %s158 = ssub.s32 %s13, 1
        // Predicated region
        $region13: #{_lambda_.7} parent=11 // pred_check
          %p159 = pneg %p74
        $region14: #{_lambda_.7} parent=11 // pred_check_branch
          %161 = sbr.rel (%p159) target = $region16
        $region15: #{_lambda_.7} parent=11 // pred_region
          _
        $region16: #{_lambda_.7} parent=11 // pred_fallthru
          _
        // Predicated region
        $region17: #{_lambda_.7} parent=11 // pred_check
          %p162 = pneg %p95
        $region18: #{_lambda_.7} parent=11 // pred_check_branch
          %164 = sbr.rel (%p162) target = $region20
        $region19: #{_lambda_.7} parent=11 // pred_region
          _
        $region20: #{_lambda_.7} parent=11 // pred_fallthru
          _
        // Predicated region
        $region21: #{_lambda_.7} parent=11 // pred_check
          %p165 = pneg %p116
        $region22: #{_lambda_.7} parent=11 // pred_check_branch
          %167 = sbr.rel (%p165) target = $region24
        $region23: #{_lambda_.7} parent=11 // pred_region
          _
        $region24: #{_lambda_.7} parent=11 // pred_fallthru
          _
      $region12: #{_lambda_.7} parent=5 // pred_fallthru
        _
      %p168 = scmp.lt.s32.totalorder %s13, 4
      // Predicated region
      $region25: #{_lambda_.7} parent=5 // pred_check
        %p169 = pneg %p168
      $region26: #{_lambda_.7} parent=5 // pred_check_branch
        %171 = sbr.rel (%p169) target = $region28
      $region27: #{_lambda_.7} parent=5 // pred_region
        // Predicated region
        $region29: #{_lambda_.7} parent=27 // pred_check
          %p172 = pneg %p47
        $region30: #{_lambda_.7} parent=27 // pred_check_branch
          %174 = sbr.rel (%p172) target = $region32
        $region31: #{_lambda_.7} parent=27 // pred_region
          %s175 = smul.u32 8, %s21
          %p176 = scmp.lt.s32.totalorder %s20, 1
          %s177 = scalar_select %p176, %s20, 1
          %p178 = scmp.lt.s32.totalorder %s175, 15
          %s179 = scalar_select %p178, %s175, 15
          %s180 = smul.addr %s179, 2
          %s181 = smul.addr %s177, 32
          %s182 = sadd.s32 %s180, %s181
          %s183 = smul.addr %s182, 8
          %s184 = scalar_lea.vmem %s0, %s183
          %s185 = smul.u32 8, %s21
        $region32: #{_lambda_.7} parent=27 // pred_fallthru
          _
      $region28: #{_lambda_.7} parent=5 // pred_fallthru
        _
      %p186 = scmp.le.s32.totalorder 1, %s13
      %p187 = scmp.lt.s32.totalorder %s13, 5
      %p188 = pnand %p186, %p187
      %p189 = pneg %p188
      // Predicated region
      $region33: #{_lambda_.7} parent=5 // pred_check
        _
      $region34: #{_lambda_.7} parent=5 // pred_check_branch
        %191 = sbr.rel (%p188) target = $region36
      $region35: #{_lambda_.7} parent=5 // pred_region
        %s192 = ssub.s32 %s13, 1
        %s193 = smul.u32 8, %s23
        %p194 = scmp.lt.s32.totalorder %s22, 1
        %s195 = scalar_select %p194, %s22, 1
        %p196 = scmp.lt.s32.totalorder %s193, 15
        %s197 = scalar_select %p196, %s193, 15
        %s198 = smul.addr %s197, 2
        %s199 = smul.addr %s195, 32
        %s200 = sadd.s32 %s198, %s199
        %s201 = smul.addr %s200, 8
        %s202 = scalar_lea.vmem %s0, %s201
        %p203 = pneg %p53
        %p204 = pneg %p50
        %p205 = pneg %p74
        %p206 = pneg %p71
        %p207 = pneg %p95
        %p208 = pneg %p92
        %p209 = pneg %p116
        %p210 = pneg %p113
        %p211 = pneg %p144
        %p212 = pneg %p141
        %s213 = sand.u32 %s131, 1
        %s214 = scalar_lea.sflag [#allocation3], %s213
        %s215 = sand.u32 %s131, 1
        %s216 = smul.addr %s215, 128
        %s217 = scalar_lea.vmem [#allocation2], %s216
        %s218 = smul.u32 8, %s23
        %p219 = scmp.lt.s32.totalorder %s22, 1
        %s220 = scalar_select %p219, %s22, 1
        %p221 = scmp.lt.s32.totalorder %s218, 15
        %s222 = scalar_select %p221, %s218, 15
        %s223 = smul.addr %s222, 2
        %s224 = smul.addr %s220, 32
        %s225 = sadd.s32 %s223, %s224
        %s226 = smul.addr %s225, 8
        %s227 = scalar_lea.vmem %s0, %s226
        %s228 = smul.u32 8, %s23
        %s229 = smul.u32 8, %s23
        %v230 = vld [vmem:[%s1] sm:$0x1]
        %v231 = vmul.f32 %v230, 0.001953125
        %v232 = vld [vmem:[%s1 + $0x1] sm:$0x1]
        %v233 = vmul.f32 %v232, 0.001953125
        %v234 = vmul.f32 %v231, %v231
        %v235 = vsub.f32 %v233, %v234
        %v236 = vmax.f32 %v235, 0.0
        %v237 = vadd.f32 %v236, 1e-05
        %v238 = vrsqrt.pop %v237
        %v239 = vmul.f32 %v238, %v237
        %v240 = vmul.f32 %v239, %v238
        %v241 = vmul.f32 0.5, %v240
        %v242 = vsub.f32 1.5, %v241
        %v243 = vmul.f32 %v238, %v242
        %vm244 = vweird.f32 %v237
        %vm245 = vweird.f32 %v238
        %vm246 = vmor %vm244, %vm245
        %v247 = vsel %vm246, %v238, %v243
        %v248 = vld [vmem:[%s2] sm:$0x1]
        %v249 = vmul.f32 %v248, %v247
        %v250 = vld [vmem:[%s3] sm:$0x1]
        %v251 = vmul.f32 %v231, %v249
        %v252 = vsub.f32 %v250, %v251
        %v253 = vld [vmem:[%s227] sm:$0xff]
        %v254 = vld [vmem:[%s227 + $0x8] sm:$0xff]
        %v255 = vld [vmem:[%s227 + $0x10] sm:$0xff]
        %v256 = vld [vmem:[%s227 + $0x18] sm:$0xff]
        %v257 = vld [vmem:[%s227 + $0x20] sm:$0xff]
        %v258 = vld [vmem:[%s227 + $0x28] sm:$0xff]
        %v259 = vld [vmem:[%s227 + $0x30] sm:$0xff]
        %v260 = vld [vmem:[%s227 + $0x38] sm:$0xff]
        %v261 = vld [vmem:[%s227 + $0x40] sm:$0xff]
        %v262 = vld [vmem:[%s227 + $0x48] sm:$0xff]
        %v263 = vld [vmem:[%s227 + $0x50] sm:$0xff]
        %v264 = vld [vmem:[%s227 + $0x58] sm:$0xff]
        %v265 = vld [vmem:[%s227 + $0x60] sm:$0xff]
        %v266 = vld [vmem:[%s227 + $0x68] sm:$0xff]
        %v267 = vld [vmem:[%s227 + $0x70] sm:$0xff]
        %v268 = vld [vmem:[%s227 + $0x78] sm:$0xff]
        %v270 = vperm.slane %v249, 0
        %v272 = vmul.f32 %v253, %v270
        %v273 = vmul.f32 %v254, %v270
        %v274 = vmul.f32 %v255, %v270
        %v275 = vmul.f32 %v256, %v270
        %v276 = vmul.f32 %v257, %v270
        %v277 = vmul.f32 %v258, %v270
        %v278 = vmul.f32 %v259, %v270
        %v279 = vmul.f32 %v260, %v270
        %v280 = vmul.f32 %v261, %v270
        %v281 = vmul.f32 %v262, %v270
        %v282 = vmul.f32 %v263, %v270
        %v283 = vmul.f32 %v264, %v270
        %v284 = vmul.f32 %v265, %v270
        %v285 = vmul.f32 %v266, %v270
        %v286 = vmul.f32 %v267, %v270
        %v287 = vmul.f32 %v268, %v270
        %v289 = vperm.slane %v252, 0
        %v291 = vadd.f32 %v272, %v289
        %v292 = vadd.f32 %v273, %v289
        %v293 = vadd.f32 %v274, %v289
        %v294 = vadd.f32 %v275, %v289
        %v295 = vadd.f32 %v276, %v289
        %v296 = vadd.f32 %v277, %v289
        %v297 = vadd.f32 %v278, %v289
        %v298 = vadd.f32 %v279, %v289
        %v299 = vadd.f32 %v280, %v289
        %v300 = vadd.f32 %v281, %v289
        %v301 = vadd.f32 %v282, %v289
        %v302 = vadd.f32 %v283, %v289
        %v303 = vadd.f32 %v284, %v289
        %v304 = vadd.f32 %v285, %v289
        %v305 = vadd.f32 %v286, %v289
        %v306 = vadd.f32 %v287, %v289
        %v307 = vmax.f32 %v291, 0.0
        %v308 = vmax.f32 %v292, 0.0
        %v309 = vmax.f32 %v293, 0.0
        %v310 = vmax.f32 %v294, 0.0
        %v311 = vmax.f32 %v295, 0.0
        %v312 = vmax.f32 %v296, 0.0
        %v313 = vmax.f32 %v297, 0.0
        %v314 = vmax.f32 %v298, 0.0
        %v315 = vmax.f32 %v299, 0.0
        %v316 = vmax.f32 %v300, 0.0
        %v317 = vmax.f32 %v301, 0.0
        %v318 = vmax.f32 %v302, 0.0
        %v319 = vmax.f32 %v303, 0.0
        %v320 = vmax.f32 %v304, 0.0
        %v321 = vmax.f32 %v305, 0.0
        %v322 = vmax.f32 %v306, 0.0
        %vm323 = vcmask 261120
        %324 = vst.msk [vmem:[%s217] sm:$0xff] %vm323, %v307
        %325 = vst.msk [vmem:[%s217 + $0x8] sm:$0xff] %vm323, %v308
        %326 = vst.msk [vmem:[%s217 + $0x10] sm:$0xff] %vm323, %v309
        %327 = vst.msk [vmem:[%s217 + $0x18] sm:$0xff] %vm323, %v310
        %328 = vst.msk [vmem:[%s217 + $0x20] sm:$0xff] %vm323, %v311
        %329 = vst.msk [vmem:[%s217 + $0x28] sm:$0xff] %vm323, %v312
        %330 = vst.msk [vmem:[%s217 + $0x30] sm:$0xff] %vm323, %v313
        %331 = vst.msk [vmem:[%s217 + $0x38] sm:$0xff] %vm323, %v314
        %332 = vst.msk [vmem:[%s217 + $0x40] sm:$0xff] %vm323, %v315
        %333 = vst.msk [vmem:[%s217 + $0x48] sm:$0xff] %vm323, %v316
        %334 = vst.msk [vmem:[%s217 + $0x50] sm:$0xff] %vm323, %v317
        %335 = vst.msk [vmem:[%s217 + $0x58] sm:$0xff] %vm323, %v318
        %336 = vst.msk [vmem:[%s217 + $0x60] sm:$0xff] %vm323, %v319
        %337 = vst.msk [vmem:[%s217 + $0x68] sm:$0xff] %vm323, %v320
        %338 = vst.msk [vmem:[%s217 + $0x70] sm:$0xff] %vm323, %v321
        %339 = vst.msk [vmem:[%s217 + $0x78] sm:$0xff] %vm323, %v322
        %s340 = sand.u32 %s131, 1
        %s341 = scalar_lea.sflag [#allocation3], %s340
        %s342 = sand.u32 %s131, 1
        %s343 = smul.addr %s342, 128
        %s344 = scalar_lea.vmem [#allocation2], %s343
        // Predicated region
        $region37: #{_lambda_.7} parent=35 // pred_check
          %p345 = pneg %p141
        $region38: #{_lambda_.7} parent=35 // pred_check_branch
          %347 = sbr.rel (%p345) target = $region40
        $region39: #{_lambda_.7} parent=35 // pred_region
          %s348 = smul.u32 8, %s23
          %350 = vsyncadd %s341, 0
          %s351 = smul.addr %s348, 2
          %s352 = smul.addr %s22, 32
          %s353 = sadd.s32 %s351, %s352
          %s354 = smul.addr %s353, 8
          %s355 = scalar_lea.hbm %s4, %s354
          %s356 = sshll.u32 %s344, 4
          %s357 = int_to_ptr.vmem [resolvable:$true] %s356
          %s358 = sshll.u32 %s355, 4
          %s359 = int_to_ptr.hbm [resolvable:$true] %s358
          %364 = dma.vmem_to_hbm [thread:$0]  %s357, 2048, %s359, %s341, 128, 128, 8
        $region40: #{_lambda_.7} parent=35 // pred_fallthru
          _
      $region36: #{_lambda_.7} parent=5 // pred_fallthru
        _
      %p365 = scmp.le.s32.totalorder 2, %s13
      // Predicated region
      $region41: #{_lambda_.7} parent=5 // pred_check
        %p366 = pneg %p365
      $region42: #{_lambda_.7} parent=5 // pred_check_branch
        %368 = sbr.rel (%p366) target = $region44
      $region43: #{_lambda_.7} parent=5 // pred_region
        %s369 = ssub.s32 %s13, 2
        // Predicated region
        $region45: #{_lambda_.7} parent=43 // pred_check
          %p370 = pneg %p147
        $region46: #{_lambda_.7} parent=43 // pred_check_branch
          %372 = sbr.rel (%p370) target = $region48
        $region47: #{_lambda_.7} parent=43 // pred_region
          %s373 = sand.u32 %s132, 1
          %s374 = scalar_lea.sflag [#allocation3], %s373
          %s375 = sand.u32 %s132, 1
          %s376 = smul.addr %s375, 128
          %s377 = scalar_lea.vmem [#allocation2], %s376
          %379 = dma.done %s374, 2048
        $region48: #{_lambda_.7} parent=43 // pred_fallthru
          _
      $region44: #{_lambda_.7} parent=5 // pred_fallthru
        _
    $region6: #{_lambda_.7} parent=1 // loop_footer
      %s17 = sadd.s32 1, %s13
    $region7: #{_lambda_.7} parent=1 // loop_footer_branch
      %12 = sbr.rel target = $region3
    $region8: #{_lambda_.7} parent=1 // loop_exit
      _
    %380 = vsyncpa [#allocation3], 1
    %s381 = scalar_lea.sflag [#allocation3], 1
    %382 = vsyncpa %s381, 1

// kernel: _lambda_.4
$region0: #{_lambda_.4}
  #allocation0 [shape = 'u32[]', space=smem, size = 0x4, offset = 0x4, fixed_abs, tag = 'smem constant byte address 0x4 - core index']
  #allocation1 [shape = 'u32[72,128]{1,0:T(1,128)}', space=vmem, size = 0x9000, scoped, tag = 'internal scratch']
  %s0 = inlined_call_operand.vmem [shape: bf16[2,18,18,4], index: 0, kind: input, shape index: {}]
  %s1 = inlined_call_operand.vmem [shape: bf16[9,4,32], index: 1, kind: input, shape index: {}]
  %s2 = inlined_call_operand.vmem [shape: f32[1,32], index: 2, kind: input, shape index: {}]
  %s3 = inlined_call_operand.vmem [shape: f32[2,16,16,32], index: 3, kind: output, shape index: {0}]
  %s4 = inlined_call_operand.vmem [shape: f32[2,2,32], index: 4, kind: output, shape index: {1}]
  %5 = xla_tuple %s3, %s4
  %s6 = sld [smem:[#allocation0]]
  $region57: #{_lambda_.4} parent=0
    _
  %s8 = ssub.s32 1, %s6
  %s9 = scalar_select 0, %s8, %s6
  loop: start=0, step=1, limit=6
  $region2: #{_lambda_.4} parent=0 // loop_pre_header
    _
  $region3: #{_lambda_.4} parent=0 // loop_header
    %s11 = sphi 0, %s15
    %p12 = scmp.ge.s32.totalorder %s11, 6
    %s18 = sphi 0, %s30
    %s19 = sphi 0, %s26
    %s20 = sphi 0, %s18
    %s21 = sphi 0, %s19
    %s22 = sphi 0, %s20
    %s23 = sphi 0, %s21
    %s33 = sphi 0, %s35
    %s36 = sphi 0, %s33
    %s37 = sphi 0, %s36
    %s53 = sphi 0, %s37
    %s57 = sphi 0, %s57
    %s59 = sphi 0, %s57
    %s60 = sphi 0, %s59
    %s74 = sphi 0, %s60
    %s78 = sphi 0, %s78
    %s80 = sphi 0, %s78
    %s81 = sphi 0, %s80
    %s95 = sphi 0, %s81
    %s103 = sphi 0, %s105
    %s106 = sphi 0, %s103
    %s107 = sphi 0, %s106
    %s123 = sphi 0, %s107
    %s129 = sphi 0, %s131
    %s132 = sphi 0, %s129
    %s133 = sphi 0, %s132
    %s149 = sphi 0, %s133
  $region4: #{_lambda_.4} parent=0 // loop_header_branch
    %14 = sbr.rel (%p12) target = $region8
  $region5: #{_lambda_.4} parent=0 // loop_body
    %s16 = ssub.s32 %s11, 1
    %s17 = ssub.s32 %s11, 2
    %s24 = sadd.s32 1, %s19
    %p25 = scmp.ge.s32.totalorder %s24, 2
    %s26 = scalar_select %p25, 0, %s24
    %s27 = sadd.s32 1, %s18
    %s28 = scalar_select %p25, %s27, %s18
    %p29 = scmp.ge.s32.totalorder %s28, 2
    %s30 = scalar_select %p29, 0, %s28
    %s31 = ssub.s32 %s18, %s30
    %p32 = scmp.eq.s32.totalorder %s31, 0
    %s34 = sadd.s32 %s33, 1
    %s35 = scalar_select %p32, %s33, %s34
    %p38 = pneg %p32
    %p39 = scmp.eq.s32.totalorder %s11, 3
    %p40 = por %p38, %p39
    %p41 = scmp.ne.s32.totalorder %s33, %s36
    %p42 = scmp.eq.s32.totalorder %s11, 0
    %p43 = por %p41, %p42
    %p44 = scmp.ne.s32.totalorder %s33, %s36
    %p45 = scmp.eq.s32.totalorder %s16, 3
    %p46 = por %p44, %p45
    %p47 = scmp.ne.s32.totalorder %s36, %s37
    %p48 = scmp.eq.s32.totalorder %s16, 0
    %p49 = por %p47, %p48
    %p50 = scmp.ne.s32.totalorder %s36, %s37
    %p51 = scmp.eq.s32.totalorder %s17, 3
    %p52 = por %p50, %p51
    %p54 = scmp.ne.s32.totalorder %s37, %s53
    %p55 = scmp.eq.s32.totalorder %s17, 0
    %p56 = por %p54, %p55
    %s58 = sadd.s32 %s57, 1
    %p61 = scmp.eq.s32.totalorder %s11, 3
    %p62 = scmp.ne.s32.totalorder %s57, %s59
    %p63 = scmp.eq.s32.totalorder %s11, 0
    %p64 = por %p62, %p63
    %p65 = scmp.ne.s32.totalorder %s57, %s59
    %p66 = scmp.eq.s32.totalorder %s16, 3
    %p67 = por %p65, %p66
    %p68 = scmp.ne.s32.totalorder %s59, %s60
    %p69 = scmp.eq.s32.totalorder %s16, 0
    %p70 = por %p68, %p69
    %p71 = scmp.ne.s32.totalorder %s59, %s60
    %p72 = scmp.eq.s32.totalorder %s17, 3
    %p73 = por %p71, %p72
    %p75 = scmp.ne.s32.totalorder %s60, %s74
    %p76 = scmp.eq.s32.totalorder %s17, 0
    %p77 = por %p75, %p76
    %s79 = sadd.s32 %s78, 1
    %p82 = scmp.eq.s32.totalorder %s11, 3
    %p83 = scmp.ne.s32.totalorder %s78, %s80
    %p84 = scmp.eq.s32.totalorder %s11, 0
    %p85 = por %p83, %p84
    %p86 = scmp.ne.s32.totalorder %s78, %s80
    %p87 = scmp.eq.s32.totalorder %s16, 3
    %p88 = por %p86, %p87
    %p89 = scmp.ne.s32.totalorder %s80, %s81
    %p90 = scmp.eq.s32.totalorder %s16, 0
    %p91 = por %p89, %p90
    %p92 = scmp.ne.s32.totalorder %s80, %s81
    %p93 = scmp.eq.s32.totalorder %s17, 3
    %p94 = por %p92, %p93
    %p96 = scmp.ne.s32.totalorder %s81, %s95
    %p97 = scmp.eq.s32.totalorder %s17, 0
    %p98 = por %p96, %p97
    %s99 = ssub.s32 %s18, %s30
    %s100 = ssub.s32 %s19, %s26
    %s101 = sor.u32 %s99, %s100
    %p102 = scmp.eq.s32.totalorder %s101, 0
    %s104 = sadd.s32 %s103, 1
    %s105 = scalar_select %p102, %s103, %s104
    %p108 = pneg %p102
    %p109 = scmp.eq.s32.totalorder %s11, 3
    %p110 = por %p108, %p109
    %p111 = scmp.ne.s32.totalorder %s103, %s106
    %p112 = scmp.eq.s32.totalorder %s11, 0
    %p113 = por %p111, %p112
    %p114 = scmp.ne.s32.totalorder %s103, %s106
    %p115 = scmp.eq.s32.totalorder %s16, 3
    %p116 = por %p114, %p115
    %p117 = scmp.ne.s32.totalorder %s106, %s107
    %p118 = scmp.eq.s32.totalorder %s16, 0
    %p119 = por %p117, %p118
    %p120 = scmp.ne.s32.totalorder %s106, %s107
    %p121 = scmp.eq.s32.totalorder %s17, 3
    %p122 = por %p120, %p121
    %p124 = scmp.ne.s32.totalorder %s107, %s123
    %p125 = scmp.eq.s32.totalorder %s17, 0
    %p126 = por %p124, %p125
    %s127 = ssub.s32 %s18, %s30
    %p128 = scmp.eq.s32.totalorder %s127, 0
    %s130 = sadd.s32 %s129, 1
    %s131 = scalar_select %p128, %s129, %s130
    %p134 = pneg %p128
    %p135 = scmp.eq.s32.totalorder %s11, 3
    %p136 = por %p134, %p135
    %p137 = scmp.ne.s32.totalorder %s129, %s132
    %p138 = scmp.eq.s32.totalorder %s11, 0
    %p139 = por %p137, %p138
    %p140 = scmp.ne.s32.totalorder %s129, %s132
    %p141 = scmp.eq.s32.totalorder %s16, 3
    %p142 = por %p140, %p141
    %p143 = scmp.ne.s32.totalorder %s132, %s133
    %p144 = scmp.eq.s32.totalorder %s16, 0
    %p145 = por %p143, %p144
    %p146 = scmp.ne.s32.totalorder %s132, %s133
    %p147 = scmp.eq.s32.totalorder %s17, 3
    %p148 = por %p146, %p147
    %p150 = scmp.ne.s32.totalorder %s133, %s149
    %p151 = scmp.eq.s32.totalorder %s17, 0
    %p152 = por %p150, %p151
    %p153 = scmp.le.s32.totalorder 1, %s11
    %p154 = scmp.lt.s32.totalorder %s11, 5
    %p155 = pnand %p153, %p154
    %p156 = pneg %p155
    // Predicated region
    $region9: #{_lambda_.4} parent=5 // pred_check
      _
    $region10: #{_lambda_.4} parent=5 // pred_check_branch
      %158 = sbr.rel (%p155) target = $region12
    $region11: #{_lambda_.4} parent=5 // pred_region
      %s159 = ssub.s32 %s11, 1
      // Predicated region
      $region13: #{_lambda_.4} parent=11 // pred_check
        %p160 = pneg %p70
      $region14: #{_lambda_.4} parent=11 // pred_check_branch
        %162 = sbr.rel (%p160) target = $region16
      $region15: #{_lambda_.4} parent=11 // pred_region
        _
      $region16: #{_lambda_.4} parent=11 // pred_fallthru
        _
      // Predicated region
      $region17: #{_lambda_.4} parent=11 // pred_check
        %p163 = pneg %p91
      $region18: #{_lambda_.4} parent=11 // pred_check_branch
        %165 = sbr.rel (%p163) target = $region20
      $region19: #{_lambda_.4} parent=11 // pred_region
        _
      $region20: #{_lambda_.4} parent=11 // pred_fallthru
        _
    $region12: #{_lambda_.4} parent=5 // pred_fallthru
      _
    %p166 = scmp.lt.s32.totalorder %s11, 4
    // Predicated region
    $region21: #{_lambda_.4} parent=5 // pred_check
      %p167 = pneg %p166
    $region22: #{_lambda_.4} parent=5 // pred_check_branch
      %169 = sbr.rel (%p167) target = $region24
    $region23: #{_lambda_.4} parent=5 // pred_region
      // Predicated region
      $region25: #{_lambda_.4} parent=23 // pred_check
        %p170 = pneg %p43
      $region26: #{_lambda_.4} parent=23 // pred_check_branch
        %172 = sbr.rel (%p170) target = $region28
      $region27: #{_lambda_.4} parent=23 // pred_region
        %p173 = scmp.lt.s32.totalorder %s18, 1
        %s174 = scalar_select %p173, %s18, 1
        %s175 = smul.addr %s174, 54
        %s176 = smul.addr %s175, 4
        %s177 = scalar_lea.vmem %s0, %s176
      $region28: #{_lambda_.4} parent=23 // pred_fallthru
        _
    $region24: #{_lambda_.4} parent=5 // pred_fallthru
      _
    %p178 = scmp.le.s32.totalorder 1, %s11
    %p179 = scmp.lt.s32.totalorder %s11, 5
    %p180 = pnand %p178, %p179
    %p181 = pneg %p180
    // Predicated region
    $region29: #{_lambda_.4} parent=5 // pred_check
      _
    $region30: #{_lambda_.4} parent=5 // pred_check_branch
      %183 = sbr.rel (%p180) target = $region32
    $region31: #{_lambda_.4} parent=5 // pred_region
      %s184 = ssub.s32 %s11, 1
      %p185 = scmp.lt.s32.totalorder %s20, 1
      %s186 = scalar_select %p185, %s20, 1
      %s187 = smul.addr %s186, 54
      %s188 = smul.addr %s187, 4
      %s189 = scalar_lea.vmem %s0, %s188
      %p190 = pneg %p49
      %p191 = pneg %p46
      %p192 = pneg %p70
      %p193 = pneg %p67
      %p194 = pneg %p91
      %p195 = pneg %p88
      %p196 = pneg %p119
      %p197 = pneg %p116
      %s198 = smul.u32 8, %s21
      %p199 = scmp.lt.s32.totalorder %s20, 1
      %s200 = scalar_select %p199, %s20, 1
      %p201 = scmp.lt.s32.totalorder %s198, 15
      %s202 = scalar_select %p201, %s198, 15
      %s203 = smul.addr %s202, 2
      %s204 = smul.addr %s200, 32
      %s205 = sadd.s32 %s203, %s204
      %s206 = smul.addr %s205, 8
      %s207 = scalar_lea.vmem %s3, %s206
      %p208 = pneg %p145
      %p209 = pneg %p142
      %p210 = scmp.lt.s32.totalorder %s20, 1
      %s211 = scalar_select %p210, %s20, 1
      %s212 = smul.addr %s211, 2
      %s213 = scalar_lea.vmem %s4, %s212
      %p214 = scmp.lt.s32.totalorder %s20, 1
      %s215 = scalar_select %p214, %s20, 1
      %s216 = smul.addr %s215, 54
      %s217 = smul.addr %s216, 4
      %s218 = scalar_lea.vmem %s0, %s217
      %s219 = smul.u32 8, %s21
      %p220 = scmp.lt.s32.totalorder %s20, 1
      %s221 = scalar_select %p220, %s20, 1
      %p222 = scmp.lt.s32.totalorder %s219, 15
      %s223 = scalar_select %p222, %s219, 15
      %s224 = smul.addr %s223, 2
      %s225 = smul.addr %s221, 32
      %s226 = sadd.s32 %s224, %s225
      %s227 = smul.addr %s226, 8
      %s228 = scalar_lea.vmem %s3, %s227
      %s229 = smul.u32 8, %s21
      %p230 = scmp.lt.s32.totalorder %s20, 1
      %s231 = scalar_select %p230, %s20, 1
      %s232 = smul.addr %s231, 2
      %s233 = scalar_lea.vmem %s4, %s232
      %s235 = smul.u32 %s21, 8
      %s236 = smul.u32 %s235, 3
      %s237 = smul.addr %s236, 4
      %s238 = scalar_lea.vmem %s218, %s237
      %v239 = vld [vmem:[%s238] sm:$0xf]
      %v240 = vld [vmem:[%s238 + $0x4] sm:$0xf]
      %v241 = vld [vmem:[%s238 + $0xc] sm:$0xf]
      %v242 = vld [vmem:[%s238 + $0x10] sm:$0xf]
      %v243 = vld [vmem:[%s238 + $0x18] sm:$0xf]
      %v244 = vld [vmem:[%s238 + $0x1c] sm:$0xf]
      %v245 = vld [vmem:[%s238 + $0x24] sm:$0xf]
      %v246 = vld [vmem:[%s238 + $0x28] sm:$0xf]
      %v247 = vld [vmem:[%s238 + $0x30] sm:$0xf]
      %v248 = vld [vmem:[%s238 + $0x34] sm:$0xf]
      %v249 = vld [vmem:[%s238 + $0x3c] sm:$0xf]
      %v250 = vld [vmem:[%s238 + $0x40] sm:$0xf]
      %v251 = vld [vmem:[%s238 + $0x48] sm:$0xf]
      %v252 = vld [vmem:[%s238 + $0x4c] sm:$0xf]
      %v253 = vld [vmem:[%s238 + $0x54] sm:$0xf]
      %v254 = vld [vmem:[%s238 + $0x58] sm:$0xf]
      %v255 = vld [vmem:[%s1] sm:$0x3]
      %v256 = vld [vmem:[%s238 + $0x8] sm:$0x1]
      %v257 = vld [vmem:[%s238 + $0x14] sm:$0x1]
      %v258 = vld [vmem:[%s238 + $0x20] sm:$0x1]
      %v259 = vld [vmem:[%s238 + $0x2c] sm:$0x1]
      %v260 = vld [vmem:[%s238 + $0x38] sm:$0x1]
      %v261 = vld [vmem:[%s238 + $0x44] sm:$0x1]
      %v262 = vld [vmem:[%s238 + $0x50] sm:$0x1]
      %v263 = vld [vmem:[%s238 + $0x5c] sm:$0x1]
      %vm264 = vsmask.f32 3328
      %vm265 = vsmask.f32 7440
      %vm266 = vmor %vm264, %vm265
      %v268 = vshrl.u32 %v239, 16
      %v270 = vrot.slane %v268, 4
      %v271 = vshll.u32 %v239, 16
      %v273 = vrot.slane %v271, 5
      %v274 = vor.u32 %v270, %v273
      %v275 = vrot.slane %v274, 4
      %v277 = vshll.u32 %v240, 16
      %v279 = vrot.slane %v277, 5
      %v280 = vsel %vm266, %v275, %v279
      %v281 = vshrl.u32 %v240, 16
      %v283 = vrot.slane %v281, 4
      %v284 = vor.u32 %v283, %v279
      %v285 = vrot.slane %v284, 4
      %v287 = vshll.u32 %v256, 16
      %v289 = vrot.slane %v287, 5
      %v290 = vsel %vm266, %v285, %v289
      %v292 = vshrl.u32 %v241, 16
      %v294 = vrot.slane %v292, 4
      %v295 = vshll.u32 %v241, 16
      %v297 = vrot.slane %v295, 5
      %v298 = vor.u32 %v294, %v297
      %v299 = vrot.slane %v298, 4
      %v301 = vshll.u32 %v242, 16
      %v303 = vrot.slane %v301, 5
      %v304 = vsel %vm266, %v299, %v303
      %v305 = vshrl.u32 %v242, 16
      %v307 = vrot.slane %v305, 4
      %v308 = vor.u32 %v307, %v303
      %v309 = vrot.slane %v308, 4
      %v311 = vshll.u32 %v257, 16
      %v313 = vrot.slane %v311, 5
      %v314 = vsel %vm266, %v309, %v313
      %v316 = vshrl.u32 %v243, 16
      %v318 = vrot.slane %v316, 4
      %v319 = vshll.u32 %v243, 16
      %v321 = vrot.slane %v319, 5
      %v322 = vor.u32 %v318, %v321
      %v323 = vrot.slane %v322, 4
      %v325 = vshll.u32 %v244, 16
      %v327 = vrot.slane %v325, 5
      %v328 = vsel %vm266, %v323, %v327
      %v329 = vshrl.u32 %v244, 16
      %v331 = vrot.slane %v329, 4
      %v332 = vor.u32 %v331, %v327
      %v333 = vrot.slane %v332, 4
      %v335 = vshll.u32 %v258, 16
      %v337 = vrot.slane %v335, 5
      %v338 = vsel %vm266, %v333, %v337
      %v340 = vshrl.u32 %v245, 16
      %v342 = vrot.slane %v340, 4
      %v343 = vshll.u32 %v245, 16
      %v345 = vrot.slane %v343, 5
      %v346 = vor.u32 %v342, %v345
      %v347 = vrot.slane %v346, 4
      %v349 = vshll.u32 %v246, 16
      %v351 = vrot.slane %v349, 5
      %v352 = vsel %vm266, %v347, %v351
      %v353 = vshrl.u32 %v246, 16
      %v355 = vrot.slane %v353, 4
      %v356 = vor.u32 %v355, %v351
      %v357 = vrot.slane %v356, 4
      %v359 = vshll.u32 %v259, 16
      %v361 = vrot.slane %v359, 5
      %v362 = vsel %vm266, %v357, %v361
      %v364 = vshrl.u32 %v247, 16
      %v366 = vrot.slane %v364, 4
      %v367 = vshll.u32 %v247, 16
      %v369 = vrot.slane %v367, 5
      %v370 = vor.u32 %v366, %v369
      %v371 = vrot.slane %v370, 4
      %v373 = vshll.u32 %v248, 16
      %v375 = vrot.slane %v373, 5
      %v376 = vsel %vm266, %v371, %v375
      %v377 = vshrl.u32 %v248, 16
      %v379 = vrot.slane %v377, 4
      %v380 = vor.u32 %v379, %v375
      %v381 = vrot.slane %v380, 4
      %v383 = vshll.u32 %v260, 16
      %v385 = vrot.slane %v383, 5
      %v386 = vsel %vm266, %v381, %v385
      %v388 = vshrl.u32 %v249, 16
      %v390 = vrot.slane %v388, 4
      %v391 = vshll.u32 %v249, 16
      %v393 = vrot.slane %v391, 5
      %v394 = vor.u32 %v390, %v393
      %v395 = vrot.slane %v394, 4
      %v397 = vshll.u32 %v250, 16
      %v399 = vrot.slane %v397, 5
      %v400 = vsel %vm266, %v395, %v399
      %v401 = vshrl.u32 %v250, 16
      %v403 = vrot.slane %v401, 4
      %v404 = vor.u32 %v403, %v399
      %v405 = vrot.slane %v404, 4
      %v407 = vshll.u32 %v261, 16
      %v409 = vrot.slane %v407, 5
      %v410 = vsel %vm266, %v405, %v409
      %v412 = vshrl.u32 %v251, 16
      %v414 = vrot.slane %v412, 4
      %v415 = vshll.u32 %v251, 16
      %v417 = vrot.slane %v415, 5
      %v418 = vor.u32 %v414, %v417
      %v419 = vrot.slane %v418, 4
      %v421 = vshll.u32 %v252, 16
      %v423 = vrot.slane %v421, 5
      %v424 = vsel %vm266, %v419, %v423
      %v425 = vshrl.u32 %v252, 16
      %v427 = vrot.slane %v425, 4
      %v428 = vor.u32 %v427, %v423
      %v429 = vrot.slane %v428, 4
      %v431 = vshll.u32 %v262, 16
      %v433 = vrot.slane %v431, 5
      %v434 = vsel %vm266, %v429, %v433
      %v436 = vshrl.u32 %v253, 16
      %v438 = vrot.slane %v436, 4
      %v439 = vshll.u32 %v253, 16
      %v441 = vrot.slane %v439, 5
      %v442 = vor.u32 %v438, %v441
      %v443 = vrot.slane %v442, 4
      %v445 = vshll.u32 %v254, 16
      %v447 = vrot.slane %v445, 5
      %v448 = vsel %vm266, %v443, %v447
      %v449 = vshrl.u32 %v254, 16
      %v451 = vrot.slane %v449, 4
      %v452 = vor.u32 %v451, %v447
      %v453 = vrot.slane %v452, 4
      %v455 = vshll.u32 %v263, 16
      %v457 = vrot.slane %v455, 5
      %v458 = vsel %vm266, %v453, %v457
      %s459 = scalar_lea.vmem %s1, 2
      %v460 = vld [vmem:[%s459] sm:$0x3]
      %v461 = vunpack.c.l.b16 %v280
      %v462 = vunpack.c.l.b16 %v290
      %v463 = vunpack.c.l.b16 %v304
      %v464 = vunpack.c.l.b16 %v314
      %v465 = vunpack.c.l.b16 %v328
      %v466 = vunpack.c.l.b16 %v338
      %v467 = vunpack.c.l.b16 %v352
      %v468 = vunpack.c.l.b16 %v362
      %v469 = vunpack.c.l.b16 %v376
      %v470 = vunpack.c.l.b16 %v386
      %v471 = vunpack.c.l.b16 %v400
      %v472 = vunpack.c.l.b16 %v410
      %v473 = vunpack.c.l.b16 %v424
      %v474 = vunpack.c.l.b16 %v434
      %v475 = vunpack.c.l.b16 %v448
      %v476 = vunpack.c.l.b16 %v458
      %v477 = vpack.c.b16 %v462, %v461
      %v478 = vpack.c.b16 %v464, %v463
      %v479 = vpack.c.b16 %v466, %v465
      %v480 = vpack.c.b16 %v468, %v467
      %v481 = vpack.c.b16 %v470, %v469
      %v482 = vpack.c.b16 %v472, %v471
      %v483 = vpack.c.b16 %v474, %v473
      %v484 = vpack.c.b16 %v476, %v475
      %vm485 = vcmask 31744
      %v487 = vsel %vm485, %v477, 0
      %v490 = vsel %vm485, %v478, 0
      %v493 = vsel %vm485, %v479, 0
      %v496 = vsel %vm485, %v480, 0
      %v499 = vsel %vm485, %v481, 0
      %v502 = vsel %vm485, %v482, 0
      %v505 = vsel %vm485, %v483, 0
      %v508 = vsel %vm485, %v484, 0
      %vm510 = vcmask 1041408
      %v512 = vsel %vm510, %v460, 0
      %514 = vmatpush.bf16.msra.mxu0 0
      %515 = vmatpush.bf16.msra.mxu0 0
      %516 = vmatpush.bf16.msra.mxu0 0
      %517 = vmatpush.bf16.msra.mxu0 0
      %518 = vmatpush.bf16.msra.mxu0 0
      %519 = vmatpush.bf16.msra.mxu0 0
      %520 = vmatpush.bf16.msra.mxu0 0
      %521 = vmatpush.bf16.msra.mxu0 %v512
      %522 = vmatmul.bf16.gmra.mxu0 %v487
      %v523 = vpop.f32.mrf.mxu0
      %v524 = vadd.f32 0.0, %v523
      %v525 = vpop.f32.mrf.mxu0
      %v526 = vadd.f32 0.0, %v525
      %527 = vmatmul.bf16.gmra.mxu0 %v490
      %v528 = vpop.f32.mrf.mxu0
      %v529 = vadd.f32 0.0, %v528
      %v530 = vpop.f32.mrf.mxu0
      %v531 = vadd.f32 0.0, %v530
      %532 = vmatmul.bf16.gmra.mxu0 %v493
      %v533 = vpop.f32.mrf.mxu0
      %v534 = vadd.f32 0.0, %v533
      %v535 = vpop.f32.mrf.mxu0
      %v536 = vadd.f32 0.0, %v535
      %537 = vmatmul.bf16.gmra.mxu0 %v496
      %v538 = vpop.f32.mrf.mxu0
      %v539 = vadd.f32 0.0, %v538
      %v540 = vpop.f32.mrf.mxu0
      %v541 = vadd.f32 0.0, %v540
      %542 = vmatmul.bf16.gmra.mxu0 %v499
      %v543 = vpop.f32.mrf.mxu0
      %v544 = vadd.f32 0.0, %v543
      %v545 = vpop.f32.mrf.mxu0
      %v546 = vadd.f32 0.0, %v545
      %547 = vmatmul.bf16.gmra.mxu0 %v502
      %v548 = vpop.f32.mrf.mxu0
      %v549 = vadd.f32 0.0, %v548
      %v550 = vpop.f32.mrf.mxu0
      %v551 = vadd.f32 0.0, %v550
      %552 = vmatmul.bf16.gmra.mxu0 %v505
      %v553 = vpop.f32.mrf.mxu0
      %v554 = vadd.f32 0.0, %v553
      %v555 = vpop.f32.mrf.mxu0
      %v556 = vadd.f32 0.0, %v555
      %557 = vmatmul.bf16.gmra.mxu0 %v508
      %v558 = vpop.f32.mrf.mxu0
      %v559 = vadd.f32 0.0, %v558
      %v560 = vpop.f32.mrf.mxu0
      %v561 = vadd.f32 0.0, %v560
      %562 = vdwg.mxu0
      %v579 = vunpack.c.l.b16 %v239
      %v580 = vunpack.c.l.b16 %v240
      %v581 = vunpack.c.l.b16 %v241
      %v582 = vunpack.c.l.b16 %v242
      %v583 = vunpack.c.l.b16 %v243
      %v584 = vunpack.c.l.b16 %v244
      %v585 = vunpack.c.l.b16 %v245
      %v586 = vunpack.c.l.b16 %v246
      %v587 = vunpack.c.l.b16 %v247
      %v588 = vunpack.c.l.b16 %v248
      %v589 = vunpack.c.l.b16 %v249
      %v590 = vunpack.c.l.b16 %v250
      %v591 = vunpack.c.l.b16 %v251
      %v592 = vunpack.c.l.b16 %v252
      %v593 = vunpack.c.l.b16 %v253
      %v594 = vunpack.c.l.b16 %v254
      %v595 = vpack.c.b16 %v580, %v579
      %v596 = vpack.c.b16 %v582, %v581
      %v597 = vpack.c.b16 %v584, %v583
      %v598 = vpack.c.b16 %v586, %v585
      %v599 = vpack.c.b16 %v588, %v587
      %v600 = vpack.c.b16 %v590, %v589
      %v601 = vpack.c.b16 %v592, %v591
      %v602 = vpack.c.b16 %v594, %v593
      %v604 = vsel %vm485, %v595, 0
      %v607 = vsel %vm485, %v596, 0
      %v610 = vsel %vm485, %v597, 0
      %v613 = vsel %vm485, %v598, 0
      %v616 = vsel %vm485, %v599, 0
      %v619 = vsel %vm485, %v600, 0
      %v622 = vsel %vm485, %v601, 0
      %v625 = vsel %vm485, %v602, 0
      %v628 = vsel %vm510, %v255, 0
      %630 = vmatpush.bf16.msra.mxu0 0
      %631 = vmatpush.bf16.msra.mxu0 0
      %632 = vmatpush.bf16.msra.mxu0 0
      %633 = vmatpush.bf16.msra.mxu0 0
      %634 = vmatpush.bf16.msra.mxu0 0
      %635 = vmatpush.bf16.msra.mxu0 0
      %636 = vmatpush.bf16.msra.mxu0 0
      %637 = vmatpush.bf16.msra.mxu0 %v628
      %638 = vmatmul.bf16.gmra.mxu0 %v604
      %v639 = vpop.f32.mrf.mxu0
      %v640 = vadd.f32 %v524, %v639
      %v641 = vpop.f32.mrf.mxu0
      %v642 = vadd.f32 %v526, %v641
      %643 = vmatmul.bf16.gmra.mxu0 %v607
      %v644 = vpop.f32.mrf.mxu0
      %v645 = vadd.f32 %v529, %v644
      %v646 = vpop.f32.mrf.mxu0
      %v647 = vadd.f32 %v531, %v646
      %648 = vmatmul.bf16.gmra.mxu0 %v610
      %v649 = vpop.f32.mrf.mxu0
      %v650 = vadd.f32 %v534, %v649
      %v651 = vpop.f32.mrf.mxu0
      %v652 = vadd.f32 %v536, %v651
      %653 = vmatmul.bf16.gmra.mxu0 %v613
      %v654 = vpop.f32.mrf.mxu0
      %v655 = vadd.f32 %v539, %v654
      %v656 = vpop.f32.mrf.mxu0
      %v657 = vadd.f32 %v541, %v656
      %658 = vmatmul.bf16.gmra.mxu0 %v616
      %v659 = vpop.f32.mrf.mxu0
      %v660 = vadd.f32 %v544, %v659
      %v661 = vpop.f32.mrf.mxu0
      %v662 = vadd.f32 %v546, %v661
      %663 = vmatmul.bf16.gmra.mxu0 %v619
      %v664 = vpop.f32.mrf.mxu0
      %v665 = vadd.f32 %v549, %v664
      %v666 = vpop.f32.mrf.mxu0
      %v667 = vadd.f32 %v551, %v666
      %668 = vmatmul.bf16.gmra.mxu0 %v622
      %v669 = vpop.f32.mrf.mxu0
      %v670 = vadd.f32 %v554, %v669
      %v671 = vpop.f32.mrf.mxu0
      %v672 = vadd.f32 %v556, %v671
      %673 = vmatmul.bf16.gmra.mxu0 %v625
      %v674 = vpop.f32.mrf.mxu0
      %v675 = vadd.f32 %v559, %v674
      %v676 = vpop.f32.mrf.mxu0
      %v677 = vadd.f32 %v561, %v676
      %678 = vdwg.mxu0
      %v679 = vld [vmem:[%s238] sm:$0xe]
      %v680 = vld [vmem:[%s238 + $0xc] sm:$0xe]
      %v681 = vld [vmem:[%s238 + $0x18] sm:$0xe]
      %v682 = vld [vmem:[%s238 + $0x24] sm:$0xe]
      %v683 = vld [vmem:[%s238 + $0x30] sm:$0xe]
      %v684 = vld [vmem:[%s238 + $0x3c] sm:$0xe]
      %v685 = vld [vmem:[%s238 + $0x48] sm:$0xe]
      %v686 = vld [vmem:[%s238 + $0x54] sm:$0xe]
      %vm703 = vcmask 1042432
      %vm704 = vcmask 1046532
      %vm705 = vmor %vm703, %vm704
      %v706 = vrot.slane %v679, 5
      %v707 = vrot.slane %v706, 4
      %v708 = vrot.slane %v240, 5
      %v709 = vsel %vm705, %v707, %v708
      %v710 = vrot.slane %v708, 4
      %v711 = vrot.slane %v256, 5
      %v712 = vsel %vm705, %v710, %v711
      %v713 = vrot.slane %v680, 5
      %v714 = vrot.slane %v713, 4
      %v715 = vrot.slane %v242, 5
      %v716 = vsel %vm705, %v714, %v715
      %v717 = vrot.slane %v715, 4
      %v718 = vrot.slane %v257, 5
      %v719 = vsel %vm705, %v717, %v718
      %v720 = vrot.slane %v681, 5
      %v721 = vrot.slane %v720, 4
      %v722 = vrot.slane %v244, 5
      %v723 = vsel %vm705, %v721, %v722
      %v724 = vrot.slane %v722, 4
      %v725 = vrot.slane %v258, 5
      %v726 = vsel %vm705, %v724, %v725
      %v727 = vrot.slane %v682, 5
      %v728 = vrot.slane %v727, 4
      %v729 = vrot.slane %v246, 5
      %v730 = vsel %vm705, %v728, %v729
      %v731 = vrot.slane %v729, 4
      %v732 = vrot.slane %v259, 5
      %v733 = vsel %vm705, %v731, %v732
      %v734 = vrot.slane %v683, 5
      %v735 = vrot.slane %v734, 4
      %v736 = vrot.slane %v248, 5
      %v737 = vsel %vm705, %v735, %v736
      %v738 = vrot.slane %v736, 4
      %v739 = vrot.slane %v260, 5
      %v740 = vsel %vm705, %v738, %v739
      %v741 = vrot.slane %v684, 5
      %v742 = vrot.slane %v741, 4
      %v743 = vrot.slane %v250, 5
      %v744 = vsel %vm705, %v742, %v743
      %v745 = vrot.slane %v743, 4
      %v746 = vrot.slane %v261, 5
      %v747 = vsel %vm705, %v745, %v746
      %v748 = vrot.slane %v685, 5
      %v749 = vrot.slane %v748, 4
      %v750 = vrot.slane %v252, 5
      %v751 = vsel %vm705, %v749, %v750
      %v752 = vrot.slane %v750, 4
      %v753 = vrot.slane %v262, 5
      %v754 = vsel %vm705, %v752, %v753
      %v755 = vrot.slane %v686, 5
      %v756 = vrot.slane %v755, 4
      %v757 = vrot.slane %v254, 5
      %v758 = vsel %vm705, %v756, %v757
      %v759 = vrot.slane %v757, 4
      %v760 = vrot.slane %v263, 5
      %v761 = vsel %vm705, %v759, %v760
      %s762 = scalar_lea.vmem %s1, 4
      %v763 = vld [vmem:[%s762] sm:$0x3]
      %v764 = vunpack.c.l.b16 %v709
      %v765 = vunpack.c.l.b16 %v712
      %v766 = vunpack.c.l.b16 %v716
      %v767 = vunpack.c.l.b16 %v719
      %v768 = vunpack.c.l.b16 %v723
      %v769 = vunpack.c.l.b16 %v726
      %v770 = vunpack.c.l.b16 %v730
      %v771 = vunpack.c.l.b16 %v733
      %v772 = vunpack.c.l.b16 %v737
      %v773 = vunpack.c.l.b16 %v740
      %v774 = vunpack.c.l.b16 %v744
      %v775 = vunpack.c.l.b16 %v747
      %v776 = vunpack.c.l.b16 %v751
      %v777 = vunpack.c.l.b16 %v754
      %v778 = vunpack.c.l.b16 %v758
      %v779 = vunpack.c.l.b16 %v761
      %v780 = vpack.c.b16 %v765, %v764
      %v781 = vpack.c.b16 %v767, %v766
      %v782 = vpack.c.b16 %v769, %v768
      %v783 = vpack.c.b16 %v771, %v770
      %v784 = vpack.c.b16 %v773, %v772
      %v785 = vpack.c.b16 %v775, %v774
      %v786 = vpack.c.b16 %v777, %v776
      %v787 = vpack.c.b16 %v779, %v778
      %v789 = vsel %vm485, %v780, 0
      %v792 = vsel %vm485, %v781, 0
      %v795 = vsel %vm485, %v782, 0
      %v798 = vsel %vm485, %v783, 0
      %v801 = vsel %vm485, %v784, 0
      %v804 = vsel %vm485, %v785, 0
      %v807 = vsel %vm485, %v786, 0
      %v810 = vsel %vm485, %v787, 0
      %v813 = vsel %vm510, %v763, 0
      %815 = vmatpush.bf16.msra.mxu0 0
      %816 = vmatpush.bf16.msra.mxu0 0
      %817 = vmatpush.bf16.msra.mxu0 0
      %818 = vmatpush.bf16.msra.mxu0 0
      %819 = vmatpush.bf16.msra.mxu0 0
      %820 = vmatpush.bf16.msra.mxu0 0
      %821 = vmatpush.bf16.msra.mxu0 0
      %822 = vmatpush.bf16.msra.mxu0 %v813
      %823 = vmatmul.bf16.gmra.mxu0 %v789
      %v824 = vpop.f32.mrf.mxu0
      %v825 = vadd.f32 0.0, %v824
      %v826 = vpop.f32.mrf.mxu0
      %v827 = vadd.f32 0.0, %v826
      %828 = vmatmul.bf16.gmra.mxu0 %v792
      %v829 = vpop.f32.mrf.mxu0
      %v830 = vadd.f32 0.0, %v829
      %v831 = vpop.f32.mrf.mxu0
      %v832 = vadd.f32 0.0, %v831
      %833 = vmatmul.bf16.gmra.mxu0 %v795
      %v834 = vpop.f32.mrf.mxu0
      %v835 = vadd.f32 0.0, %v834
      %v836 = vpop.f32.mrf.mxu0
      %v837 = vadd.f32 0.0, %v836
      %838 = vmatmul.bf16.gmra.mxu0 %v798
      %v839 = vpop.f32.mrf.mxu0
      %v840 = vadd.f32 0.0, %v839
      %v841 = vpop.f32.mrf.mxu0
      %v842 = vadd.f32 0.0, %v841
      %843 = vmatmul.bf16.gmra.mxu0 %v801
      %v844 = vpop.f32.mrf.mxu0
      %v845 = vadd.f32 0.0, %v844
      %v846 = vpop.f32.mrf.mxu0
      %v847 = vadd.f32 0.0, %v846
      %848 = vmatmul.bf16.gmra.mxu0 %v804
      %v849 = vpop.f32.mrf.mxu0
      %v850 = vadd.f32 0.0, %v849
      %v851 = vpop.f32.mrf.mxu0
      %v852 = vadd.f32 0.0, %v851
      %853 = vmatmul.bf16.gmra.mxu0 %v807
      %v854 = vpop.f32.mrf.mxu0
      %v855 = vadd.f32 0.0, %v854
      %v856 = vpop.f32.mrf.mxu0
      %v857 = vadd.f32 0.0, %v856
      %858 = vmatmul.bf16.gmra.mxu0 %v810
      %v859 = vpop.f32.mrf.mxu0
      %v860 = vadd.f32 0.0, %v859
      %v861 = vpop.f32.mrf.mxu0
      %v862 = vadd.f32 0.0, %v861
      %863 = vdwg.mxu0
      %v864 = vadd.f32 %v640, %v825
      %v865 = vadd.f32 %v642, %v827
      %v866 = vadd.f32 %v645, %v830
      %v867 = vadd.f32 %v647, %v832
      %v868 = vadd.f32 %v650, %v835
      %v869 = vadd.f32 %v652, %v837
      %v870 = vadd.f32 %v655, %v840
      %v871 = vadd.f32 %v657, %v842
      %v872 = vadd.f32 %v660, %v845
      %v873 = vadd.f32 %v662, %v847
      %v874 = vadd.f32 %v665, %v850
      %v875 = vadd.f32 %v667, %v852
      %v876 = vadd.f32 %v670, %v855
      %v877 = vadd.f32 %v672, %v857
      %v878 = vadd.f32 %v675, %v860
      %v879 = vadd.f32 %v677, %v862
      %s880 = sadd.s32 %s235, 1
      %s881 = smul.u32 %s880, 3
      %s882 = smul.addr %s881, 4
      %s883 = scalar_lea.vmem %s218, %s882
      %v884 = vld [vmem:[%s883] sm:$0xf]
      %v885 = vld [vmem:[%s883 + $0x4] sm:$0xf]
      %v886 = vld [vmem:[%s883 + $0xc] sm:$0xf]
      %v887 = vld [vmem:[%s883 + $0x10] sm:$0xf]
      %v888 = vld [vmem:[%s883 + $0x18] sm:$0xf]
      %v889 = vld [vmem:[%s883 + $0x1c] sm:$0xf]
      %v890 = vld [vmem:[%s883 + $0x24] sm:$0xf]
      %v891 = vld [vmem:[%s883 + $0x28] sm:$0xf]
      %v892 = vld [vmem:[%s883 + $0x30] sm:$0xf]
      %v893 = vld [vmem:[%s883 + $0x34] sm:$0xf]
      %v894 = vld [vmem:[%s883 + $0x3c] sm:$0xf]
      %v895 = vld [vmem:[%s883 + $0x40] sm:$0xf]
      %v896 = vld [vmem:[%s883 + $0x48] sm:$0xf]
      %v897 = vld [vmem:[%s883 + $0x4c] sm:$0xf]
      %v898 = vld [vmem:[%s883 + $0x54] sm:$0xf]
      %v899 = vld [vmem:[%s883 + $0x58] sm:$0xf]
      %s900 = scalar_lea.vmem %s1, 6
      %v901 = vld [vmem:[%s900] sm:$0x3]
      %v918 = vunpack.c.l.b16 %v884
      %v919 = vunpack.c.l.b16 %v885
      %v920 = vunpack.c.l.b16 %v886
      %v921 = vunpack.c.l.b16 %v887
      %v922 = vunpack.c.l.b16 %v888
      %v923 = vunpack.c.l.b16 %v889
      %v924 = vunpack.c.l.b16 %v890
      %v925 = vunpack.c.l.b16 %v891
      %v926 = vunpack.c.l.b16 %v892
      %v927 = vunpack.c.l.b16 %v893
      %v928 = vunpack.c.l.b16 %v894
      %v929 = vunpack.c.l.b16 %v895
      %v930 = vunpack.c.l.b16 %v896
      %v931 = vunpack.c.l.b16 %v897
      %v932 = vunpack.c.l.b16 %v898
      %v933 = vunpack.c.l.b16 %v899
      %v934 = vpack.c.b16 %v919, %v918
      %v935 = vpack.c.b16 %v921, %v920
      %v936 = vpack.c.b16 %v923, %v922
      %v937 = vpack.c.b16 %v925, %v924
      %v938 = vpack.c.b16 %v927, %v926
      %v939 = vpack.c.b16 %v929, %v928
      %v940 = vpack.c.b16 %v931, %v930
      %v941 = vpack.c.b16 %v933, %v932
      %v943 = vsel %vm485, %v934, 0
      %v946 = vsel %vm485, %v935, 0
      %v949 = vsel %vm485, %v936, 0
      %v952 = vsel %vm485, %v937, 0
      %v955 = vsel %vm485, %v938, 0
      %v958 = vsel %vm485, %v939, 0
      %v961 = vsel %vm485, %v940, 0
      %v964 = vsel %vm485, %v941, 0
      %v967 = vsel %vm510, %v901, 0
      %969 = vmatpush.bf16.msra.mxu0 0
      %970 = vmatpush.bf16.msra.mxu0 0
      %971 = vmatpush.bf16.msra.mxu0 0
      %972 = vmatpush.bf16.msra.mxu0 0
      %973 = vmatpush.bf16.msra.mxu0 0
      %974 = vmatpush.bf16.msra.mxu0 0
      %975 = vmatpush.bf16.msra.mxu0 0
      %976 = vmatpush.bf16.msra.mxu0 %v967
      %977 = vmatmul.bf16.gmra.mxu0 %v943
      %v978 = vpop.f32.mrf.mxu0
      %v979 = vadd.f32 0.0, %v978
      %v980 = vpop.f32.mrf.mxu0
      %v981 = vadd.f32 0.0, %v980
      %982 = vmatmul.bf16.gmra.mxu0 %v946
      %v983 = vpop.f32.mrf.mxu0
      %v984 = vadd.f32 0.0, %v983
      %v985 = vpop.f32.mrf.mxu0
      %v986 = vadd.f32 0.0, %v985
      %987 = vmatmul.bf16.gmra.mxu0 %v949
      %v988 = vpop.f32.mrf.mxu0
      %v989 = vadd.f32 0.0, %v988
      %v990 = vpop.f32.mrf.mxu0
      %v991 = vadd.f32 0.0, %v990
      %992 = vmatmul.bf16.gmra.mxu0 %v952
      %v993 = vpop.f32.mrf.mxu0
      %v994 = vadd.f32 0.0, %v993
      %v995 = vpop.f32.mrf.mxu0
      %v996 = vadd.f32 0.0, %v995
      %997 = vmatmul.bf16.gmra.mxu0 %v955
      %v998 = vpop.f32.mrf.mxu0
      %v999 = vadd.f32 0.0, %v998
      %v1000 = vpop.f32.mrf.mxu0
      %v1001 = vadd.f32 0.0, %v1000
      %1002 = vmatmul.bf16.gmra.mxu0 %v958
      %v1003 = vpop.f32.mrf.mxu0
      %v1004 = vadd.f32 0.0, %v1003
      %v1005 = vpop.f32.mrf.mxu0
      %v1006 = vadd.f32 0.0, %v1005
      %1007 = vmatmul.bf16.gmra.mxu0 %v961
      %v1008 = vpop.f32.mrf.mxu0
      %v1009 = vadd.f32 0.0, %v1008
      %v1010 = vpop.f32.mrf.mxu0
      %v1011 = vadd.f32 0.0, %v1010
      %1012 = vmatmul.bf16.gmra.mxu0 %v964
      %v1013 = vpop.f32.mrf.mxu0
      %v1014 = vadd.f32 0.0, %v1013
      %v1015 = vpop.f32.mrf.mxu0
      %v1016 = vadd.f32 0.0, %v1015
      %1017 = vdwg.mxu0
      %v1018 = vadd.f32 %v864, %v979
      %v1019 = vadd.f32 %v865, %v981
      %v1020 = vadd.f32 %v866, %v984
      %v1021 = vadd.f32 %v867, %v986
      %v1022 = vadd.f32 %v868, %v989
      %v1023 = vadd.f32 %v869, %v991
      %v1024 = vadd.f32 %v870, %v994
      %v1025 = vadd.f32 %v871, %v996
      %v1026 = vadd.f32 %v872, %v999
      %v1027 = vadd.f32 %v873, %v1001
      %v1028 = vadd.f32 %v874, %v1004
      %v1029 = vadd.f32 %v875, %v1006
      %v1030 = vadd.f32 %v876, %v1009
      %v1031 = vadd.f32 %v877, %v1011
      %v1032 = vadd.f32 %v878, %v1014
      %v1033 = vadd.f32 %v879, %v1016
      %v1034 = vld [vmem:[%s883] sm:$0xf]
      %v1035 = vld [vmem:[%s883 + $0x4] sm:$0xf]
      %v1036 = vld [vmem:[%s883 + $0x8] sm:$0x1]
      %v1037 = vld [vmem:[%s883 + $0xc] sm:$0xf]
      %v1038 = vld [vmem:[%s883 + $0x10] sm:$0xf]
      %v1039 = vld [vmem:[%s883 + $0x14] sm:$0x1]
      %v1040 = vld [vmem:[%s883 + $0x18] sm:$0xf]
      %v1041 = vld [vmem:[%s883 + $0x1c] sm:$0xf]
      %v1042 = vld [vmem:[%s883 + $0x20] sm:$0x1]
      %v1043 = vld [vmem:[%s883 + $0x24] sm:$0xf]
      %v1044 = vld [vmem:[%s883 + $0x28] sm:$0xf]
      %v1045 = vld [vmem:[%s883 + $0x2c] sm:$0x1]
      %v1046 = vld [vmem:[%s883 + $0x30] sm:$0xf]
      %v1047 = vld [vmem:[%s883 + $0x34] sm:$0xf]
      %v1048 = vld [vmem:[%s883 + $0x38] sm:$0x1]
      %v1049 = vld [vmem:[%s883 + $0x3c] sm:$0xf]
      %v1050 = vld [vmem:[%s883 + $0x40] sm:$0xf]
      %v1051 = vld [vmem:[%s883 + $0x44] sm:$0x1]
      %v1052 = vld [vmem:[%s883 + $0x48] sm:$0xf]
      %v1053 = vld [vmem:[%s883 + $0x4c] sm:$0xf]
      %v1054 = vld [vmem:[%s883 + $0x50] sm:$0x1]
      %v1055 = vld [vmem:[%s883 + $0x54] sm:$0xf]
      %v1056 = vld [vmem:[%s883 + $0x58] sm:$0xf]
      %v1057 = vld [vmem:[%s883 + $0x5c] sm:$0x1]
      %v1059 = vshrl.u32 %v1034, 16
      %v1061 = vrot.slane %v1059, 4
      %v1062 = vshll.u32 %v1034, 16
      %v1064 = vrot.slane %v1062, 5
      %v1065 = vor.u32 %v1061, %v1064
      %v1066 = vrot.slane %v1065, 4
      %v1068 = vshll.u32 %v1035, 16
      %v1070 = vrot.slane %v1068, 5
      %v1071 = vsel %vm266, %v1066, %v1070
      %v1072 = vshrl.u32 %v1035, 16
      %v1074 = vrot.slane %v1072, 4
      %v1075 = vor.u32 %v1074, %v1070
      %v1076 = vrot.slane %v1075, 4
      %v1078 = vshll.u32 %v1036, 16
      %v1080 = vrot.slane %v1078, 5
      %v1081 = vsel %vm266, %v1076, %v1080
      %v1083 = vshrl.u32 %v1037, 16
      %v1085 = vrot.slane %v1083, 4
      %v1086 = vshll.u32 %v1037, 16
      %v1088 = vrot.slane %v1086, 5
      %v1089 = vor.u32 %v1085, %v1088
      %v1090 = vrot.slane %v1089, 4
      %v1092 = vshll.u32 %v1038, 16
      %v1094 = vrot.slane %v1092, 5
      %v1095 = vsel %vm266, %v1090, %v1094
      %v1096 = vshrl.u32 %v1038, 16
      %v1098 = vrot.slane %v1096, 4
      %v1099 = vor.u32 %v1098, %v1094
      %v1100 = vrot.slane %v1099, 4
      %v1102 = vshll.u32 %v1039, 16
      %v1104 = vrot.slane %v1102, 5
      %v1105 = vsel %vm266, %v1100, %v1104
      %v1107 = vshrl.u32 %v1040, 16
      %v1109 = vrot.slane %v1107, 4
      %v1110 = vshll.u32 %v1040, 16
      %v1112 = vrot.slane %v1110, 5
      %v1113 = vor.u32 %v1109, %v1112
      %v1114 = vrot.slane %v1113, 4
      %v1116 = vshll.u32 %v1041, 16
      %v1118 = vrot.slane %v1116, 5
      %v1119 = vsel %vm266, %v1114, %v1118
      %v1120 = vshrl.u32 %v1041, 16
      %v1122 = vrot.slane %v1120, 4
      %v1123 = vor.u32 %v1122, %v1118
      %v1124 = vrot.slane %v1123, 4
      %v1126 = vshll.u32 %v1042, 16
      %v1128 = vrot.slane %v1126, 5
      %v1129 = vsel %vm266, %v1124, %v1128
      %v1131 = vshrl.u32 %v1043, 16
      %v1133 = vrot.slane %v1131, 4
      %v1134 = vshll.u32 %v1043, 16
      %v1136 = vrot.slane %v1134, 5
      %v1137 = vor.u32 %v1133, %v1136
      %v1138 = vrot.slane %v1137, 4
      %v1140 = vshll.u32 %v1044, 16
      %v1142 = vrot.slane %v1140, 5
      %v1143 = vsel %vm266, %v1138, %v1142
      %v1144 = vshrl.u32 %v1044, 16
      %v1146 = vrot.slane %v1144, 4
      %v1147 = vor.u32 %v1146, %v1142
      %v1148 = vrot.slane %v1147, 4
      %v1150 = vshll.u32 %v1045, 16
      %v1152 = vrot.slane %v1150, 5
      %v1153 = vsel %vm266, %v1148, %v1152
      %v1155 = vshrl.u32 %v1046, 16
      %v1157 = vrot.slane %v1155, 4
      %v1158 = vshll.u32 %v1046, 16
      %v1160 = vrot.slane %v1158, 5
      %v1161 = vor.u32 %v1157, %v1160
      %v1162 = vrot.slane %v1161, 4
      %v1164 = vshll.u32 %v1047, 16
      %v1166 = vrot.slane %v1164, 5
      %v1167 = vsel %vm266, %v1162, %v1166
      %v1168 = vshrl.u32 %v1047, 16
      %v1170 = vrot.slane %v1168, 4
      %v1171 = vor.u32 %v1170, %v1166
      %v1172 = vrot.slane %v1171, 4
      %v1174 = vshll.u32 %v1048, 16
      %v1176 = vrot.slane %v1174, 5
      %v1177 = vsel %vm266, %v1172, %v1176
      %v1179 = vshrl.u32 %v1049, 16
      %v1181 = vrot.slane %v1179, 4
      %v1182 = vshll.u32 %v1049, 16
      %v1184 = vrot.slane %v1182, 5
      %v1185 = vor.u32 %v1181, %v1184
      %v1186 = vrot.slane %v1185, 4
      %v1188 = vshll.u32 %v1050, 16
      %v1190 = vrot.slane %v1188, 5
      %v1191 = vsel %vm266, %v1186, %v1190
      %v1192 = vshrl.u32 %v1050, 16
      %v1194 = vrot.slane %v1192, 4
      %v1195 = vor.u32 %v1194, %v1190
      %v1196 = vrot.slane %v1195, 4
      %v1198 = vshll.u32 %v1051, 16
      %v1200 = vrot.slane %v1198, 5
      %v1201 = vsel %vm266, %v1196, %v1200
      %v1203 = vshrl.u32 %v1052, 16
      %v1205 = vrot.slane %v1203, 4
      %v1206 = vshll.u32 %v1052, 16
      %v1208 = vrot.slane %v1206, 5
      %v1209 = vor.u32 %v1205, %v1208
      %v1210 = vrot.slane %v1209, 4
      %v1212 = vshll.u32 %v1053, 16
      %v1214 = vrot.slane %v1212, 5
      %v1215 = vsel %vm266, %v1210, %v1214
      %v1216 = vshrl.u32 %v1053, 16
      %v1218 = vrot.slane %v1216, 4
      %v1219 = vor.u32 %v1218, %v1214
      %v1220 = vrot.slane %v1219, 4
      %v1222 = vshll.u32 %v1054, 16
      %v1224 = vrot.slane %v1222, 5
      %v1225 = vsel %vm266, %v1220, %v1224
      %v1227 = vshrl.u32 %v1055, 16
      %v1229 = vrot.slane %v1227, 4
      %v1230 = vshll.u32 %v1055, 16
      %v1232 = vrot.slane %v1230, 5
      %v1233 = vor.u32 %v1229, %v1232
      %v1234 = vrot.slane %v1233, 4
      %v1236 = vshll.u32 %v1056, 16
      %v1238 = vrot.slane %v1236, 5
      %v1239 = vsel %vm266, %v1234, %v1238
      %v1240 = vshrl.u32 %v1056, 16
      %v1242 = vrot.slane %v1240, 4
      %v1243 = vor.u32 %v1242, %v1238
      %v1244 = vrot.slane %v1243, 4
      %v1246 = vshll.u32 %v1057, 16
      %v1248 = vrot.slane %v1246, 5
      %v1249 = vsel %vm266, %v1244, %v1248
      %s1250 = scalar_lea.vmem %s1, 8
      %v1251 = vld [vmem:[%s1250] sm:$0x3]
      %v1252 = vunpack.c.l.b16 %v1071
      %v1253 = vunpack.c.l.b16 %v1081
      %v1254 = vunpack.c.l.b16 %v1095
      %v1255 = vunpack.c.l.b16 %v1105
      %v1256 = vunpack.c.l.b16 %v1119
      %v1257 = vunpack.c.l.b16 %v1129
      %v1258 = vunpack.c.l.b16 %v1143
      %v1259 = vunpack.c.l.b16 %v1153
      %v1260 = vunpack.c.l.b16 %v1167
      %v1261 = vunpack.c.l.b16 %v1177
      %v1262 = vunpack.c.l.b16 %v1191
      %v1263 = vunpack.c.l.b16 %v1201
      %v1264 = vunpack.c.l.b16 %v1215
      %v1265 = vunpack.c.l.b16 %v1225
      %v1266 = vunpack.c.l.b16 %v1239
      %v1267 = vunpack.c.l.b16 %v1249
      %v1268 = vpack.c.b16 %v1253, %v1252
      %v1269 = vpack.c.b16 %v1255, %v1254
      %v1270 = vpack.c.b16 %v1257, %v1256
      %v1271 = vpack.c.b16 %v1259, %v1258
      %v1272 = vpack.c.b16 %v1261, %v1260
      %v1273 = vpack.c.b16 %v1263, %v1262
      %v1274 = vpack.c.b16 %v1265, %v1264
      %v1275 = vpack.c.b16 %v1267, %v1266
      %v1277 = vsel %vm485, %v1268, 0
      %v1280 = vsel %vm485, %v1269, 0
      %v1283 = vsel %vm485, %v1270, 0
      %v1286 = vsel %vm485, %v1271, 0
      %v1289 = vsel %vm485, %v1272, 0
      %v1292 = vsel %vm485, %v1273, 0
      %v1295 = vsel %vm485, %v1274, 0
      %v1298 = vsel %vm485, %v1275, 0
      %v1301 = vsel %vm510, %v1251, 0
      %1303 = vmatpush.bf16.msra.mxu0 0
      %1304 = vmatpush.bf16.msra.mxu0 0
      %1305 = vmatpush.bf16.msra.mxu0 0
      %1306 = vmatpush.bf16.msra.mxu0 0
      %1307 = vmatpush.bf16.msra.mxu0 0
      %1308 = vmatpush.bf16.msra.mxu0 0
      %1309 = vmatpush.bf16.msra.mxu0 0
      %1310 = vmatpush.bf16.msra.mxu0 %v1301
      %1311 = vmatmul.bf16.gmra.mxu0 %v1277
      %v1312 = vpop.f32.mrf.mxu0
      %v1313 = vadd.f32 0.0, %v1312
      %v1314 = vpop.f32.mrf.mxu0
      %v1315 = vadd.f32 0.0, %v1314
      %1316 = vmatmul.bf16.gmra.mxu0 %v1280
      %v1317 = vpop.f32.mrf.mxu0
      %v1318 = vadd.f32 0.0, %v1317
      %v1319 = vpop.f32.mrf.mxu0
      %v1320 = vadd.f32 0.0, %v1319
      %1321 = vmatmul.bf16.gmra.mxu0 %v1283
      %v1322 = vpop.f32.mrf.mxu0
      %v1323 = vadd.f32 0.0, %v1322
      %v1324 = vpop.f32.mrf.mxu0
      %v1325 = vadd.f32 0.0, %v1324
      %1326 = vmatmul.bf16.gmra.mxu0 %v1286
      %v1327 = vpop.f32.mrf.mxu0
      %v1328 = vadd.f32 0.0, %v1327
      %v1329 = vpop.f32.mrf.mxu0
      %v1330 = vadd.f32 0.0, %v1329
      %1331 = vmatmul.bf16.gmra.mxu0 %v1289
      %v1332 = vpop.f32.mrf.mxu0
      %v1333 = vadd.f32 0.0, %v1332
      %v1334 = vpop.f32.mrf.mxu0
      %v1335 = vadd.f32 0.0, %v1334
      %1336 = vmatmul.bf16.gmra.mxu0 %v1292
      %v1337 = vpop.f32.mrf.mxu0
      %v1338 = vadd.f32 0.0, %v1337
      %v1339 = vpop.f32.mrf.mxu0
      %v1340 = vadd.f32 0.0, %v1339
      %1341 = vmatmul.bf16.gmra.mxu0 %v1295
      %v1342 = vpop.f32.mrf.mxu0
      %v1343 = vadd.f32 0.0, %v1342
      %v1344 = vpop.f32.mrf.mxu0
      %v1345 = vadd.f32 0.0, %v1344
      %1346 = vmatmul.bf16.gmra.mxu0 %v1298
      %v1347 = vpop.f32.mrf.mxu0
      %v1348 = vadd.f32 0.0, %v1347
      %v1349 = vpop.f32.mrf.mxu0
      %v1350 = vadd.f32 0.0, %v1349
      %1351 = vdwg.mxu0
      %v1352 = vadd.f32 %v1018, %v1313
      %v1353 = vadd.f32 %v1019, %v1315
      %v1354 = vadd.f32 %v1020, %v1318
      %v1355 = vadd.f32 %v1021, %v1320
      %v1356 = vadd.f32 %v1022, %v1323
      %v1357 = vadd.f32 %v1023, %v1325
      %v1358 = vadd.f32 %v1024, %v1328
      %v1359 = vadd.f32 %v1025, %v1330
      %v1360 = vadd.f32 %v1026, %v1333
      %v1361 = vadd.f32 %v1027, %v1335
      %v1362 = vadd.f32 %v1028, %v1338
      %v1363 = vadd.f32 %v1029, %v1340
      %v1364 = vadd.f32 %v1030, %v1343
      %v1365 = vadd.f32 %v1031, %v1345
      %v1366 = vadd.f32 %v1032, %v1348
      %v1367 = vadd.f32 %v1033, %v1350
      %v1368 = vld [vmem:[%s883] sm:$0xe]
      %v1369 = vld [vmem:[%s883 + $0xc] sm:$0xe]
      %v1370 = vld [vmem:[%s883 + $0x18] sm:$0xe]
      %v1371 = vld [vmem:[%s883 + $0x24] sm:$0xe]
      %v1372 = vld [vmem:[%s883 + $0x30] sm:$0xe]
      %v1373 = vld [vmem:[%s883 + $0x3c] sm:$0xe]
      %v1374 = vld [vmem:[%s883 + $0x48] sm:$0xe]
      %v1375 = vld [vmem:[%s883 + $0x54] sm:$0xe]
      %v1400 = vrot.slane %v1368, 5
      %v1401 = vrot.slane %v1400, 4
      %v1402 = vrot.slane %v1035, 5
      %v1403 = vsel %vm705, %v1401, %v1402
      %v1404 = vrot.slane %v1402, 4
      %v1405 = vrot.slane %v1036, 5
      %v1406 = vsel %vm705, %v1404, %v1405
      %v1407 = vrot.slane %v1369, 5
      %v1408 = vrot.slane %v1407, 4
      %v1409 = vrot.slane %v1038, 5
      %v1410 = vsel %vm705, %v1408, %v1409
      %v1411 = vrot.slane %v1409, 4
      %v1412 = vrot.slane %v1039, 5
      %v1413 = vsel %vm705, %v1411, %v1412
      %v1414 = vrot.slane %v1370, 5
      %v1415 = vrot.slane %v1414, 4
      %v1416 = vrot.slane %v1041, 5
      %v1417 = vsel %vm705, %v1415, %v1416
      %v1418 = vrot.slane %v1416, 4
      %v1419 = vrot.slane %v1042, 5
      %v1420 = vsel %vm705, %v1418, %v1419
      %v1421 = vrot.slane %v1371, 5
      %v1422 = vrot.slane %v1421, 4
      %v1423 = vrot.slane %v1044, 5
      %v1424 = vsel %vm705, %v1422, %v1423
      %v1425 = vrot.slane %v1423, 4
      %v1426 = vrot.slane %v1045, 5
      %v1427 = vsel %vm705, %v1425, %v1426
      %v1428 = vrot.slane %v1372, 5
      %v1429 = vrot.slane %v1428, 4
      %v1430 = vrot.slane %v1047, 5
      %v1431 = vsel %vm705, %v1429, %v1430
      %v1432 = vrot.slane %v1430, 4
      %v1433 = vrot.slane %v1048, 5
      %v1434 = vsel %vm705, %v1432, %v1433
      %v1435 = vrot.slane %v1373, 5
      %v1436 = vrot.slane %v1435, 4
      %v1437 = vrot.slane %v1050, 5
      %v1438 = vsel %vm705, %v1436, %v1437
      %v1439 = vrot.slane %v1437, 4
      %v1440 = vrot.slane %v1051, 5
      %v1441 = vsel %vm705, %v1439, %v1440
      %v1442 = vrot.slane %v1374, 5
      %v1443 = vrot.slane %v1442, 4
      %v1444 = vrot.slane %v1053, 5
      %v1445 = vsel %vm705, %v1443, %v1444
      %v1446 = vrot.slane %v1444, 4
      %v1447 = vrot.slane %v1054, 5
      %v1448 = vsel %vm705, %v1446, %v1447
      %v1449 = vrot.slane %v1375, 5
      %v1450 = vrot.slane %v1449, 4
      %v1451 = vrot.slane %v1056, 5
      %v1452 = vsel %vm705, %v1450, %v1451
      %v1453 = vrot.slane %v1451, 4
      %v1454 = vrot.slane %v1057, 5
      %v1455 = vsel %vm705, %v1453, %v1454
      %s1456 = scalar_lea.vmem %s1, 10
      %v1457 = vld [vmem:[%s1456] sm:$0x3]
      %v1458 = vunpack.c.l.b16 %v1403
      %v1459 = vunpack.c.l.b16 %v1406
      %v1460 = vunpack.c.l.b16 %v1410
      %v1461 = vunpack.c.l.b16 %v1413
      %v1462 = vunpack.c.l.b16 %v1417
      %v1463 = vunpack.c.l.b16 %v1420
      %v1464 = vunpack.c.l.b16 %v1424
      %v1465 = vunpack.c.l.b16 %v1427
      %v1466 = vunpack.c.l.b16 %v1431
      %v1467 = vunpack.c.l.b16 %v1434
      %v1468 = vunpack.c.l.b16 %v1438
      %v1469 = vunpack.c.l.b16 %v1441
      %v1470 = vunpack.c.l.b16 %v1445
      %v1471 = vunpack.c.l.b16 %v1448
      %v1472 = vunpack.c.l.b16 %v1452
      %v1473 = vunpack.c.l.b16 %v1455
      %v1474 = vpack.c.b16 %v1459, %v1458
      %v1475 = vpack.c.b16 %v1461, %v1460
      %v1476 = vpack.c.b16 %v1463, %v1462
      %v1477 = vpack.c.b16 %v1465, %v1464
      %v1478 = vpack.c.b16 %v1467, %v1466
      %v1479 = vpack.c.b16 %v1469, %v1468
      %v1480 = vpack.c.b16 %v1471, %v1470
      %v1481 = vpack.c.b16 %v1473, %v1472
      %v1483 = vsel %vm485, %v1474, 0
      %v1486 = vsel %vm485, %v1475, 0
      %v1489 = vsel %vm485, %v1476, 0
      %v1492 = vsel %vm485, %v1477, 0
      %v1495 = vsel %vm485, %v1478, 0
      %v1498 = vsel %vm485, %v1479, 0
      %v1501 = vsel %vm485, %v1480, 0
      %v1504 = vsel %vm485, %v1481, 0
      %v1507 = vsel %vm510, %v1457, 0
      %1509 = vmatpush.bf16.msra.mxu0 0
      %1510 = vmatpush.bf16.msra.mxu0 0
      %1511 = vmatpush.bf16.msra.mxu0 0
      %1512 = vmatpush.bf16.msra.mxu0 0
      %1513 = vmatpush.bf16.msra.mxu0 0
      %1514 = vmatpush.bf16.msra.mxu0 0
      %1515 = vmatpush.bf16.msra.mxu0 0
      %1516 = vmatpush.bf16.msra.mxu0 %v1507
      %1517 = vmatmul.bf16.gmra.mxu0 %v1483
      %v1518 = vpop.f32.mrf.mxu0
      %v1519 = vadd.f32 0.0, %v1518
      %v1520 = vpop.f32.mrf.mxu0
      %v1521 = vadd.f32 0.0, %v1520
      %1522 = vmatmul.bf16.gmra.mxu0 %v1486
      %v1523 = vpop.f32.mrf.mxu0
      %v1524 = vadd.f32 0.0, %v1523
      %v1525 = vpop.f32.mrf.mxu0
      %v1526 = vadd.f32 0.0, %v1525
      %1527 = vmatmul.bf16.gmra.mxu0 %v1489
      %v1528 = vpop.f32.mrf.mxu0
      %v1529 = vadd.f32 0.0, %v1528
      %v1530 = vpop.f32.mrf.mxu0
      %v1531 = vadd.f32 0.0, %v1530
      %1532 = vmatmul.bf16.gmra.mxu0 %v1492
      %v1533 = vpop.f32.mrf.mxu0
      %v1534 = vadd.f32 0.0, %v1533
      %v1535 = vpop.f32.mrf.mxu0
      %v1536 = vadd.f32 0.0, %v1535
      %1537 = vmatmul.bf16.gmra.mxu0 %v1495
      %v1538 = vpop.f32.mrf.mxu0
      %v1539 = vadd.f32 0.0, %v1538
      %v1540 = vpop.f32.mrf.mxu0
      %v1541 = vadd.f32 0.0, %v1540
      %1542 = vmatmul.bf16.gmra.mxu0 %v1498
      %v1543 = vpop.f32.mrf.mxu0
      %v1544 = vadd.f32 0.0, %v1543
      %v1545 = vpop.f32.mrf.mxu0
      %v1546 = vadd.f32 0.0, %v1545
      %1547 = vmatmul.bf16.gmra.mxu0 %v1501
      %v1548 = vpop.f32.mrf.mxu0
      %v1549 = vadd.f32 0.0, %v1548
      %v1550 = vpop.f32.mrf.mxu0
      %v1551 = vadd.f32 0.0, %v1550
      %1552 = vmatmul.bf16.gmra.mxu0 %v1504
      %v1553 = vpop.f32.mrf.mxu0
      %v1554 = vadd.f32 0.0, %v1553
      %v1555 = vpop.f32.mrf.mxu0
      %v1556 = vadd.f32 0.0, %v1555
      %1557 = vdwg.mxu0
      %v1558 = vadd.f32 %v1352, %v1519
      %v1559 = vadd.f32 %v1353, %v1521
      %v1560 = vadd.f32 %v1354, %v1524
      %v1561 = vadd.f32 %v1355, %v1526
      %v1562 = vadd.f32 %v1356, %v1529
      %v1563 = vadd.f32 %v1357, %v1531
      %v1564 = vadd.f32 %v1358, %v1534
      %v1565 = vadd.f32 %v1359, %v1536
      %v1566 = vadd.f32 %v1360, %v1539
      %v1567 = vadd.f32 %v1361, %v1541
      %v1568 = vadd.f32 %v1362, %v1544
      %v1569 = vadd.f32 %v1363, %v1546
      %v1570 = vadd.f32 %v1364, %v1549
      %v1571 = vadd.f32 %v1365, %v1551
      %v1572 = vadd.f32 %v1366, %v1554
      %v1573 = vadd.f32 %v1367, %v1556
      %s1574 = sadd.s32 %s235, 2
      %s1575 = smul.u32 %s1574, 3
      %s1576 = smul.addr %s1575, 4
      %s1577 = scalar_lea.vmem %s218, %s1576
      %v1578 = vld [vmem:[%s1577] sm:$0xf]
      %v1579 = vld [vmem:[%s1577 + $0x4] sm:$0xf]
      %v1580 = vld [vmem:[%s1577 + $0xc] sm:$0xf]
      %v1581 = vld [vmem:[%s1577 + $0x10] sm:$0xf]
      %v1582 = vld [vmem:[%s1577 + $0x18] sm:$0xf]
      %v1583 = vld [vmem:[%s1577 + $0x1c] sm:$0xf]
      %v1584 = vld [vmem:[%s1577 + $0x24] sm:$0xf]
      %v1585 = vld [vmem:[%s1577 + $0x28] sm:$0xf]
      %v1586 = vld [vmem:[%s1577 + $0x30] sm:$0xf]
      %v1587 = vld [vmem:[%s1577 + $0x34] sm:$0xf]
      %v1588 = vld [vmem:[%s1577 + $0x3c] sm:$0xf]
      %v1589 = vld [vmem:[%s1577 + $0x40] sm:$0xf]
      %v1590 = vld [vmem:[%s1577 + $0x48] sm:$0xf]
      %v1591 = vld [vmem:[%s1577 + $0x4c] sm:$0xf]
      %v1592 = vld [vmem:[%s1577 + $0x54] sm:$0xf]
      %v1593 = vld [vmem:[%s1577 + $0x58] sm:$0xf]
      %s1594 = scalar_lea.vmem %s1, 12
      %v1595 = vld [vmem:[%s1594] sm:$0x3]
      %v1612 = vunpack.c.l.b16 %v1578
      %v1613 = vunpack.c.l.b16 %v1579
      %v1614 = vunpack.c.l.b16 %v1580
      %v1615 = vunpack.c.l.b16 %v1581
      %v1616 = vunpack.c.l.b16 %v1582
      %v1617 = vunpack.c.l.b16 %v1583
      %v1618 = vunpack.c.l.b16 %v1584
      %v1619 = vunpack.c.l.b16 %v1585
      %v1620 = vunpack.c.l.b16 %v1586
      %v1621 = vunpack.c.l.b16 %v1587
      %v1622 = vunpack.c.l.b16 %v1588
      %v1623 = vunpack.c.l.b16 %v1589
      %v1624 = vunpack.c.l.b16 %v1590
      %v1625 = vunpack.c.l.b16 %v1591
      %v1626 = vunpack.c.l.b16 %v1592
      %v1627 = vunpack.c.l.b16 %v1593
      %v1628 = vpack.c.b16 %v1613, %v1612
      %v1629 = vpack.c.b16 %v1615, %v1614
      %v1630 = vpack.c.b16 %v1617, %v1616
      %v1631 = vpack.c.b16 %v1619, %v1618
      %v1632 = vpack.c.b16 %v1621, %v1620
      %v1633 = vpack.c.b16 %v1623, %v1622
      %v1634 = vpack.c.b16 %v1625, %v1624
      %v1635 = vpack.c.b16 %v1627, %v1626
      %v1637 = vsel %vm485, %v1628, 0
      %v1640 = vsel %vm485, %v1629, 0
      %v1643 = vsel %vm485, %v1630, 0
      %v1646 = vsel %vm485, %v1631, 0
      %v1649 = vsel %vm485, %v1632, 0
      %v1652 = vsel %vm485, %v1633, 0
      %v1655 = vsel %vm485, %v1634, 0
      %v1658 = vsel %vm485, %v1635, 0
      %v1661 = vsel %vm510, %v1595, 0
      %1663 = vmatpush.bf16.msra.mxu0 0
      %1664 = vmatpush.bf16.msra.mxu0 0
      %1665 = vmatpush.bf16.msra.mxu0 0
      %1666 = vmatpush.bf16.msra.mxu0 0
      %1667 = vmatpush.bf16.msra.mxu0 0
      %1668 = vmatpush.bf16.msra.mxu0 0
      %1669 = vmatpush.bf16.msra.mxu0 0
      %1670 = vmatpush.bf16.msra.mxu0 %v1661
      %1671 = vmatmul.bf16.gmra.mxu0 %v1637
      %v1672 = vpop.f32.mrf.mxu0
      %v1673 = vadd.f32 0.0, %v1672
      %v1674 = vpop.f32.mrf.mxu0
      %v1675 = vadd.f32 0.0, %v1674
      %1676 = vmatmul.bf16.gmra.mxu0 %v1640
      %v1677 = vpop.f32.mrf.mxu0
      %v1678 = vadd.f32 0.0, %v1677
      %v1679 = vpop.f32.mrf.mxu0
      %v1680 = vadd.f32 0.0, %v1679
      %1681 = vmatmul.bf16.gmra.mxu0 %v1643
      %v1682 = vpop.f32.mrf.mxu0
      %v1683 = vadd.f32 0.0, %v1682
      %v1684 = vpop.f32.mrf.mxu0
      %v1685 = vadd.f32 0.0, %v1684
      %1686 = vmatmul.bf16.gmra.mxu0 %v1646
      %v1687 = vpop.f32.mrf.mxu0
      %v1688 = vadd.f32 0.0, %v1687
      %v1689 = vpop.f32.mrf.mxu0
      %v1690 = vadd.f32 0.0, %v1689
      %1691 = vmatmul.bf16.gmra.mxu0 %v1649
      %v1692 = vpop.f32.mrf.mxu0
      %v1693 = vadd.f32 0.0, %v1692
      %v1694 = vpop.f32.mrf.mxu0
      %v1695 = vadd.f32 0.0, %v1694
      %1696 = vmatmul.bf16.gmra.mxu0 %v1652
      %v1697 = vpop.f32.mrf.mxu0
      %v1698 = vadd.f32 0.0, %v1697
      %v1699 = vpop.f32.mrf.mxu0
      %v1700 = vadd.f32 0.0, %v1699
      %1701 = vmatmul.bf16.gmra.mxu0 %v1655
      %v1702 = vpop.f32.mrf.mxu0
      %v1703 = vadd.f32 0.0, %v1702
      %v1704 = vpop.f32.mrf.mxu0
      %v1705 = vadd.f32 0.0, %v1704
      %1706 = vmatmul.bf16.gmra.mxu0 %v1658
      %v1707 = vpop.f32.mrf.mxu0
      %v1708 = vadd.f32 0.0, %v1707
      %v1709 = vpop.f32.mrf.mxu0
      %v1710 = vadd.f32 0.0, %v1709
      %1711 = vdwg.mxu0
      %v1712 = vadd.f32 %v1558, %v1673
      %v1713 = vadd.f32 %v1559, %v1675
      %v1714 = vadd.f32 %v1560, %v1678
      %v1715 = vadd.f32 %v1561, %v1680
      %v1716 = vadd.f32 %v1562, %v1683
      %v1717 = vadd.f32 %v1563, %v1685
      %v1718 = vadd.f32 %v1564, %v1688
      %v1719 = vadd.f32 %v1565, %v1690
      %v1720 = vadd.f32 %v1566, %v1693
      %v1721 = vadd.f32 %v1567, %v1695
      %v1722 = vadd.f32 %v1568, %v1698
      %v1723 = vadd.f32 %v1569, %v1700
      %v1724 = vadd.f32 %v1570, %v1703
      %v1725 = vadd.f32 %v1571, %v1705
      %v1726 = vadd.f32 %v1572, %v1708
      %v1727 = vadd.f32 %v1573, %v1710
      %v1728 = vld [vmem:[%s1577] sm:$0xf]
      %v1729 = vld [vmem:[%s1577 + $0x4] sm:$0xf]
      %v1730 = vld [vmem:[%s1577 + $0x8] sm:$0x1]
      %v1731 = vld [vmem:[%s1577 + $0xc] sm:$0xf]
      %v1732 = vld [vmem:[%s1577 + $0x10] sm:$0xf]
      %v1733 = vld [vmem:[%s1577 + $0x14] sm:$0x1]
      %v1734 = vld [vmem:[%s1577 + $0x18] sm:$0xf]
      %v1735 = vld [vmem:[%s1577 + $0x1c] sm:$0xf]
      %v1736 = vld [vmem:[%s1577 + $0x20] sm:$0x1]
      %v1737 = vld [vmem:[%s1577 + $0x24] sm:$0xf]
      %v1738 = vld [vmem:[%s1577 + $0x28] sm:$0xf]
      %v1739 = vld [vmem:[%s1577 + $0x2c] sm:$0x1]
      %v1740 = vld [vmem:[%s1577 + $0x30] sm:$0xf]
      %v1741 = vld [vmem:[%s1577 + $0x34] sm:$0xf]
      %v1742 = vld [vmem:[%s1577 + $0x38] sm:$0x1]
      %v1743 = vld [vmem:[%s1577 + $0x3c] sm:$0xf]
      %v1744 = vld [vmem:[%s1577 + $0x40] sm:$0xf]
      %v1745 = vld [vmem:[%s1577 + $0x44] sm:$0x1]
      %v1746 = vld [vmem:[%s1577 + $0x48] sm:$0xf]
      %v1747 = vld [vmem:[%s1577 + $0x4c] sm:$0xf]
      %v1748 = vld [vmem:[%s1577 + $0x50] sm:$0x1]
      %v1749 = vld [vmem:[%s1577 + $0x54] sm:$0xf]
      %v1750 = vld [vmem:[%s1577 + $0x58] sm:$0xf]
      %v1751 = vld [vmem:[%s1577 + $0x5c] sm:$0x1]
      %v1753 = vshrl.u32 %v1728, 16
      %v1755 = vrot.slane %v1753, 4
      %v1756 = vshll.u32 %v1728, 16
      %v1758 = vrot.slane %v1756, 5
      %v1759 = vor.u32 %v1755, %v1758
      %v1760 = vrot.slane %v1759, 4
      %v1762 = vshll.u32 %v1729, 16
      %v1764 = vrot.slane %v1762, 5
      %v1765 = vsel %vm266, %v1760, %v1764
      %v1766 = vshrl.u32 %v1729, 16
      %v1768 = vrot.slane %v1766, 4
      %v1769 = vor.u32 %v1768, %v1764
      %v1770 = vrot.slane %v1769, 4
      %v1772 = vshll.u32 %v1730, 16
      %v1774 = vrot.slane %v1772, 5
      %v1775 = vsel %vm266, %v1770, %v1774
      %v1777 = vshrl.u32 %v1731, 16
      %v1779 = vrot.slane %v1777, 4
      %v1780 = vshll.u32 %v1731, 16
      %v1782 = vrot.slane %v1780, 5
      %v1783 = vor.u32 %v1779, %v1782
      %v1784 = vrot.slane %v1783, 4
      %v1786 = vshll.u32 %v1732, 16
      %v1788 = vrot.slane %v1786, 5
      %v1789 = vsel %vm266, %v1784, %v1788
      %v1790 = vshrl.u32 %v1732, 16
      %v1792 = vrot.slane %v1790, 4
      %v1793 = vor.u32 %v1792, %v1788
      %v1794 = vrot.slane %v1793, 4
      %v1796 = vshll.u32 %v1733, 16
      %v1798 = vrot.slane %v1796, 5
      %v1799 = vsel %vm266, %v1794, %v1798
      %v1801 = vshrl.u32 %v1734, 16
      %v1803 = vrot.slane %v1801, 4
      %v1804 = vshll.u32 %v1734, 16
      %v1806 = vrot.slane %v1804, 5
      %v1807 = vor.u32 %v1803, %v1806
      %v1808 = vrot.slane %v1807, 4
      %v1810 = vshll.u32 %v1735, 16
      %v1812 = vrot.slane %v1810, 5
      %v1813 = vsel %vm266, %v1808, %v1812
      %v1814 = vshrl.u32 %v1735, 16
      %v1816 = vrot.slane %v1814, 4
      %v1817 = vor.u32 %v1816, %v1812
      %v1818 = vrot.slane %v1817, 4
      %v1820 = vshll.u32 %v1736, 16
      %v1822 = vrot.slane %v1820, 5
      %v1823 = vsel %vm266, %v1818, %v1822
      %v1825 = vshrl.u32 %v1737, 16
      %v1827 = vrot.slane %v1825, 4
      %v1828 = vshll.u32 %v1737, 16
      %v1830 = vrot.slane %v1828, 5
      %v1831 = vor.u32 %v1827, %v1830
      %v1832 = vrot.slane %v1831, 4
      %v1834 = vshll.u32 %v1738, 16
      %v1836 = vrot.slane %v1834, 5
      %v1837 = vsel %vm266, %v1832, %v1836
      %v1838 = vshrl.u32 %v1738, 16
      %v1840 = vrot.slane %v1838, 4
      %v1841 = vor.u32 %v1840, %v1836
      %v1842 = vrot.slane %v1841, 4
      %v1844 = vshll.u32 %v1739, 16
      %v1846 = vrot.slane %v1844, 5
      %v1847 = vsel %vm266, %v1842, %v1846
      %v1849 = vshrl.u32 %v1740, 16
      %v1851 = vrot.slane %v1849, 4
      %v1852 = vshll.u32 %v1740, 16
      %v1854 = vrot.slane %v1852, 5
      %v1855 = vor.u32 %v1851, %v1854
      %v1856 = vrot.slane %v1855, 4
      %v1858 = vshll.u32 %v1741, 16
      %v1860 = vrot.slane %v1858, 5
      %v1861 = vsel %vm266, %v1856, %v1860
      %v1862 = vshrl.u32 %v1741, 16
      %v1864 = vrot.slane %v1862, 4
      %v1865 = vor.u32 %v1864, %v1860
      %v1866 = vrot.slane %v1865, 4
      %v1868 = vshll.u32 %v1742, 16
      %v1870 = vrot.slane %v1868, 5
      %v1871 = vsel %vm266, %v1866, %v1870
      %v1873 = vshrl.u32 %v1743, 16
      %v1875 = vrot.slane %v1873, 4
      %v1876 = vshll.u32 %v1743, 16
      %v1878 = vrot.slane %v1876, 5
      %v1879 = vor.u32 %v1875, %v1878
      %v1880 = vrot.slane %v1879, 4
      %v1882 = vshll.u32 %v1744, 16
      %v1884 = vrot.slane %v1882, 5
      %v1885 = vsel %vm266, %v1880, %v1884
      %v1886 = vshrl.u32 %v1744, 16
      %v1888 = vrot.slane %v1886, 4
      %v1889 = vor.u32 %v1888, %v1884
      %v1890 = vrot.slane %v1889, 4
      %v1892 = vshll.u32 %v1745, 16
      %v1894 = vrot.slane %v1892, 5
      %v1895 = vsel %vm266, %v1890, %v1894
      %v1897 = vshrl.u32 %v1746, 16
      %v1899 = vrot.slane %v1897, 4
      %v1900 = vshll.u32 %v1746, 16
      %v1902 = vrot.slane %v1900, 5
      %v1903 = vor.u32 %v1899, %v1902
      %v1904 = vrot.slane %v1903, 4
      %v1906 = vshll.u32 %v1747, 16
      %v1908 = vrot.slane %v1906, 5
      %v1909 = vsel %vm266, %v1904, %v1908
      %v1910 = vshrl.u32 %v1747, 16
      %v1912 = vrot.slane %v1910, 4
      %v1913 = vor.u32 %v1912, %v1908
      %v1914 = vrot.slane %v1913, 4
      %v1916 = vshll.u32 %v1748, 16
      %v1918 = vrot.slane %v1916, 5
      %v1919 = vsel %vm266, %v1914, %v1918
      %v1921 = vshrl.u32 %v1749, 16
      %v1923 = vrot.slane %v1921, 4
      %v1924 = vshll.u32 %v1749, 16
      %v1926 = vrot.slane %v1924, 5
      %v1927 = vor.u32 %v1923, %v1926
      %v1928 = vrot.slane %v1927, 4
      %v1930 = vshll.u32 %v1750, 16
      %v1932 = vrot.slane %v1930, 5
      %v1933 = vsel %vm266, %v1928, %v1932
      %v1934 = vshrl.u32 %v1750, 16
      %v1936 = vrot.slane %v1934, 4
      %v1937 = vor.u32 %v1936, %v1932
      %v1938 = vrot.slane %v1937, 4
      %v1940 = vshll.u32 %v1751, 16
      %v1942 = vrot.slane %v1940, 5
      %v1943 = vsel %vm266, %v1938, %v1942
      %s1944 = scalar_lea.vmem %s1, 14
      %v1945 = vld [vmem:[%s1944] sm:$0x3]
      %v1946 = vunpack.c.l.b16 %v1765
      %v1947 = vunpack.c.l.b16 %v1775
      %v1948 = vunpack.c.l.b16 %v1789
      %v1949 = vunpack.c.l.b16 %v1799
      %v1950 = vunpack.c.l.b16 %v1813
      %v1951 = vunpack.c.l.b16 %v1823
      %v1952 = vunpack.c.l.b16 %v1837
      %v1953 = vunpack.c.l.b16 %v1847
      %v1954 = vunpack.c.l.b16 %v1861
      %v1955 = vunpack.c.l.b16 %v1871
      %v1956 = vunpack.c.l.b16 %v1885
      %v1957 = vunpack.c.l.b16 %v1895
      %v1958 = vunpack.c.l.b16 %v1909
      %v1959 = vunpack.c.l.b16 %v1919
      %v1960 = vunpack.c.l.b16 %v1933
      %v1961 = vunpack.c.l.b16 %v1943
      %v1962 = vpack.c.b16 %v1947, %v1946
      %v1963 = vpack.c.b16 %v1949, %v1948
      %v1964 = vpack.c.b16 %v1951, %v1950
      %v1965 = vpack.c.b16 %v1953, %v1952
      %v1966 = vpack.c.b16 %v1955, %v1954
      %v1967 = vpack.c.b16 %v1957, %v1956
      %v1968 = vpack.c.b16 %v1959, %v1958
      %v1969 = vpack.c.b16 %v1961, %v1960
      %v1971 = vsel %vm485, %v1962, 0
      %v1974 = vsel %vm485, %v1963, 0
      %v1977 = vsel %vm485, %v1964, 0
      %v1980 = vsel %vm485, %v1965, 0
      %v1983 = vsel %vm485, %v1966, 0
      %v1986 = vsel %vm485, %v1967, 0
      %v1989 = vsel %vm485, %v1968, 0
      %v1992 = vsel %vm485, %v1969, 0
      %v1995 = vsel %vm510, %v1945, 0
      %1997 = vmatpush.bf16.msra.mxu0 0
      %1998 = vmatpush.bf16.msra.mxu0 0
      %1999 = vmatpush.bf16.msra.mxu0 0
      %2000 = vmatpush.bf16.msra.mxu0 0
      %2001 = vmatpush.bf16.msra.mxu0 0
      %2002 = vmatpush.bf16.msra.mxu0 0
      %2003 = vmatpush.bf16.msra.mxu0 0
      %2004 = vmatpush.bf16.msra.mxu0 %v1995
      %2005 = vmatmul.bf16.gmra.mxu0 %v1971
      %v2006 = vpop.f32.mrf.mxu0
      %v2007 = vadd.f32 0.0, %v2006
      %v2008 = vpop.f32.mrf.mxu0
      %v2009 = vadd.f32 0.0, %v2008
      %2010 = vmatmul.bf16.gmra.mxu0 %v1974
      %v2011 = vpop.f32.mrf.mxu0
      %v2012 = vadd.f32 0.0, %v2011
      %v2013 = vpop.f32.mrf.mxu0
      %v2014 = vadd.f32 0.0, %v2013
      %2015 = vmatmul.bf16.gmra.mxu0 %v1977
      %v2016 = vpop.f32.mrf.mxu0
      %v2017 = vadd.f32 0.0, %v2016
      %v2018 = vpop.f32.mrf.mxu0
      %v2019 = vadd.f32 0.0, %v2018
      %2020 = vmatmul.bf16.gmra.mxu0 %v1980
      %v2021 = vpop.f32.mrf.mxu0
      %v2022 = vadd.f32 0.0, %v2021
      %v2023 = vpop.f32.mrf.mxu0
      %v2024 = vadd.f32 0.0, %v2023
      %2025 = vmatmul.bf16.gmra.mxu0 %v1983
      %v2026 = vpop.f32.mrf.mxu0
      %v2027 = vadd.f32 0.0, %v2026
      %v2028 = vpop.f32.mrf.mxu0
      %v2029 = vadd.f32 0.0, %v2028
      %2030 = vmatmul.bf16.gmra.mxu0 %v1986
      %v2031 = vpop.f32.mrf.mxu0
      %v2032 = vadd.f32 0.0, %v2031
      %v2033 = vpop.f32.mrf.mxu0
      %v2034 = vadd.f32 0.0, %v2033
      %2035 = vmatmul.bf16.gmra.mxu0 %v1989
      %v2036 = vpop.f32.mrf.mxu0
      %v2037 = vadd.f32 0.0, %v2036
      %v2038 = vpop.f32.mrf.mxu0
      %v2039 = vadd.f32 0.0, %v2038
      %2040 = vmatmul.bf16.gmra.mxu0 %v1992
      %v2041 = vpop.f32.mrf.mxu0
      %v2042 = vadd.f32 0.0, %v2041
      %v2043 = vpop.f32.mrf.mxu0
      %v2044 = vadd.f32 0.0, %v2043
      %2045 = vdwg.mxu0
      %v2046 = vadd.f32 %v1712, %v2007
      %v2047 = vadd.f32 %v1713, %v2009
      %v2048 = vadd.f32 %v1714, %v2012
      %v2049 = vadd.f32 %v1715, %v2014
      %v2050 = vadd.f32 %v1716, %v2017
      %v2051 = vadd.f32 %v1717, %v2019
      %v2052 = vadd.f32 %v1718, %v2022
      %v2053 = vadd.f32 %v1719, %v2024
      %v2054 = vadd.f32 %v1720, %v2027
      %v2055 = vadd.f32 %v1721, %v2029
      %v2056 = vadd.f32 %v1722, %v2032
      %v2057 = vadd.f32 %v1723, %v2034
      %v2058 = vadd.f32 %v1724, %v2037
      %v2059 = vadd.f32 %v1725, %v2039
      %v2060 = vadd.f32 %v1726, %v2042
      %v2061 = vadd.f32 %v1727, %v2044
      %v2062 = vld [vmem:[%s1577] sm:$0xe]
      %v2063 = vld [vmem:[%s1577 + $0xc] sm:$0xe]
      %v2064 = vld [vmem:[%s1577 + $0x18] sm:$0xe]
      %v2065 = vld [vmem:[%s1577 + $0x24] sm:$0xe]
      %v2066 = vld [vmem:[%s1577 + $0x30] sm:$0xe]
      %v2067 = vld [vmem:[%s1577 + $0x3c] sm:$0xe]
      %v2068 = vld [vmem:[%s1577 + $0x48] sm:$0xe]
      %v2069 = vld [vmem:[%s1577 + $0x54] sm:$0xe]
      %v2094 = vrot.slane %v2062, 5
      %v2095 = vrot.slane %v2094, 4
      %v2096 = vrot.slane %v1729, 5
      %v2097 = vsel %vm705, %v2095, %v2096
      %v2098 = vrot.slane %v2096, 4
      %v2099 = vrot.slane %v1730, 5
      %v2100 = vsel %vm705, %v2098, %v2099
      %v2101 = vrot.slane %v2063, 5
      %v2102 = vrot.slane %v2101, 4
      %v2103 = vrot.slane %v1732, 5
      %v2104 = vsel %vm705, %v2102, %v2103
      %v2105 = vrot.slane %v2103, 4
      %v2106 = vrot.slane %v1733, 5
      %v2107 = vsel %vm705, %v2105, %v2106
      %v2108 = vrot.slane %v2064, 5
      %v2109 = vrot.slane %v2108, 4
      %v2110 = vrot.slane %v1735, 5
      %v2111 = vsel %vm705, %v2109, %v2110
      %v2112 = vrot.slane %v2110, 4
      %v2113 = vrot.slane %v1736, 5
      %v2114 = vsel %vm705, %v2112, %v2113
      %v2115 = vrot.slane %v2065, 5
      %v2116 = vrot.slane %v2115, 4
      %v2117 = vrot.slane %v1738, 5
      %v2118 = vsel %vm705, %v2116, %v2117
      %v2119 = vrot.slane %v2117, 4
      %v2120 = vrot.slane %v1739, 5
      %v2121 = vsel %vm705, %v2119, %v2120
      %v2122 = vrot.slane %v2066, 5
      %v2123 = vrot.slane %v2122, 4
      %v2124 = vrot.slane %v1741, 5
      %v2125 = vsel %vm705, %v2123, %v2124
      %v2126 = vrot.slane %v2124, 4
      %v2127 = vrot.slane %v1742, 5
      %v2128 = vsel %vm705, %v2126, %v2127
      %v2129 = vrot.slane %v2067, 5
      %v2130 = vrot.slane %v2129, 4
      %v2131 = vrot.slane %v1744, 5
      %v2132 = vsel %vm705, %v2130, %v2131
      %v2133 = vrot.slane %v2131, 4
      %v2134 = vrot.slane %v1745, 5
      %v2135 = vsel %vm705, %v2133, %v2134
      %v2136 = vrot.slane %v2068, 5
      %v2137 = vrot.slane %v2136, 4
      %v2138 = vrot.slane %v1747, 5
      %v2139 = vsel %vm705, %v2137, %v2138
      %v2140 = vrot.slane %v2138, 4
      %v2141 = vrot.slane %v1748, 5
      %v2142 = vsel %vm705, %v2140, %v2141
      %v2143 = vrot.slane %v2069, 5
      %v2144 = vrot.slane %v2143, 4
      %v2145 = vrot.slane %v1750, 5
      %v2146 = vsel %vm705, %v2144, %v2145
      %v2147 = vrot.slane %v2145, 4
      %v2148 = vrot.slane %v1751, 5
      %v2149 = vsel %vm705, %v2147, %v2148
      %s2150 = scalar_lea.vmem %s1, 16
      %v2151 = vld [vmem:[%s2150] sm:$0x3]
      %v2152 = vunpack.c.l.b16 %v2097
      %v2153 = vunpack.c.l.b16 %v2100
      %v2154 = vunpack.c.l.b16 %v2104
      %v2155 = vunpack.c.l.b16 %v2107
      %v2156 = vunpack.c.l.b16 %v2111
      %v2157 = vunpack.c.l.b16 %v2114
      %v2158 = vunpack.c.l.b16 %v2118
      %v2159 = vunpack.c.l.b16 %v2121
      %v2160 = vunpack.c.l.b16 %v2125
      %v2161 = vunpack.c.l.b16 %v2128
      %v2162 = vunpack.c.l.b16 %v2132
      %v2163 = vunpack.c.l.b16 %v2135
      %v2164 = vunpack.c.l.b16 %v2139
      %v2165 = vunpack.c.l.b16 %v2142
      %v2166 = vunpack.c.l.b16 %v2146
      %v2167 = vunpack.c.l.b16 %v2149
      %v2168 = vpack.c.b16 %v2153, %v2152
      %v2169 = vpack.c.b16 %v2155, %v2154
      %v2170 = vpack.c.b16 %v2157, %v2156
      %v2171 = vpack.c.b16 %v2159, %v2158
      %v2172 = vpack.c.b16 %v2161, %v2160
      %v2173 = vpack.c.b16 %v2163, %v2162
      %v2174 = vpack.c.b16 %v2165, %v2164
      %v2175 = vpack.c.b16 %v2167, %v2166
      %v2177 = vsel %vm485, %v2168, 0
      %v2180 = vsel %vm485, %v2169, 0
      %v2183 = vsel %vm485, %v2170, 0
      %v2186 = vsel %vm485, %v2171, 0
      %v2189 = vsel %vm485, %v2172, 0
      %v2192 = vsel %vm485, %v2173, 0
      %v2195 = vsel %vm485, %v2174, 0
      %v2198 = vsel %vm485, %v2175, 0
      %v2201 = vsel %vm510, %v2151, 0
      %2203 = vmatpush.bf16.msra.mxu0 0
      %2204 = vmatpush.bf16.msra.mxu0 0
      %2205 = vmatpush.bf16.msra.mxu0 0
      %2206 = vmatpush.bf16.msra.mxu0 0
      %2207 = vmatpush.bf16.msra.mxu0 0
      %2208 = vmatpush.bf16.msra.mxu0 0
      %2209 = vmatpush.bf16.msra.mxu0 0
      %2210 = vmatpush.bf16.msra.mxu0 %v2201
      %2211 = vmatmul.bf16.gmra.mxu0 %v2177
      %v2212 = vpop.f32.mrf.mxu0
      %v2213 = vadd.f32 0.0, %v2212
      %v2214 = vpop.f32.mrf.mxu0
      %v2215 = vadd.f32 0.0, %v2214
      %2216 = vmatmul.bf16.gmra.mxu0 %v2180
      %v2217 = vpop.f32.mrf.mxu0
      %v2218 = vadd.f32 0.0, %v2217
      %v2219 = vpop.f32.mrf.mxu0
      %v2220 = vadd.f32 0.0, %v2219
      %2221 = vmatmul.bf16.gmra.mxu0 %v2183
      %v2222 = vpop.f32.mrf.mxu0
      %v2223 = vadd.f32 0.0, %v2222
      %v2224 = vpop.f32.mrf.mxu0
      %v2225 = vadd.f32 0.0, %v2224
      %2226 = vmatmul.bf16.gmra.mxu0 %v2186
      %v2227 = vpop.f32.mrf.mxu0
      %v2228 = vadd.f32 0.0, %v2227
      %v2229 = vpop.f32.mrf.mxu0
      %v2230 = vadd.f32 0.0, %v2229
      %2231 = vmatmul.bf16.gmra.mxu0 %v2189
      %v2232 = vpop.f32.mrf.mxu0
      %v2233 = vadd.f32 0.0, %v2232
      %v2234 = vpop.f32.mrf.mxu0
      %v2235 = vadd.f32 0.0, %v2234
      %2236 = vmatmul.bf16.gmra.mxu0 %v2192
      %v2237 = vpop.f32.mrf.mxu0
      %v2238 = vadd.f32 0.0, %v2237
      %v2239 = vpop.f32.mrf.mxu0
      %v2240 = vadd.f32 0.0, %v2239
      %2241 = vmatmul.bf16.gmra.mxu0 %v2195
      %v2242 = vpop.f32.mrf.mxu0
      %v2243 = vadd.f32 0.0, %v2242
      %v2244 = vpop.f32.mrf.mxu0
      %v2245 = vadd.f32 0.0, %v2244
      %2246 = vmatmul.bf16.gmra.mxu0 %v2198
      %v2247 = vpop.f32.mrf.mxu0
      %v2248 = vadd.f32 0.0, %v2247
      %v2249 = vpop.f32.mrf.mxu0
      %v2250 = vadd.f32 0.0, %v2249
      %2251 = vdwg.mxu0
      %v2252 = vadd.f32 %v2046, %v2213
      %v2253 = vadd.f32 %v2047, %v2215
      %v2254 = vadd.f32 %v2048, %v2218
      %v2255 = vadd.f32 %v2049, %v2220
      %v2256 = vadd.f32 %v2050, %v2223
      %v2257 = vadd.f32 %v2051, %v2225
      %v2258 = vadd.f32 %v2052, %v2228
      %v2259 = vadd.f32 %v2053, %v2230
      %v2260 = vadd.f32 %v2054, %v2233
      %v2261 = vadd.f32 %v2055, %v2235
      %v2262 = vadd.f32 %v2056, %v2238
      %v2263 = vadd.f32 %v2057, %v2240
      %v2264 = vadd.f32 %v2058, %v2243
      %v2265 = vadd.f32 %v2059, %v2245
      %v2266 = vadd.f32 %v2060, %v2248
      %v2267 = vadd.f32 %v2061, %v2250
      %v2268 = vld [vmem:[%s2] sm:$0x1]
      %v2270 = vperm.slane %v2268, 0
      %v2272 = vadd.f32 %v2252, %v2270
      %v2273 = vadd.f32 %v2253, %v2270
      %v2274 = vadd.f32 %v2254, %v2270
      %v2275 = vadd.f32 %v2255, %v2270
      %v2276 = vadd.f32 %v2256, %v2270
      %v2277 = vadd.f32 %v2257, %v2270
      %v2278 = vadd.f32 %v2258, %v2270
      %v2279 = vadd.f32 %v2259, %v2270
      %v2280 = vadd.f32 %v2260, %v2270
      %v2281 = vadd.f32 %v2261, %v2270
      %v2282 = vadd.f32 %v2262, %v2270
      %v2283 = vadd.f32 %v2263, %v2270
      %v2284 = vadd.f32 %v2264, %v2270
      %v2285 = vadd.f32 %v2265, %v2270
      %v2286 = vadd.f32 %v2266, %v2270
      %v2287 = vadd.f32 %v2267, %v2270
      %vm2288 = vcmask 261120
      %2289 = vst.msk [vmem:[%s228] sm:$0xff] %vm2288, %v2272
      %2290 = vst.msk [vmem:[%s228 + $0x8] sm:$0xff] %vm2288, %v2273
      %2291 = vst.msk [vmem:[%s228 + $0x10] sm:$0xff] %vm2288, %v2274
      %2292 = vst.msk [vmem:[%s228 + $0x18] sm:$0xff] %vm2288, %v2275
      %2293 = vst.msk [vmem:[%s228 + $0x20] sm:$0xff] %vm2288, %v2276
      %2294 = vst.msk [vmem:[%s228 + $0x28] sm:$0xff] %vm2288, %v2277
      %2295 = vst.msk [vmem:[%s228 + $0x30] sm:$0xff] %vm2288, %v2278
      %2296 = vst.msk [vmem:[%s228 + $0x38] sm:$0xff] %vm2288, %v2279
      %2297 = vst.msk [vmem:[%s228 + $0x40] sm:$0xff] %vm2288, %v2280
      %2298 = vst.msk [vmem:[%s228 + $0x48] sm:$0xff] %vm2288, %v2281
      %2299 = vst.msk [vmem:[%s228 + $0x50] sm:$0xff] %vm2288, %v2282
      %2300 = vst.msk [vmem:[%s228 + $0x58] sm:$0xff] %vm2288, %v2283
      %2301 = vst.msk [vmem:[%s228 + $0x60] sm:$0xff] %vm2288, %v2284
      %2302 = vst.msk [vmem:[%s228 + $0x68] sm:$0xff] %vm2288, %v2285
      %2303 = vst.msk [vmem:[%s228 + $0x70] sm:$0xff] %vm2288, %v2286
      %2304 = vst.msk [vmem:[%s228 + $0x78] sm:$0xff] %vm2288, %v2287
      %p2305 = scmp.eq.s32.totalorder %s21, 0
      // Predicated region
      $region33: #{_lambda_.4} parent=31 // pred_check
        %p2306 = pneg %p2305
      $region34: #{_lambda_.4} parent=31 // pred_check_branch
        %2308 = sbr.rel (%p2306) target = $region36
      $region35: #{_lambda_.4} parent=31 // pred_region
        %vm2309 = vcmask 254976
        %2310 = vst.msk [vmem:[%s233] sm:$0x3] %vm2309, 0.0
      $region36: #{_lambda_.4} parent=31 // pred_fallthru
        _
      %v2311 = vsel %vm2288, %v2272, 0.0
      %v2312 = vsel %vm2288, %v2273, 0.0
      %v2313 = vadd.f32 %v2311, %v2312
      %v2314 = vsel %vm2288, %v2274, 0.0
      %v2315 = vadd.f32 %v2313, %v2314
      %v2316 = vsel %vm2288, %v2275, 0.0
      %v2317 = vadd.f32 %v2315, %v2316
      %v2318 = vsel %vm2288, %v2276, 0.0
      %v2319 = vadd.f32 %v2317, %v2318
      %v2320 = vsel %vm2288, %v2277, 0.0
      %v2321 = vadd.f32 %v2319, %v2320
      %v2322 = vsel %vm2288, %v2278, 0.0
      %v2323 = vadd.f32 %v2321, %v2322
      %v2324 = vsel %vm2288, %v2279, 0.0
      %v2325 = vadd.f32 %v2323, %v2324
      %v2326 = vsel %vm2288, %v2280, 0.0
      %v2327 = vadd.f32 %v2325, %v2326
      %v2328 = vsel %vm2288, %v2281, 0.0
      %v2329 = vadd.f32 %v2327, %v2328
      %v2330 = vsel %vm2288, %v2282, 0.0
      %v2331 = vadd.f32 %v2329, %v2330
      %v2332 = vsel %vm2288, %v2283, 0.0
      %v2333 = vadd.f32 %v2331, %v2332
      %v2334 = vsel %vm2288, %v2284, 0.0
      %v2335 = vadd.f32 %v2333, %v2334
      %v2336 = vsel %vm2288, %v2285, 0.0
      %v2337 = vadd.f32 %v2335, %v2336
      %v2338 = vsel %vm2288, %v2286, 0.0
      %v2339 = vadd.f32 %v2337, %v2338
      %v2340 = vsel %vm2288, %v2287, 0.0
      %v2341 = vadd.f32 %v2339, %v2340
      %v2342 = vrot.slane %v2341, 4
      %v2343 = vadd.f32 %v2341, %v2342
      %v2344 = vrot.slane %v2343, 2
      %v2345 = vadd.f32 %v2343, %v2344
      %v2346 = vrot.slane %v2345, 1
      %v2347 = vadd.f32 %v2345, %v2346
      %v2348 = vmul.f32 %v2272, %v2272
      %v2349 = vmul.f32 %v2273, %v2273
      %v2350 = vmul.f32 %v2274, %v2274
      %v2351 = vmul.f32 %v2275, %v2275
      %v2352 = vmul.f32 %v2276, %v2276
      %v2353 = vmul.f32 %v2277, %v2277
      %v2354 = vmul.f32 %v2278, %v2278
      %v2355 = vmul.f32 %v2279, %v2279
      %v2356 = vmul.f32 %v2280, %v2280
      %v2357 = vmul.f32 %v2281, %v2281
      %v2358 = vmul.f32 %v2282, %v2282
      %v2359 = vmul.f32 %v2283, %v2283
      %v2360 = vmul.f32 %v2284, %v2284
      %v2361 = vmul.f32 %v2285, %v2285
      %v2362 = vmul.f32 %v2286, %v2286
      %v2363 = vmul.f32 %v2287, %v2287
      %v2364 = vsel %vm2288, %v2348, 0.0
      %v2365 = vsel %vm2288, %v2349, 0.0
      %v2366 = vadd.f32 %v2364, %v2365
      %v2367 = vsel %vm2288, %v2350, 0.0
      %v2368 = vadd.f32 %v2366, %v2367
      %v2369 = vsel %vm2288, %v2351, 0.0
      %v2370 = vadd.f32 %v2368, %v2369
      %v2371 = vsel %vm2288, %v2352, 0.0
      %v2372 = vadd.f32 %v2370, %v2371
      %v2373 = vsel %vm2288, %v2353, 0.0
      %v2374 = vadd.f32 %v2372, %v2373
      %v2375 = vsel %vm2288, %v2354, 0.0
      %v2376 = vadd.f32 %v2374, %v2375
      %v2377 = vsel %vm2288, %v2355, 0.0
      %v2378 = vadd.f32 %v2376, %v2377
      %v2379 = vsel %vm2288, %v2356, 0.0
      %v2380 = vadd.f32 %v2378, %v2379
      %v2381 = vsel %vm2288, %v2357, 0.0
      %v2382 = vadd.f32 %v2380, %v2381
      %v2383 = vsel %vm2288, %v2358, 0.0
      %v2384 = vadd.f32 %v2382, %v2383
      %v2385 = vsel %vm2288, %v2359, 0.0
      %v2386 = vadd.f32 %v2384, %v2385
      %v2387 = vsel %vm2288, %v2360, 0.0
      %v2388 = vadd.f32 %v2386, %v2387
      %v2389 = vsel %vm2288, %v2361, 0.0
      %v2390 = vadd.f32 %v2388, %v2389
      %v2391 = vsel %vm2288, %v2362, 0.0
      %v2392 = vadd.f32 %v2390, %v2391
      %v2393 = vsel %vm2288, %v2363, 0.0
      %v2394 = vadd.f32 %v2392, %v2393
      %v2395 = vrot.slane %v2394, 4
      %v2396 = vadd.f32 %v2394, %v2395
      %v2397 = vrot.slane %v2396, 2
      %v2398 = vadd.f32 %v2396, %v2397
      %v2399 = vrot.slane %v2398, 1
      %v2400 = vadd.f32 %v2398, %v2399
      %v2401 = vld [vmem:[%s233] sm:$0x3]
      %vm2402 = vcmask 1040384
      %v2403 = vsel %vm2402, %v2347, %v2400
      %v2404 = vadd.f32 %v2401, %v2403
      %vm2405 = vcmask 254976
      %2406 = vst.msk [vmem:[%s233] sm:$0x3] %vm2405, %v2404
      %s2407 = smul.u32 8, %s21
      %p2408 = scmp.lt.s32.totalorder %s20, 1
      %s2409 = scalar_select %p2408, %s20, 1
      %p2410 = scmp.lt.s32.totalorder %s2407, 15
      %s2411 = scalar_select %p2410, %s2407, 15
      %s2412 = smul.addr %s2411, 2
      %s2413 = smul.addr %s2409, 32
      %s2414 = sadd.s32 %s2412, %s2413
      %s2415 = smul.addr %s2414, 8
      %s2416 = scalar_lea.vmem %s3, %s2415
      %p2417 = scmp.lt.s32.totalorder %s20, 1
      %s2418 = scalar_select %p2417, %s20, 1
      %s2419 = smul.addr %s2418, 2
      %s2420 = scalar_lea.vmem %s4, %s2419
      // Predicated region
      $region37: #{_lambda_.4} parent=31 // pred_check
        %p2421 = pneg %p116
      $region38: #{_lambda_.4} parent=31 // pred_check_branch
        %2423 = sbr.rel (%p2421) target = $region40
      $region39: #{_lambda_.4} parent=31 // pred_region
        %s2424 = smul.u32 8, %s21
      $region40: #{_lambda_.4} parent=31 // pred_fallthru
        _
      // Predicated region
      $region41: #{_lambda_.4} parent=31 // pred_check
        %p2425 = pneg %p142
      $region42: #{_lambda_.4} parent=31 // pred_check_branch
        %2427 = sbr.rel (%p2425) target = $region44
      $region43: #{_lambda_.4} parent=31 // pred_region
        _
      $region44: #{_lambda_.4} parent=31 // pred_fallthru
        _
    $region32: #{_lambda_.4} parent=5 // pred_fallthru
      _
    %p2428 = scmp.le.s32.totalorder 2, %s11
    // Predicated region
    $region45: #{_lambda_.4} parent=5 // pred_check
      %p2429 = pneg %p2428
    $region46: #{_lambda_.4} parent=5 // pred_check_branch
      %2431 = sbr.rel (%p2429) target = $region48
    $region47: #{_lambda_.4} parent=5 // pred_region
      %s2432 = ssub.s32 %s11, 2
      // Predicated region
      $region49: #{_lambda_.4} parent=47 // pred_check
        %p2433 = pneg %p122
      $region50: #{_lambda_.4} parent=47 // pred_check_branch
        %2435 = sbr.rel (%p2433) target = $region52
      $region51: #{_lambda_.4} parent=47 // pred_region
        %s2436 = smul.u32 8, %s23
        %p2437 = scmp.lt.s32.totalorder %s22, 1
        %s2438 = scalar_select %p2437, %s22, 1
        %p2439 = scmp.lt.s32.totalorder %s2436, 15
        %s2440 = scalar_select %p2439, %s2436, 15
        %s2441 = smul.addr %s2440, 2
        %s2442 = smul.addr %s2438, 32
        %s2443 = sadd.s32 %s2441, %s2442
        %s2444 = smul.addr %s2443, 8
        %s2445 = scalar_lea.vmem %s3, %s2444
      $region52: #{_lambda_.4} parent=47 // pred_fallthru
        _
      // Predicated region
      $region53: #{_lambda_.4} parent=47 // pred_check
        %p2446 = pneg %p148
      $region54: #{_lambda_.4} parent=47 // pred_check_branch
        %2448 = sbr.rel (%p2446) target = $region56
      $region55: #{_lambda_.4} parent=47 // pred_region
        %p2449 = scmp.lt.s32.totalorder %s22, 1
        %s2450 = scalar_select %p2449, %s22, 1
        %s2451 = smul.addr %s2450, 2
        %s2452 = scalar_lea.vmem %s4, %s2451
      $region56: #{_lambda_.4} parent=47 // pred_fallthru
        _
    $region48: #{_lambda_.4} parent=5 // pred_fallthru
      _
  $region6: #{_lambda_.4} parent=0 // loop_footer
    %s15 = sadd.s32 1, %s11
  $region7: #{_lambda_.4} parent=0 // loop_footer_branch
    %10 = sbr.rel target = $region3
  $region8: #{_lambda_.4} parent=0 // loop_exit
    _

// kernel: _lambda_.6
$region0: #{_lambda_.6}
  #allocation0 [shape = 'u32[]', space=smem, size = 0x4, offset = 0x4, fixed_abs, tag = 'smem constant byte address 0x4 - core index']
  #allocation1 [shape = 'u32[72,128]{1,0:T(1,128)}', space=vmem, size = 0x9000, scoped, tag = 'internal scratch']
  %s0 = inlined_call_operand.vmem [shape: bf16[2,18,18,32], index: 0, kind: input, shape index: {}]
  %s1 = inlined_call_operand.vmem [shape: bf16[9,32,32], index: 1, kind: input, shape index: {}]
  %s2 = inlined_call_operand.vmem [shape: f32[1,32], index: 2, kind: input, shape index: {}]
  %s3 = inlined_call_operand.vmem [shape: f32[2,16,16,32], index: 3, kind: output, shape index: {0}]
  %s4 = inlined_call_operand.vmem [shape: f32[2,2,32], index: 4, kind: output, shape index: {1}]
  %5 = xla_tuple %s3, %s4
  %s6 = sld [smem:[#allocation0]]
  $region57: #{_lambda_.6} parent=0
    _
  %s8 = ssub.s32 1, %s6
  %s9 = scalar_select 0, %s8, %s6
  loop: start=0, step=1, limit=6
  $region2: #{_lambda_.6} parent=0 // loop_pre_header
    _
  $region3: #{_lambda_.6} parent=0 // loop_header
    %s11 = sphi 0, %s15
    %p12 = scmp.ge.s32.totalorder %s11, 6
    %s18 = sphi 0, %s30
    %s19 = sphi 0, %s26
    %s20 = sphi 0, %s18
    %s21 = sphi 0, %s19
    %s22 = sphi 0, %s20
    %s23 = sphi 0, %s21
    %s33 = sphi 0, %s35
    %s36 = sphi 0, %s33
    %s37 = sphi 0, %s36
    %s53 = sphi 0, %s37
    %s57 = sphi 0, %s57
    %s59 = sphi 0, %s57
    %s60 = sphi 0, %s59
    %s74 = sphi 0, %s60
    %s78 = sphi 0, %s78
    %s80 = sphi 0, %s78
    %s81 = sphi 0, %s80
    %s95 = sphi 0, %s81
    %s103 = sphi 0, %s105
    %s106 = sphi 0, %s103
    %s107 = sphi 0, %s106
    %s123 = sphi 0, %s107
    %s129 = sphi 0, %s131
    %s132 = sphi 0, %s129
    %s133 = sphi 0, %s132
    %s149 = sphi 0, %s133
  $region4: #{_lambda_.6} parent=0 // loop_header_branch
    %14 = sbr.rel (%p12) target = $region8
  $region5: #{_lambda_.6} parent=0 // loop_body
    %s16 = ssub.s32 %s11, 1
    %s17 = ssub.s32 %s11, 2
    %s24 = sadd.s32 1, %s19
    %p25 = scmp.ge.s32.totalorder %s24, 2
    %s26 = scalar_select %p25, 0, %s24
    %s27 = sadd.s32 1, %s18
    %s28 = scalar_select %p25, %s27, %s18
    %p29 = scmp.ge.s32.totalorder %s28, 2
    %s30 = scalar_select %p29, 0, %s28
    %s31 = ssub.s32 %s18, %s30
    %p32 = scmp.eq.s32.totalorder %s31, 0
    %s34 = sadd.s32 %s33, 1
    %s35 = scalar_select %p32, %s33, %s34
    %p38 = pneg %p32
    %p39 = scmp.eq.s32.totalorder %s11, 3
    %p40 = por %p38, %p39
    %p41 = scmp.ne.s32.totalorder %s33, %s36
    %p42 = scmp.eq.s32.totalorder %s11, 0
    %p43 = por %p41, %p42
    %p44 = scmp.ne.s32.totalorder %s33, %s36
    %p45 = scmp.eq.s32.totalorder %s16, 3
    %p46 = por %p44, %p45
    %p47 = scmp.ne.s32.totalorder %s36, %s37
    %p48 = scmp.eq.s32.totalorder %s16, 0
    %p49 = por %p47, %p48
    %p50 = scmp.ne.s32.totalorder %s36, %s37
    %p51 = scmp.eq.s32.totalorder %s17, 3
    %p52 = por %p50, %p51
    %p54 = scmp.ne.s32.totalorder %s37, %s53
    %p55 = scmp.eq.s32.totalorder %s17, 0
    %p56 = por %p54, %p55
    %s58 = sadd.s32 %s57, 1
    %p61 = scmp.eq.s32.totalorder %s11, 3
    %p62 = scmp.ne.s32.totalorder %s57, %s59
    %p63 = scmp.eq.s32.totalorder %s11, 0
    %p64 = por %p62, %p63
    %p65 = scmp.ne.s32.totalorder %s57, %s59
    %p66 = scmp.eq.s32.totalorder %s16, 3
    %p67 = por %p65, %p66
    %p68 = scmp.ne.s32.totalorder %s59, %s60
    %p69 = scmp.eq.s32.totalorder %s16, 0
    %p70 = por %p68, %p69
    %p71 = scmp.ne.s32.totalorder %s59, %s60
    %p72 = scmp.eq.s32.totalorder %s17, 3
    %p73 = por %p71, %p72
    %p75 = scmp.ne.s32.totalorder %s60, %s74
    %p76 = scmp.eq.s32.totalorder %s17, 0
    %p77 = por %p75, %p76
    %s79 = sadd.s32 %s78, 1
    %p82 = scmp.eq.s32.totalorder %s11, 3
    %p83 = scmp.ne.s32.totalorder %s78, %s80
    %p84 = scmp.eq.s32.totalorder %s11, 0
    %p85 = por %p83, %p84
    %p86 = scmp.ne.s32.totalorder %s78, %s80
    %p87 = scmp.eq.s32.totalorder %s16, 3
    %p88 = por %p86, %p87
    %p89 = scmp.ne.s32.totalorder %s80, %s81
    %p90 = scmp.eq.s32.totalorder %s16, 0
    %p91 = por %p89, %p90
    %p92 = scmp.ne.s32.totalorder %s80, %s81
    %p93 = scmp.eq.s32.totalorder %s17, 3
    %p94 = por %p92, %p93
    %p96 = scmp.ne.s32.totalorder %s81, %s95
    %p97 = scmp.eq.s32.totalorder %s17, 0
    %p98 = por %p96, %p97
    %s99 = ssub.s32 %s18, %s30
    %s100 = ssub.s32 %s19, %s26
    %s101 = sor.u32 %s99, %s100
    %p102 = scmp.eq.s32.totalorder %s101, 0
    %s104 = sadd.s32 %s103, 1
    %s105 = scalar_select %p102, %s103, %s104
    %p108 = pneg %p102
    %p109 = scmp.eq.s32.totalorder %s11, 3
    %p110 = por %p108, %p109
    %p111 = scmp.ne.s32.totalorder %s103, %s106
    %p112 = scmp.eq.s32.totalorder %s11, 0
    %p113 = por %p111, %p112
    %p114 = scmp.ne.s32.totalorder %s103, %s106
    %p115 = scmp.eq.s32.totalorder %s16, 3
    %p116 = por %p114, %p115
    %p117 = scmp.ne.s32.totalorder %s106, %s107
    %p118 = scmp.eq.s32.totalorder %s16, 0
    %p119 = por %p117, %p118
    %p120 = scmp.ne.s32.totalorder %s106, %s107
    %p121 = scmp.eq.s32.totalorder %s17, 3
    %p122 = por %p120, %p121
    %p124 = scmp.ne.s32.totalorder %s107, %s123
    %p125 = scmp.eq.s32.totalorder %s17, 0
    %p126 = por %p124, %p125
    %s127 = ssub.s32 %s18, %s30
    %p128 = scmp.eq.s32.totalorder %s127, 0
    %s130 = sadd.s32 %s129, 1
    %s131 = scalar_select %p128, %s129, %s130
    %p134 = pneg %p128
    %p135 = scmp.eq.s32.totalorder %s11, 3
    %p136 = por %p134, %p135
    %p137 = scmp.ne.s32.totalorder %s129, %s132
    %p138 = scmp.eq.s32.totalorder %s11, 0
    %p139 = por %p137, %p138
    %p140 = scmp.ne.s32.totalorder %s129, %s132
    %p141 = scmp.eq.s32.totalorder %s16, 3
    %p142 = por %p140, %p141
    %p143 = scmp.ne.s32.totalorder %s132, %s133
    %p144 = scmp.eq.s32.totalorder %s16, 0
    %p145 = por %p143, %p144
    %p146 = scmp.ne.s32.totalorder %s132, %s133
    %p147 = scmp.eq.s32.totalorder %s17, 3
    %p148 = por %p146, %p147
    %p150 = scmp.ne.s32.totalorder %s133, %s149
    %p151 = scmp.eq.s32.totalorder %s17, 0
    %p152 = por %p150, %p151
    %p153 = scmp.le.s32.totalorder 1, %s11
    %p154 = scmp.lt.s32.totalorder %s11, 5
    %p155 = pnand %p153, %p154
    %p156 = pneg %p155
    // Predicated region
    $region9: #{_lambda_.6} parent=5 // pred_check
      _
    $region10: #{_lambda_.6} parent=5 // pred_check_branch
      %158 = sbr.rel (%p155) target = $region12
    $region11: #{_lambda_.6} parent=5 // pred_region
      %s159 = ssub.s32 %s11, 1
      // Predicated region
      $region13: #{_lambda_.6} parent=11 // pred_check
        %p160 = pneg %p70
      $region14: #{_lambda_.6} parent=11 // pred_check_branch
        %162 = sbr.rel (%p160) target = $region16
      $region15: #{_lambda_.6} parent=11 // pred_region
        _
      $region16: #{_lambda_.6} parent=11 // pred_fallthru
        _
      // Predicated region
      $region17: #{_lambda_.6} parent=11 // pred_check
        %p163 = pneg %p91
      $region18: #{_lambda_.6} parent=11 // pred_check_branch
        %165 = sbr.rel (%p163) target = $region20
      $region19: #{_lambda_.6} parent=11 // pred_region
        _
      $region20: #{_lambda_.6} parent=11 // pred_fallthru
        _
    $region12: #{_lambda_.6} parent=5 // pred_fallthru
      _
    %p166 = scmp.lt.s32.totalorder %s11, 4
    // Predicated region
    $region21: #{_lambda_.6} parent=5 // pred_check
      %p167 = pneg %p166
    $region22: #{_lambda_.6} parent=5 // pred_check_branch
      %169 = sbr.rel (%p167) target = $region24
    $region23: #{_lambda_.6} parent=5 // pred_region
      // Predicated region
      $region25: #{_lambda_.6} parent=23 // pred_check
        %p170 = pneg %p43
      $region26: #{_lambda_.6} parent=23 // pred_check_branch
        %172 = sbr.rel (%p170) target = $region28
      $region27: #{_lambda_.6} parent=23 // pred_region
        %p173 = scmp.lt.s32.totalorder %s18, 1
        %s174 = scalar_select %p173, %s18, 1
        %s175 = smul.addr %s174, 54
        %s176 = smul.addr %s175, 4
        %s177 = scalar_lea.vmem %s0, %s176
      $region28: #{_lambda_.6} parent=23 // pred_fallthru
        _
    $region24: #{_lambda_.6} parent=5 // pred_fallthru
      _
    %p178 = scmp.le.s32.totalorder 1, %s11
    %p179 = scmp.lt.s32.totalorder %s11, 5
    %p180 = pnand %p178, %p179
    %p181 = pneg %p180
    // Predicated region
    $region29: #{_lambda_.6} parent=5 // pred_check
      _
    $region30: #{_lambda_.6} parent=5 // pred_check_branch
      %183 = sbr.rel (%p180) target = $region32
    $region31: #{_lambda_.6} parent=5 // pred_region
      %s184 = ssub.s32 %s11, 1
      %p185 = scmp.lt.s32.totalorder %s20, 1
      %s186 = scalar_select %p185, %s20, 1
      %s187 = smul.addr %s186, 54
      %s188 = smul.addr %s187, 4
      %s189 = scalar_lea.vmem %s0, %s188
      %p190 = pneg %p49
      %p191 = pneg %p46
      %p192 = pneg %p70
      %p193 = pneg %p67
      %p194 = pneg %p91
      %p195 = pneg %p88
      %p196 = pneg %p119
      %p197 = pneg %p116
      %s198 = smul.u32 8, %s21
      %p199 = scmp.lt.s32.totalorder %s20, 1
      %s200 = scalar_select %p199, %s20, 1
      %p201 = scmp.lt.s32.totalorder %s198, 15
      %s202 = scalar_select %p201, %s198, 15
      %s203 = smul.addr %s202, 2
      %s204 = smul.addr %s200, 32
      %s205 = sadd.s32 %s203, %s204
      %s206 = smul.addr %s205, 8
      %s207 = scalar_lea.vmem %s3, %s206
      %p208 = pneg %p145
      %p209 = pneg %p142
      %p210 = scmp.lt.s32.totalorder %s20, 1
      %s211 = scalar_select %p210, %s20, 1
      %s212 = smul.addr %s211, 2
      %s213 = scalar_lea.vmem %s4, %s212
      %p214 = scmp.lt.s32.totalorder %s20, 1
      %s215 = scalar_select %p214, %s20, 1
      %s216 = smul.addr %s215, 54
      %s217 = smul.addr %s216, 4
      %s218 = scalar_lea.vmem %s0, %s217
      %s219 = smul.u32 8, %s21
      %p220 = scmp.lt.s32.totalorder %s20, 1
      %s221 = scalar_select %p220, %s20, 1
      %p222 = scmp.lt.s32.totalorder %s219, 15
      %s223 = scalar_select %p222, %s219, 15
      %s224 = smul.addr %s223, 2
      %s225 = smul.addr %s221, 32
      %s226 = sadd.s32 %s224, %s225
      %s227 = smul.addr %s226, 8
      %s228 = scalar_lea.vmem %s3, %s227
      %s229 = smul.u32 8, %s21
      %p230 = scmp.lt.s32.totalorder %s20, 1
      %s231 = scalar_select %p230, %s20, 1
      %s232 = smul.addr %s231, 2
      %s233 = scalar_lea.vmem %s4, %s232
      %s235 = smul.u32 %s21, 8
      %s236 = smul.u32 %s235, 3
      %s237 = smul.addr %s236, 4
      %s238 = scalar_lea.vmem %s218, %s237
      %v239 = vld [vmem:[%s238] sm:$0xf]
      %v240 = vld [vmem:[%s238 + $0x4] sm:$0xf]
      %v241 = vld [vmem:[%s238 + $0xc] sm:$0xf]
      %v242 = vld [vmem:[%s238 + $0x10] sm:$0xf]
      %v243 = vld [vmem:[%s238 + $0x18] sm:$0xf]
      %v244 = vld [vmem:[%s238 + $0x1c] sm:$0xf]
      %v245 = vld [vmem:[%s238 + $0x24] sm:$0xf]
      %v246 = vld [vmem:[%s238 + $0x28] sm:$0xf]
      %v247 = vld [vmem:[%s238 + $0x30] sm:$0xf]
      %v248 = vld [vmem:[%s238 + $0x34] sm:$0xf]
      %v249 = vld [vmem:[%s238 + $0x3c] sm:$0xf]
      %v250 = vld [vmem:[%s238 + $0x40] sm:$0xf]
      %v251 = vld [vmem:[%s238 + $0x48] sm:$0xf]
      %v252 = vld [vmem:[%s238 + $0x4c] sm:$0xf]
      %v253 = vld [vmem:[%s238 + $0x54] sm:$0xf]
      %v254 = vld [vmem:[%s238 + $0x58] sm:$0xf]
      %v255 = vld [vmem:[%s1] sm:$0xf]
      %v256 = vld [vmem:[%s1 + $0x4] sm:$0xf]
      %v257 = vld [vmem:[%s1 + $0x8] sm:$0xf]
      %v258 = vld [vmem:[%s1 + $0xc] sm:$0xf]
      %v259 = vld [vmem:[%s238 + $0x8] sm:$0x1]
      %v260 = vld [vmem:[%s238 + $0x14] sm:$0x1]
      %v261 = vld [vmem:[%s238 + $0x20] sm:$0x1]
      %v262 = vld [vmem:[%s238 + $0x2c] sm:$0x1]
      %v263 = vld [vmem:[%s238 + $0x38] sm:$0x1]
      %v264 = vld [vmem:[%s238 + $0x44] sm:$0x1]
      %v265 = vld [vmem:[%s238 + $0x50] sm:$0x1]
      %v266 = vld [vmem:[%s238 + $0x5c] sm:$0x1]
      %vm267 = vsmask.f32 3328
      %vm268 = vsmask.f32 7440
      %vm269 = vmor %vm267, %vm268
      %v271 = vshrl.u32 %v239, 16
      %v273 = vrot.slane %v271, 4
      %v274 = vshll.u32 %v239, 16
      %v276 = vrot.slane %v274, 5
      %v277 = vor.u32 %v273, %v276
      %v278 = vrot.slane %v277, 4
      %v280 = vshll.u32 %v240, 16
      %v282 = vrot.slane %v280, 5
      %v283 = vsel %vm269, %v278, %v282
      %v284 = vshrl.u32 %v240, 16
      %v286 = vrot.slane %v284, 4
      %v287 = vor.u32 %v286, %v282
      %v288 = vrot.slane %v287, 4
      %v290 = vshll.u32 %v259, 16
      %v292 = vrot.slane %v290, 5
      %v293 = vsel %vm269, %v288, %v292
      %v295 = vshrl.u32 %v241, 16
      %v297 = vrot.slane %v295, 4
      %v298 = vshll.u32 %v241, 16
      %v300 = vrot.slane %v298, 5
      %v301 = vor.u32 %v297, %v300
      %v302 = vrot.slane %v301, 4
      %v304 = vshll.u32 %v242, 16
      %v306 = vrot.slane %v304, 5
      %v307 = vsel %vm269, %v302, %v306
      %v308 = vshrl.u32 %v242, 16
      %v310 = vrot.slane %v308, 4
      %v311 = vor.u32 %v310, %v306
      %v312 = vrot.slane %v311, 4
      %v314 = vshll.u32 %v260, 16
      %v316 = vrot.slane %v314, 5
      %v317 = vsel %vm269, %v312, %v316
      %v319 = vshrl.u32 %v243, 16
      %v321 = vrot.slane %v319, 4
      %v322 = vshll.u32 %v243, 16
      %v324 = vrot.slane %v322, 5
      %v325 = vor.u32 %v321, %v324
      %v326 = vrot.slane %v325, 4
      %v328 = vshll.u32 %v244, 16
      %v330 = vrot.slane %v328, 5
      %v331 = vsel %vm269, %v326, %v330
      %v332 = vshrl.u32 %v244, 16
      %v334 = vrot.slane %v332, 4
      %v335 = vor.u32 %v334, %v330
      %v336 = vrot.slane %v335, 4
      %v338 = vshll.u32 %v261, 16
      %v340 = vrot.slane %v338, 5
      %v341 = vsel %vm269, %v336, %v340
      %v343 = vshrl.u32 %v245, 16
      %v345 = vrot.slane %v343, 4
      %v346 = vshll.u32 %v245, 16
      %v348 = vrot.slane %v346, 5
      %v349 = vor.u32 %v345, %v348
      %v350 = vrot.slane %v349, 4
      %v352 = vshll.u32 %v246, 16
      %v354 = vrot.slane %v352, 5
      %v355 = vsel %vm269, %v350, %v354
      %v356 = vshrl.u32 %v246, 16
      %v358 = vrot.slane %v356, 4
      %v359 = vor.u32 %v358, %v354
      %v360 = vrot.slane %v359, 4
      %v362 = vshll.u32 %v262, 16
      %v364 = vrot.slane %v362, 5
      %v365 = vsel %vm269, %v360, %v364
      %v367 = vshrl.u32 %v247, 16
      %v369 = vrot.slane %v367, 4
      %v370 = vshll.u32 %v247, 16
      %v372 = vrot.slane %v370, 5
      %v373 = vor.u32 %v369, %v372
      %v374 = vrot.slane %v373, 4
      %v376 = vshll.u32 %v248, 16
      %v378 = vrot.slane %v376, 5
      %v379 = vsel %vm269, %v374, %v378
      %v380 = vshrl.u32 %v248, 16
      %v382 = vrot.slane %v380, 4
      %v383 = vor.u32 %v382, %v378
      %v384 = vrot.slane %v383, 4
      %v386 = vshll.u32 %v263, 16
      %v388 = vrot.slane %v386, 5
      %v389 = vsel %vm269, %v384, %v388
      %v391 = vshrl.u32 %v249, 16
      %v393 = vrot.slane %v391, 4
      %v394 = vshll.u32 %v249, 16
      %v396 = vrot.slane %v394, 5
      %v397 = vor.u32 %v393, %v396
      %v398 = vrot.slane %v397, 4
      %v400 = vshll.u32 %v250, 16
      %v402 = vrot.slane %v400, 5
      %v403 = vsel %vm269, %v398, %v402
      %v404 = vshrl.u32 %v250, 16
      %v406 = vrot.slane %v404, 4
      %v407 = vor.u32 %v406, %v402
      %v408 = vrot.slane %v407, 4
      %v410 = vshll.u32 %v264, 16
      %v412 = vrot.slane %v410, 5
      %v413 = vsel %vm269, %v408, %v412
      %v415 = vshrl.u32 %v251, 16
      %v417 = vrot.slane %v415, 4
      %v418 = vshll.u32 %v251, 16
      %v420 = vrot.slane %v418, 5
      %v421 = vor.u32 %v417, %v420
      %v422 = vrot.slane %v421, 4
      %v424 = vshll.u32 %v252, 16
      %v426 = vrot.slane %v424, 5
      %v427 = vsel %vm269, %v422, %v426
      %v428 = vshrl.u32 %v252, 16
      %v430 = vrot.slane %v428, 4
      %v431 = vor.u32 %v430, %v426
      %v432 = vrot.slane %v431, 4
      %v434 = vshll.u32 %v265, 16
      %v436 = vrot.slane %v434, 5
      %v437 = vsel %vm269, %v432, %v436
      %v439 = vshrl.u32 %v253, 16
      %v441 = vrot.slane %v439, 4
      %v442 = vshll.u32 %v253, 16
      %v444 = vrot.slane %v442, 5
      %v445 = vor.u32 %v441, %v444
      %v446 = vrot.slane %v445, 4
      %v448 = vshll.u32 %v254, 16
      %v450 = vrot.slane %v448, 5
      %v451 = vsel %vm269, %v446, %v450
      %v452 = vshrl.u32 %v254, 16
      %v454 = vrot.slane %v452, 4
      %v455 = vor.u32 %v454, %v450
      %v456 = vrot.slane %v455, 4
      %v458 = vshll.u32 %v266, 16
      %v460 = vrot.slane %v458, 5
      %v461 = vsel %vm269, %v456, %v460
      %s462 = scalar_lea.vmem %s1, 16
      %v463 = vld [vmem:[%s462] sm:$0xf]
      %v464 = vld [vmem:[%s462 + $0x4] sm:$0xf]
      %v465 = vld [vmem:[%s462 + $0x8] sm:$0xf]
      %v466 = vld [vmem:[%s462 + $0xc] sm:$0xf]
      %v467 = vunpack.c.l.b16 %v283
      %v468 = vunpack.c.l.b16 %v293
      %v469 = vunpack.c.l.b16 %v307
      %v470 = vunpack.c.l.b16 %v317
      %v471 = vunpack.c.l.b16 %v331
      %v472 = vunpack.c.l.b16 %v341
      %v473 = vunpack.c.l.b16 %v355
      %v474 = vunpack.c.l.b16 %v365
      %v475 = vunpack.c.l.b16 %v379
      %v476 = vunpack.c.l.b16 %v389
      %v477 = vunpack.c.l.b16 %v403
      %v478 = vunpack.c.l.b16 %v413
      %v479 = vunpack.c.l.b16 %v427
      %v480 = vunpack.c.l.b16 %v437
      %v481 = vunpack.c.l.b16 %v451
      %v482 = vunpack.c.l.b16 %v461
      %v483 = vpack.c.b16 %v468, %v467
      %v484 = vpack.c.b16 %v470, %v469
      %v485 = vpack.c.b16 %v472, %v471
      %v486 = vpack.c.b16 %v474, %v473
      %v487 = vpack.c.b16 %v476, %v475
      %v488 = vpack.c.b16 %v478, %v477
      %v489 = vpack.c.b16 %v480, %v479
      %v490 = vpack.c.b16 %v482, %v481
      %v495 = vunpack.c.l.b16 %v463
      %v496 = vunpack.c.l.b16 %v464
      %v497 = vunpack.c.l.b16 %v465
      %v498 = vunpack.c.l.b16 %v466
      %v499 = vpack.c.b16 %v496, %v495
      %v500 = vpack.c.b16 %v498, %v497
      %vm503 = vcmask 261120
      %v505 = vsel %vm503, %v483, 0
      %v508 = vsel %vm503, %v484, 0
      %v511 = vsel %vm503, %v485, 0
      %v514 = vsel %vm503, %v486, 0
      %v517 = vsel %vm503, %v487, 0
      %v520 = vsel %vm503, %v488, 0
      %v523 = vsel %vm503, %v489, 0
      %v526 = vsel %vm503, %v490, 0
      %528 = vmatpush.bf16.msra.mxu0 0
      %529 = vmatpush.bf16.msra.mxu0 0
      %530 = vmatpush.bf16.msra.mxu0 0
      %531 = vmatpush.bf16.msra.mxu0 0
      %532 = vmatpush.bf16.msra.mxu0 0
      %533 = vmatpush.bf16.msra.mxu0 0
      %534 = vmatpush.bf16.msra.mxu0 %v500
      %535 = vmatpush.bf16.msra.mxu0 %v499
      %536 = vmatmul.bf16.gmra.mxu0 %v505
      %v537 = vpop.f32.mrf.mxu0
      %v538 = vadd.f32 0.0, %v537
      %v539 = vpop.f32.mrf.mxu0
      %v540 = vadd.f32 0.0, %v539
      %541 = vmatmul.bf16.gmra.mxu0 %v508
      %v542 = vpop.f32.mrf.mxu0
      %v543 = vadd.f32 0.0, %v542
      %v544 = vpop.f32.mrf.mxu0
      %v545 = vadd.f32 0.0, %v544
      %546 = vmatmul.bf16.gmra.mxu0 %v511
      %v547 = vpop.f32.mrf.mxu0
      %v548 = vadd.f32 0.0, %v547
      %v549 = vpop.f32.mrf.mxu0
      %v550 = vadd.f32 0.0, %v549
      %551 = vmatmul.bf16.gmra.mxu0 %v514
      %v552 = vpop.f32.mrf.mxu0
      %v553 = vadd.f32 0.0, %v552
      %v554 = vpop.f32.mrf.mxu0
      %v555 = vadd.f32 0.0, %v554
      %556 = vmatmul.bf16.gmra.mxu0 %v517
      %v557 = vpop.f32.mrf.mxu0
      %v558 = vadd.f32 0.0, %v557
      %v559 = vpop.f32.mrf.mxu0
      %v560 = vadd.f32 0.0, %v559
      %561 = vmatmul.bf16.gmra.mxu0 %v520
      %v562 = vpop.f32.mrf.mxu0
      %v563 = vadd.f32 0.0, %v562
      %v564 = vpop.f32.mrf.mxu0
      %v565 = vadd.f32 0.0, %v564
      %566 = vmatmul.bf16.gmra.mxu0 %v523
      %v567 = vpop.f32.mrf.mxu0
      %v568 = vadd.f32 0.0, %v567
      %v569 = vpop.f32.mrf.mxu0
      %v570 = vadd.f32 0.0, %v569
      %571 = vmatmul.bf16.gmra.mxu0 %v526
      %v572 = vpop.f32.mrf.mxu0
      %v573 = vadd.f32 0.0, %v572
      %v574 = vpop.f32.mrf.mxu0
      %v575 = vadd.f32 0.0, %v574
      %576 = vdwg.mxu0
      %v593 = vunpack.c.l.b16 %v239
      %v594 = vunpack.c.l.b16 %v240
      %v595 = vunpack.c.l.b16 %v241
      %v596 = vunpack.c.l.b16 %v242
      %v597 = vunpack.c.l.b16 %v243
      %v598 = vunpack.c.l.b16 %v244
      %v599 = vunpack.c.l.b16 %v245
      %v600 = vunpack.c.l.b16 %v246
      %v601 = vunpack.c.l.b16 %v247
      %v602 = vunpack.c.l.b16 %v248
      %v603 = vunpack.c.l.b16 %v249
      %v604 = vunpack.c.l.b16 %v250
      %v605 = vunpack.c.l.b16 %v251
      %v606 = vunpack.c.l.b16 %v252
      %v607 = vunpack.c.l.b16 %v253
      %v608 = vunpack.c.l.b16 %v254
      %v609 = vpack.c.b16 %v594, %v593
      %v610 = vpack.c.b16 %v596, %v595
      %v611 = vpack.c.b16 %v598, %v597
      %v612 = vpack.c.b16 %v600, %v599
      %v613 = vpack.c.b16 %v602, %v601
      %v614 = vpack.c.b16 %v604, %v603
      %v615 = vpack.c.b16 %v606, %v605
      %v616 = vpack.c.b16 %v608, %v607
      %v621 = vunpack.c.l.b16 %v255
      %v622 = vunpack.c.l.b16 %v256
      %v623 = vunpack.c.l.b16 %v257
      %v624 = vunpack.c.l.b16 %v258
      %v625 = vpack.c.b16 %v622, %v621
      %v626 = vpack.c.b16 %v624, %v623
      %v630 = vsel %vm503, %v609, 0
      %v633 = vsel %vm503, %v610, 0
      %v636 = vsel %vm503, %v611, 0
      %v639 = vsel %vm503, %v612, 0
      %v642 = vsel %vm503, %v613, 0
      %v645 = vsel %vm503, %v614, 0
      %v648 = vsel %vm503, %v615, 0
      %v651 = vsel %vm503, %v616, 0
      %653 = vmatpush.bf16.msra.mxu0 0
      %654 = vmatpush.bf16.msra.mxu0 0
      %655 = vmatpush.bf16.msra.mxu0 0
      %656 = vmatpush.bf16.msra.mxu0 0
      %657 = vmatpush.bf16.msra.mxu0 0
      %658 = vmatpush.bf16.msra.mxu0 0
      %659 = vmatpush.bf16.msra.mxu0 %v626
      %660 = vmatpush.bf16.msra.mxu0 %v625
      %661 = vmatmul.bf16.gmra.mxu0 %v630
      %v662 = vpop.f32.mrf.mxu0
      %v663 = vadd.f32 %v538, %v662
      %v664 = vpop.f32.mrf.mxu0
      %v665 = vadd.f32 %v540, %v664
      %666 = vmatmul.bf16.gmra.mxu0 %v633
      %v667 = vpop.f32.mrf.mxu0
      %v668 = vadd.f32 %v543, %v667
      %v669 = vpop.f32.mrf.mxu0
      %v670 = vadd.f32 %v545, %v669
      %671 = vmatmul.bf16.gmra.mxu0 %v636
      %v672 = vpop.f32.mrf.mxu0
      %v673 = vadd.f32 %v548, %v672
      %v674 = vpop.f32.mrf.mxu0
      %v675 = vadd.f32 %v550, %v674
      %676 = vmatmul.bf16.gmra.mxu0 %v639
      %v677 = vpop.f32.mrf.mxu0
      %v678 = vadd.f32 %v553, %v677
      %v679 = vpop.f32.mrf.mxu0
      %v680 = vadd.f32 %v555, %v679
      %681 = vmatmul.bf16.gmra.mxu0 %v642
      %v682 = vpop.f32.mrf.mxu0
      %v683 = vadd.f32 %v558, %v682
      %v684 = vpop.f32.mrf.mxu0
      %v685 = vadd.f32 %v560, %v684
      %686 = vmatmul.bf16.gmra.mxu0 %v645
      %v687 = vpop.f32.mrf.mxu0
      %v688 = vadd.f32 %v563, %v687
      %v689 = vpop.f32.mrf.mxu0
      %v690 = vadd.f32 %v565, %v689
      %691 = vmatmul.bf16.gmra.mxu0 %v648
      %v692 = vpop.f32.mrf.mxu0
      %v693 = vadd.f32 %v568, %v692
      %v694 = vpop.f32.mrf.mxu0
      %v695 = vadd.f32 %v570, %v694
      %696 = vmatmul.bf16.gmra.mxu0 %v651
      %v697 = vpop.f32.mrf.mxu0
      %v698 = vadd.f32 %v573, %v697
      %v699 = vpop.f32.mrf.mxu0
      %v700 = vadd.f32 %v575, %v699
      %701 = vdwg.mxu0
      %v702 = vld [vmem:[%s238] sm:$0xe]
      %v703 = vld [vmem:[%s238 + $0xc] sm:$0xe]
      %v704 = vld [vmem:[%s238 + $0x18] sm:$0xe]
      %v705 = vld [vmem:[%s238 + $0x24] sm:$0xe]
      %v706 = vld [vmem:[%s238 + $0x30] sm:$0xe]
      %v707 = vld [vmem:[%s238 + $0x3c] sm:$0xe]
      %v708 = vld [vmem:[%s238 + $0x48] sm:$0xe]
      %v709 = vld [vmem:[%s238 + $0x54] sm:$0xe]
      %vm726 = vcmask 1042432
      %vm727 = vcmask 1046532
      %vm728 = vmor %vm726, %vm727
      %v729 = vrot.slane %v702, 5
      %v730 = vrot.slane %v729, 4
      %v731 = vrot.slane %v240, 5
      %v732 = vsel %vm728, %v730, %v731
      %v733 = vrot.slane %v731, 4
      %v734 = vrot.slane %v259, 5
      %v735 = vsel %vm728, %v733, %v734
      %v736 = vrot.slane %v703, 5
      %v737 = vrot.slane %v736, 4
      %v738 = vrot.slane %v242, 5
      %v739 = vsel %vm728, %v737, %v738
      %v740 = vrot.slane %v738, 4
      %v741 = vrot.slane %v260, 5
      %v742 = vsel %vm728, %v740, %v741
      %v743 = vrot.slane %v704, 5
      %v744 = vrot.slane %v743, 4
      %v745 = vrot.slane %v244, 5
      %v746 = vsel %vm728, %v744, %v745
      %v747 = vrot.slane %v745, 4
      %v748 = vrot.slane %v261, 5
      %v749 = vsel %vm728, %v747, %v748
      %v750 = vrot.slane %v705, 5
      %v751 = vrot.slane %v750, 4
      %v752 = vrot.slane %v246, 5
      %v753 = vsel %vm728, %v751, %v752
      %v754 = vrot.slane %v752, 4
      %v755 = vrot.slane %v262, 5
      %v756 = vsel %vm728, %v754, %v755
      %v757 = vrot.slane %v706, 5
      %v758 = vrot.slane %v757, 4
      %v759 = vrot.slane %v248, 5
      %v760 = vsel %vm728, %v758, %v759
      %v761 = vrot.slane %v759, 4
      %v762 = vrot.slane %v263, 5
      %v763 = vsel %vm728, %v761, %v762
      %v764 = vrot.slane %v707, 5
      %v765 = vrot.slane %v764, 4
      %v766 = vrot.slane %v250, 5
      %v767 = vsel %vm728, %v765, %v766
      %v768 = vrot.slane %v766, 4
      %v769 = vrot.slane %v264, 5
      %v770 = vsel %vm728, %v768, %v769
      %v771 = vrot.slane %v708, 5
      %v772 = vrot.slane %v771, 4
      %v773 = vrot.slane %v252, 5
      %v774 = vsel %vm728, %v772, %v773
      %v775 = vrot.slane %v773, 4
      %v776 = vrot.slane %v265, 5
      %v777 = vsel %vm728, %v775, %v776
      %v778 = vrot.slane %v709, 5
      %v779 = vrot.slane %v778, 4
      %v780 = vrot.slane %v254, 5
      %v781 = vsel %vm728, %v779, %v780
      %v782 = vrot.slane %v780, 4
      %v783 = vrot.slane %v266, 5
      %v784 = vsel %vm728, %v782, %v783
      %s785 = scalar_lea.vmem %s1, 32
      %v786 = vld [vmem:[%s785] sm:$0xf]
      %v787 = vld [vmem:[%s785 + $0x4] sm:$0xf]
      %v788 = vld [vmem:[%s785 + $0x8] sm:$0xf]
      %v789 = vld [vmem:[%s785 + $0xc] sm:$0xf]
      %v790 = vunpack.c.l.b16 %v732
      %v791 = vunpack.c.l.b16 %v735
      %v792 = vunpack.c.l.b16 %v739
      %v793 = vunpack.c.l.b16 %v742
      %v794 = vunpack.c.l.b16 %v746
      %v795 = vunpack.c.l.b16 %v749
      %v796 = vunpack.c.l.b16 %v753
      %v797 = vunpack.c.l.b16 %v756
      %v798 = vunpack.c.l.b16 %v760
      %v799 = vunpack.c.l.b16 %v763
      %v800 = vunpack.c.l.b16 %v767
      %v801 = vunpack.c.l.b16 %v770
      %v802 = vunpack.c.l.b16 %v774
      %v803 = vunpack.c.l.b16 %v777
      %v804 = vunpack.c.l.b16 %v781
      %v805 = vunpack.c.l.b16 %v784
      %v806 = vpack.c.b16 %v791, %v790
      %v807 = vpack.c.b16 %v793, %v792
      %v808 = vpack.c.b16 %v795, %v794
      %v809 = vpack.c.b16 %v797, %v796
      %v810 = vpack.c.b16 %v799, %v798
      %v811 = vpack.c.b16 %v801, %v800
      %v812 = vpack.c.b16 %v803, %v802
      %v813 = vpack.c.b16 %v805, %v804
      %v818 = vunpack.c.l.b16 %v786
      %v819 = vunpack.c.l.b16 %v787
      %v820 = vunpack.c.l.b16 %v788
      %v821 = vunpack.c.l.b16 %v789
      %v822 = vpack.c.b16 %v819, %v818
      %v823 = vpack.c.b16 %v821, %v820
      %v827 = vsel %vm503, %v806, 0
      %v830 = vsel %vm503, %v807, 0
      %v833 = vsel %vm503, %v808, 0
      %v836 = vsel %vm503, %v809, 0
      %v839 = vsel %vm503, %v810, 0
      %v842 = vsel %vm503, %v811, 0
      %v845 = vsel %vm503, %v812, 0
      %v848 = vsel %vm503, %v813, 0
      %850 = vmatpush.bf16.msra.mxu0 0
      %851 = vmatpush.bf16.msra.mxu0 0
      %852 = vmatpush.bf16.msra.mxu0 0
      %853 = vmatpush.bf16.msra.mxu0 0
      %854 = vmatpush.bf16.msra.mxu0 0
      %855 = vmatpush.bf16.msra.mxu0 0
      %856 = vmatpush.bf16.msra.mxu0 %v823
      %857 = vmatpush.bf16.msra.mxu0 %v822
      %858 = vmatmul.bf16.gmra.mxu0 %v827
      %v859 = vpop.f32.mrf.mxu0
      %v860 = vadd.f32 0.0, %v859
      %v861 = vpop.f32.mrf.mxu0
      %v862 = vadd.f32 0.0, %v861
      %863 = vmatmul.bf16.gmra.mxu0 %v830
      %v864 = vpop.f32.mrf.mxu0
      %v865 = vadd.f32 0.0, %v864
      %v866 = vpop.f32.mrf.mxu0
      %v867 = vadd.f32 0.0, %v866
      %868 = vmatmul.bf16.gmra.mxu0 %v833
      %v869 = vpop.f32.mrf.mxu0
      %v870 = vadd.f32 0.0, %v869
      %v871 = vpop.f32.mrf.mxu0
      %v872 = vadd.f32 0.0, %v871
      %873 = vmatmul.bf16.gmra.mxu0 %v836
      %v874 = vpop.f32.mrf.mxu0
      %v875 = vadd.f32 0.0, %v874
      %v876 = vpop.f32.mrf.mxu0
      %v877 = vadd.f32 0.0, %v876
      %878 = vmatmul.bf16.gmra.mxu0 %v839
      %v879 = vpop.f32.mrf.mxu0
      %v880 = vadd.f32 0.0, %v879
      %v881 = vpop.f32.mrf.mxu0
      %v882 = vadd.f32 0.0, %v881
      %883 = vmatmul.bf16.gmra.mxu0 %v842
      %v884 = vpop.f32.mrf.mxu0
      %v885 = vadd.f32 0.0, %v884
      %v886 = vpop.f32.mrf.mxu0
      %v887 = vadd.f32 0.0, %v886
      %888 = vmatmul.bf16.gmra.mxu0 %v845
      %v889 = vpop.f32.mrf.mxu0
      %v890 = vadd.f32 0.0, %v889
      %v891 = vpop.f32.mrf.mxu0
      %v892 = vadd.f32 0.0, %v891
      %893 = vmatmul.bf16.gmra.mxu0 %v848
      %v894 = vpop.f32.mrf.mxu0
      %v895 = vadd.f32 0.0, %v894
      %v896 = vpop.f32.mrf.mxu0
      %v897 = vadd.f32 0.0, %v896
      %898 = vdwg.mxu0
      %v899 = vadd.f32 %v663, %v860
      %v900 = vadd.f32 %v665, %v862
      %v901 = vadd.f32 %v668, %v865
      %v902 = vadd.f32 %v670, %v867
      %v903 = vadd.f32 %v673, %v870
      %v904 = vadd.f32 %v675, %v872
      %v905 = vadd.f32 %v678, %v875
      %v906 = vadd.f32 %v680, %v877
      %v907 = vadd.f32 %v683, %v880
      %v908 = vadd.f32 %v685, %v882
      %v909 = vadd.f32 %v688, %v885
      %v910 = vadd.f32 %v690, %v887
      %v911 = vadd.f32 %v693, %v890
      %v912 = vadd.f32 %v695, %v892
      %v913 = vadd.f32 %v698, %v895
      %v914 = vadd.f32 %v700, %v897
      %s915 = sadd.s32 %s235, 1
      %s916 = smul.u32 %s915, 3
      %s917 = smul.addr %s916, 4
      %s918 = scalar_lea.vmem %s218, %s917
      %v919 = vld [vmem:[%s918] sm:$0xf]
      %v920 = vld [vmem:[%s918 + $0x4] sm:$0xf]
      %v921 = vld [vmem:[%s918 + $0xc] sm:$0xf]
      %v922 = vld [vmem:[%s918 + $0x10] sm:$0xf]
      %v923 = vld [vmem:[%s918 + $0x18] sm:$0xf]
      %v924 = vld [vmem:[%s918 + $0x1c] sm:$0xf]
      %v925 = vld [vmem:[%s918 + $0x24] sm:$0xf]
      %v926 = vld [vmem:[%s918 + $0x28] sm:$0xf]
      %v927 = vld [vmem:[%s918 + $0x30] sm:$0xf]
      %v928 = vld [vmem:[%s918 + $0x34] sm:$0xf]
      %v929 = vld [vmem:[%s918 + $0x3c] sm:$0xf]
      %v930 = vld [vmem:[%s918 + $0x40] sm:$0xf]
      %v931 = vld [vmem:[%s918 + $0x48] sm:$0xf]
      %v932 = vld [vmem:[%s918 + $0x4c] sm:$0xf]
      %v933 = vld [vmem:[%s918 + $0x54] sm:$0xf]
      %v934 = vld [vmem:[%s918 + $0x58] sm:$0xf]
      %s935 = scalar_lea.vmem %s1, 48
      %v936 = vld [vmem:[%s935] sm:$0xf]
      %v937 = vld [vmem:[%s935 + $0x4] sm:$0xf]
      %v938 = vld [vmem:[%s935 + $0x8] sm:$0xf]
      %v939 = vld [vmem:[%s935 + $0xc] sm:$0xf]
      %v956 = vunpack.c.l.b16 %v919
      %v957 = vunpack.c.l.b16 %v920
      %v958 = vunpack.c.l.b16 %v921
      %v959 = vunpack.c.l.b16 %v922
      %v960 = vunpack.c.l.b16 %v923
      %v961 = vunpack.c.l.b16 %v924
      %v962 = vunpack.c.l.b16 %v925
      %v963 = vunpack.c.l.b16 %v926
      %v964 = vunpack.c.l.b16 %v927
      %v965 = vunpack.c.l.b16 %v928
      %v966 = vunpack.c.l.b16 %v929
      %v967 = vunpack.c.l.b16 %v930
      %v968 = vunpack.c.l.b16 %v931
      %v969 = vunpack.c.l.b16 %v932
      %v970 = vunpack.c.l.b16 %v933
      %v971 = vunpack.c.l.b16 %v934
      %v972 = vpack.c.b16 %v957, %v956
      %v973 = vpack.c.b16 %v959, %v958
      %v974 = vpack.c.b16 %v961, %v960
      %v975 = vpack.c.b16 %v963, %v962
      %v976 = vpack.c.b16 %v965, %v964
      %v977 = vpack.c.b16 %v967, %v966
      %v978 = vpack.c.b16 %v969, %v968
      %v979 = vpack.c.b16 %v971, %v970
      %v984 = vunpack.c.l.b16 %v936
      %v985 = vunpack.c.l.b16 %v937
      %v986 = vunpack.c.l.b16 %v938
      %v987 = vunpack.c.l.b16 %v939
      %v988 = vpack.c.b16 %v985, %v984
      %v989 = vpack.c.b16 %v987, %v986
      %v993 = vsel %vm503, %v972, 0
      %v996 = vsel %vm503, %v973, 0
      %v999 = vsel %vm503, %v974, 0
      %v1002 = vsel %vm503, %v975, 0
      %v1005 = vsel %vm503, %v976, 0
      %v1008 = vsel %vm503, %v977, 0
      %v1011 = vsel %vm503, %v978, 0
      %v1014 = vsel %vm503, %v979, 0
      %1016 = vmatpush.bf16.msra.mxu0 0
      %1017 = vmatpush.bf16.msra.mxu0 0
      %1018 = vmatpush.bf16.msra.mxu0 0
      %1019 = vmatpush.bf16.msra.mxu0 0
      %1020 = vmatpush.bf16.msra.mxu0 0
      %1021 = vmatpush.bf16.msra.mxu0 0
      %1022 = vmatpush.bf16.msra.mxu0 %v989
      %1023 = vmatpush.bf16.msra.mxu0 %v988
      %1024 = vmatmul.bf16.gmra.mxu0 %v993
      %v1025 = vpop.f32.mrf.mxu0
      %v1026 = vadd.f32 0.0, %v1025
      %v1027 = vpop.f32.mrf.mxu0
      %v1028 = vadd.f32 0.0, %v1027
      %1029 = vmatmul.bf16.gmra.mxu0 %v996
      %v1030 = vpop.f32.mrf.mxu0
      %v1031 = vadd.f32 0.0, %v1030
      %v1032 = vpop.f32.mrf.mxu0
      %v1033 = vadd.f32 0.0, %v1032
      %1034 = vmatmul.bf16.gmra.mxu0 %v999
      %v1035 = vpop.f32.mrf.mxu0
      %v1036 = vadd.f32 0.0, %v1035
      %v1037 = vpop.f32.mrf.mxu0
      %v1038 = vadd.f32 0.0, %v1037
      %1039 = vmatmul.bf16.gmra.mxu0 %v1002
      %v1040 = vpop.f32.mrf.mxu0
      %v1041 = vadd.f32 0.0, %v1040
      %v1042 = vpop.f32.mrf.mxu0
      %v1043 = vadd.f32 0.0, %v1042
      %1044 = vmatmul.bf16.gmra.mxu0 %v1005
      %v1045 = vpop.f32.mrf.mxu0
      %v1046 = vadd.f32 0.0, %v1045
      %v1047 = vpop.f32.mrf.mxu0
      %v1048 = vadd.f32 0.0, %v1047
      %1049 = vmatmul.bf16.gmra.mxu0 %v1008
      %v1050 = vpop.f32.mrf.mxu0
      %v1051 = vadd.f32 0.0, %v1050
      %v1052 = vpop.f32.mrf.mxu0
      %v1053 = vadd.f32 0.0, %v1052
      %1054 = vmatmul.bf16.gmra.mxu0 %v1011
      %v1055 = vpop.f32.mrf.mxu0
      %v1056 = vadd.f32 0.0, %v1055
      %v1057 = vpop.f32.mrf.mxu0
      %v1058 = vadd.f32 0.0, %v1057
      %1059 = vmatmul.bf16.gmra.mxu0 %v1014
      %v1060 = vpop.f32.mrf.mxu0
      %v1061 = vadd.f32 0.0, %v1060
      %v1062 = vpop.f32.mrf.mxu0
      %v1063 = vadd.f32 0.0, %v1062
      %1064 = vdwg.mxu0
      %v1065 = vadd.f32 %v899, %v1026
      %v1066 = vadd.f32 %v900, %v1028
      %v1067 = vadd.f32 %v901, %v1031
      %v1068 = vadd.f32 %v902, %v1033
      %v1069 = vadd.f32 %v903, %v1036
      %v1070 = vadd.f32 %v904, %v1038
      %v1071 = vadd.f32 %v905, %v1041
      %v1072 = vadd.f32 %v906, %v1043
      %v1073 = vadd.f32 %v907, %v1046
      %v1074 = vadd.f32 %v908, %v1048
      %v1075 = vadd.f32 %v909, %v1051
      %v1076 = vadd.f32 %v910, %v1053
      %v1077 = vadd.f32 %v911, %v1056
      %v1078 = vadd.f32 %v912, %v1058
      %v1079 = vadd.f32 %v913, %v1061
      %v1080 = vadd.f32 %v914, %v1063
      %v1081 = vld [vmem:[%s918] sm:$0xf]
      %v1082 = vld [vmem:[%s918 + $0x4] sm:$0xf]
      %v1083 = vld [vmem:[%s918 + $0x8] sm:$0x1]
      %v1084 = vld [vmem:[%s918 + $0xc] sm:$0xf]
      %v1085 = vld [vmem:[%s918 + $0x10] sm:$0xf]
      %v1086 = vld [vmem:[%s918 + $0x14] sm:$0x1]
      %v1087 = vld [vmem:[%s918 + $0x18] sm:$0xf]
      %v1088 = vld [vmem:[%s918 + $0x1c] sm:$0xf]
      %v1089 = vld [vmem:[%s918 + $0x20] sm:$0x1]
      %v1090 = vld [vmem:[%s918 + $0x24] sm:$0xf]
      %v1091 = vld [vmem:[%s918 + $0x28] sm:$0xf]
      %v1092 = vld [vmem:[%s918 + $0x2c] sm:$0x1]
      %v1093 = vld [vmem:[%s918 + $0x30] sm:$0xf]
      %v1094 = vld [vmem:[%s918 + $0x34] sm:$0xf]
      %v1095 = vld [vmem:[%s918 + $0x38] sm:$0x1]
      %v1096 = vld [vmem:[%s918 + $0x3c] sm:$0xf]
      %v1097 = vld [vmem:[%s918 + $0x40] sm:$0xf]
      %v1098 = vld [vmem:[%s918 + $0x44] sm:$0x1]
      %v1099 = vld [vmem:[%s918 + $0x48] sm:$0xf]
      %v1100 = vld [vmem:[%s918 + $0x4c] sm:$0xf]
      %v1101 = vld [vmem:[%s918 + $0x50] sm:$0x1]
      %v1102 = vld [vmem:[%s918 + $0x54] sm:$0xf]
      %v1103 = vld [vmem:[%s918 + $0x58] sm:$0xf]
      %v1104 = vld [vmem:[%s918 + $0x5c] sm:$0x1]
      %v1106 = vshrl.u32 %v1081, 16
      %v1108 = vrot.slane %v1106, 4
      %v1109 = vshll.u32 %v1081, 16
      %v1111 = vrot.slane %v1109, 5
      %v1112 = vor.u32 %v1108, %v1111
      %v1113 = vrot.slane %v1112, 4
      %v1115 = vshll.u32 %v1082, 16
      %v1117 = vrot.slane %v1115, 5
      %v1118 = vsel %vm269, %v1113, %v1117
      %v1119 = vshrl.u32 %v1082, 16
      %v1121 = vrot.slane %v1119, 4
      %v1122 = vor.u32 %v1121, %v1117
      %v1123 = vrot.slane %v1122, 4
      %v1125 = vshll.u32 %v1083, 16
      %v1127 = vrot.slane %v1125, 5
      %v1128 = vsel %vm269, %v1123, %v1127
      %v1130 = vshrl.u32 %v1084, 16
      %v1132 = vrot.slane %v1130, 4
      %v1133 = vshll.u32 %v1084, 16
      %v1135 = vrot.slane %v1133, 5
      %v1136 = vor.u32 %v1132, %v1135
      %v1137 = vrot.slane %v1136, 4
      %v1139 = vshll.u32 %v1085, 16
      %v1141 = vrot.slane %v1139, 5
      %v1142 = vsel %vm269, %v1137, %v1141
      %v1143 = vshrl.u32 %v1085, 16
      %v1145 = vrot.slane %v1143, 4
      %v1146 = vor.u32 %v1145, %v1141
      %v1147 = vrot.slane %v1146, 4
      %v1149 = vshll.u32 %v1086, 16
      %v1151 = vrot.slane %v1149, 5
      %v1152 = vsel %vm269, %v1147, %v1151
      %v1154 = vshrl.u32 %v1087, 16
      %v1156 = vrot.slane %v1154, 4
      %v1157 = vshll.u32 %v1087, 16
      %v1159 = vrot.slane %v1157, 5
      %v1160 = vor.u32 %v1156, %v1159
      %v1161 = vrot.slane %v1160, 4
      %v1163 = vshll.u32 %v1088, 16
      %v1165 = vrot.slane %v1163, 5
      %v1166 = vsel %vm269, %v1161, %v1165
      %v1167 = vshrl.u32 %v1088, 16
      %v1169 = vrot.slane %v1167, 4
      %v1170 = vor.u32 %v1169, %v1165
      %v1171 = vrot.slane %v1170, 4
      %v1173 = vshll.u32 %v1089, 16
      %v1175 = vrot.slane %v1173, 5
      %v1176 = vsel %vm269, %v1171, %v1175
      %v1178 = vshrl.u32 %v1090, 16
      %v1180 = vrot.slane %v1178, 4
      %v1181 = vshll.u32 %v1090, 16
      %v1183 = vrot.slane %v1181, 5
      %v1184 = vor.u32 %v1180, %v1183
      %v1185 = vrot.slane %v1184, 4
      %v1187 = vshll.u32 %v1091, 16
      %v1189 = vrot.slane %v1187, 5
      %v1190 = vsel %vm269, %v1185, %v1189
      %v1191 = vshrl.u32 %v1091, 16
      %v1193 = vrot.slane %v1191, 4
      %v1194 = vor.u32 %v1193, %v1189
      %v1195 = vrot.slane %v1194, 4
      %v1197 = vshll.u32 %v1092, 16
      %v1199 = vrot.slane %v1197, 5
      %v1200 = vsel %vm269, %v1195, %v1199
      %v1202 = vshrl.u32 %v1093, 16
      %v1204 = vrot.slane %v1202, 4
      %v1205 = vshll.u32 %v1093, 16
      %v1207 = vrot.slane %v1205, 5
      %v1208 = vor.u32 %v1204, %v1207
      %v1209 = vrot.slane %v1208, 4
      %v1211 = vshll.u32 %v1094, 16
      %v1213 = vrot.slane %v1211, 5
      %v1214 = vsel %vm269, %v1209, %v1213
      %v1215 = vshrl.u32 %v1094, 16
      %v1217 = vrot.slane %v1215, 4
      %v1218 = vor.u32 %v1217, %v1213
      %v1219 = vrot.slane %v1218, 4
      %v1221 = vshll.u32 %v1095, 16
      %v1223 = vrot.slane %v1221, 5
      %v1224 = vsel %vm269, %v1219, %v1223
      %v1226 = vshrl.u32 %v1096, 16
      %v1228 = vrot.slane %v1226, 4
      %v1229 = vshll.u32 %v1096, 16
      %v1231 = vrot.slane %v1229, 5
      %v1232 = vor.u32 %v1228, %v1231
      %v1233 = vrot.slane %v1232, 4
      %v1235 = vshll.u32 %v1097, 16
      %v1237 = vrot.slane %v1235, 5
      %v1238 = vsel %vm269, %v1233, %v1237
      %v1239 = vshrl.u32 %v1097, 16
      %v1241 = vrot.slane %v1239, 4
      %v1242 = vor.u32 %v1241, %v1237
      %v1243 = vrot.slane %v1242, 4
      %v1245 = vshll.u32 %v1098, 16
      %v1247 = vrot.slane %v1245, 5
      %v1248 = vsel %vm269, %v1243, %v1247
      %v1250 = vshrl.u32 %v1099, 16
      %v1252 = vrot.slane %v1250, 4
      %v1253 = vshll.u32 %v1099, 16
      %v1255 = vrot.slane %v1253, 5
      %v1256 = vor.u32 %v1252, %v1255
      %v1257 = vrot.slane %v1256, 4
      %v1259 = vshll.u32 %v1100, 16
      %v1261 = vrot.slane %v1259, 5
      %v1262 = vsel %vm269, %v1257, %v1261
      %v1263 = vshrl.u32 %v1100, 16
      %v1265 = vrot.slane %v1263, 4
      %v1266 = vor.u32 %v1265, %v1261
      %v1267 = vrot.slane %v1266, 4
      %v1269 = vshll.u32 %v1101, 16
      %v1271 = vrot.slane %v1269, 5
      %v1272 = vsel %vm269, %v1267, %v1271
      %v1274 = vshrl.u32 %v1102, 16
      %v1276 = vrot.slane %v1274, 4
      %v1277 = vshll.u32 %v1102, 16
      %v1279 = vrot.slane %v1277, 5
      %v1280 = vor.u32 %v1276, %v1279
      %v1281 = vrot.slane %v1280, 4
      %v1283 = vshll.u32 %v1103, 16
      %v1285 = vrot.slane %v1283, 5
      %v1286 = vsel %vm269, %v1281, %v1285
      %v1287 = vshrl.u32 %v1103, 16
      %v1289 = vrot.slane %v1287, 4
      %v1290 = vor.u32 %v1289, %v1285
      %v1291 = vrot.slane %v1290, 4
      %v1293 = vshll.u32 %v1104, 16
      %v1295 = vrot.slane %v1293, 5
      %v1296 = vsel %vm269, %v1291, %v1295
      %s1297 = scalar_lea.vmem %s1, 64
      %v1298 = vld [vmem:[%s1297] sm:$0xf]
      %v1299 = vld [vmem:[%s1297 + $0x4] sm:$0xf]
      %v1300 = vld [vmem:[%s1297 + $0x8] sm:$0xf]
      %v1301 = vld [vmem:[%s1297 + $0xc] sm:$0xf]
      %v1302 = vunpack.c.l.b16 %v1118
      %v1303 = vunpack.c.l.b16 %v1128
      %v1304 = vunpack.c.l.b16 %v1142
      %v1305 = vunpack.c.l.b16 %v1152
      %v1306 = vunpack.c.l.b16 %v1166
      %v1307 = vunpack.c.l.b16 %v1176
      %v1308 = vunpack.c.l.b16 %v1190
      %v1309 = vunpack.c.l.b16 %v1200
      %v1310 = vunpack.c.l.b16 %v1214
      %v1311 = vunpack.c.l.b16 %v1224
      %v1312 = vunpack.c.l.b16 %v1238
      %v1313 = vunpack.c.l.b16 %v1248
      %v1314 = vunpack.c.l.b16 %v1262
      %v1315 = vunpack.c.l.b16 %v1272
      %v1316 = vunpack.c.l.b16 %v1286
      %v1317 = vunpack.c.l.b16 %v1296
      %v1318 = vpack.c.b16 %v1303, %v1302
      %v1319 = vpack.c.b16 %v1305, %v1304
      %v1320 = vpack.c.b16 %v1307, %v1306
      %v1321 = vpack.c.b16 %v1309, %v1308
      %v1322 = vpack.c.b16 %v1311, %v1310
      %v1323 = vpack.c.b16 %v1313, %v1312
      %v1324 = vpack.c.b16 %v1315, %v1314
      %v1325 = vpack.c.b16 %v1317, %v1316
      %v1330 = vunpack.c.l.b16 %v1298
      %v1331 = vunpack.c.l.b16 %v1299
      %v1332 = vunpack.c.l.b16 %v1300
      %v1333 = vunpack.c.l.b16 %v1301
      %v1334 = vpack.c.b16 %v1331, %v1330
      %v1335 = vpack.c.b16 %v1333, %v1332
      %v1339 = vsel %vm503, %v1318, 0
      %v1342 = vsel %vm503, %v1319, 0
      %v1345 = vsel %vm503, %v1320, 0
      %v1348 = vsel %vm503, %v1321, 0
      %v1351 = vsel %vm503, %v1322, 0
      %v1354 = vsel %vm503, %v1323, 0
      %v1357 = vsel %vm503, %v1324, 0
      %v1360 = vsel %vm503, %v1325, 0
      %1362 = vmatpush.bf16.msra.mxu0 0
      %1363 = vmatpush.bf16.msra.mxu0 0
      %1364 = vmatpush.bf16.msra.mxu0 0
      %1365 = vmatpush.bf16.msra.mxu0 0
      %1366 = vmatpush.bf16.msra.mxu0 0
      %1367 = vmatpush.bf16.msra.mxu0 0
      %1368 = vmatpush.bf16.msra.mxu0 %v1335
      %1369 = vmatpush.bf16.msra.mxu0 %v1334
      %1370 = vmatmul.bf16.gmra.mxu0 %v1339
      %v1371 = vpop.f32.mrf.mxu0
      %v1372 = vadd.f32 0.0, %v1371
      %v1373 = vpop.f32.mrf.mxu0
      %v1374 = vadd.f32 0.0, %v1373
      %1375 = vmatmul.bf16.gmra.mxu0 %v1342
      %v1376 = vpop.f32.mrf.mxu0
      %v1377 = vadd.f32 0.0, %v1376
      %v1378 = vpop.f32.mrf.mxu0
      %v1379 = vadd.f32 0.0, %v1378
      %1380 = vmatmul.bf16.gmra.mxu0 %v1345
      %v1381 = vpop.f32.mrf.mxu0
      %v1382 = vadd.f32 0.0, %v1381
      %v1383 = vpop.f32.mrf.mxu0
      %v1384 = vadd.f32 0.0, %v1383
      %1385 = vmatmul.bf16.gmra.mxu0 %v1348
      %v1386 = vpop.f32.mrf.mxu0
      %v1387 = vadd.f32 0.0, %v1386
      %v1388 = vpop.f32.mrf.mxu0
      %v1389 = vadd.f32 0.0, %v1388
      %1390 = vmatmul.bf16.gmra.mxu0 %v1351
      %v1391 = vpop.f32.mrf.mxu0
      %v1392 = vadd.f32 0.0, %v1391
      %v1393 = vpop.f32.mrf.mxu0
      %v1394 = vadd.f32 0.0, %v1393
      %1395 = vmatmul.bf16.gmra.mxu0 %v1354
      %v1396 = vpop.f32.mrf.mxu0
      %v1397 = vadd.f32 0.0, %v1396
      %v1398 = vpop.f32.mrf.mxu0
      %v1399 = vadd.f32 0.0, %v1398
      %1400 = vmatmul.bf16.gmra.mxu0 %v1357
      %v1401 = vpop.f32.mrf.mxu0
      %v1402 = vadd.f32 0.0, %v1401
      %v1403 = vpop.f32.mrf.mxu0
      %v1404 = vadd.f32 0.0, %v1403
      %1405 = vmatmul.bf16.gmra.mxu0 %v1360
      %v1406 = vpop.f32.mrf.mxu0
      %v1407 = vadd.f32 0.0, %v1406
      %v1408 = vpop.f32.mrf.mxu0
      %v1409 = vadd.f32 0.0, %v1408
      %1410 = vdwg.mxu0
      %v1411 = vadd.f32 %v1065, %v1372
      %v1412 = vadd.f32 %v1066, %v1374
      %v1413 = vadd.f32 %v1067, %v1377
      %v1414 = vadd.f32 %v1068, %v1379
      %v1415 = vadd.f32 %v1069, %v1382
      %v1416 = vadd.f32 %v1070, %v1384
      %v1417 = vadd.f32 %v1071, %v1387
      %v1418 = vadd.f32 %v1072, %v1389
      %v1419 = vadd.f32 %v1073, %v1392
      %v1420 = vadd.f32 %v1074, %v1394
      %v1421 = vadd.f32 %v1075, %v1397
      %v1422 = vadd.f32 %v1076, %v1399
      %v1423 = vadd.f32 %v1077, %v1402
      %v1424 = vadd.f32 %v1078, %v1404
      %v1425 = vadd.f32 %v1079, %v1407
      %v1426 = vadd.f32 %v1080, %v1409
      %v1427 = vld [vmem:[%s918] sm:$0xe]
      %v1428 = vld [vmem:[%s918 + $0xc] sm:$0xe]
      %v1429 = vld [vmem:[%s918 + $0x18] sm:$0xe]
      %v1430 = vld [vmem:[%s918 + $0x24] sm:$0xe]
      %v1431 = vld [vmem:[%s918 + $0x30] sm:$0xe]
      %v1432 = vld [vmem:[%s918 + $0x3c] sm:$0xe]
      %v1433 = vld [vmem:[%s918 + $0x48] sm:$0xe]
      %v1434 = vld [vmem:[%s918 + $0x54] sm:$0xe]
      %v1459 = vrot.slane %v1427, 5
      %v1460 = vrot.slane %v1459, 4
      %v1461 = vrot.slane %v1082, 5
      %v1462 = vsel %vm728, %v1460, %v1461
      %v1463 = vrot.slane %v1461, 4
      %v1464 = vrot.slane %v1083, 5
      %v1465 = vsel %vm728, %v1463, %v1464
      %v1466 = vrot.slane %v1428, 5
      %v1467 = vrot.slane %v1466, 4
      %v1468 = vrot.slane %v1085, 5
      %v1469 = vsel %vm728, %v1467, %v1468
      %v1470 = vrot.slane %v1468, 4
      %v1471 = vrot.slane %v1086, 5
      %v1472 = vsel %vm728, %v1470, %v1471
      %v1473 = vrot.slane %v1429, 5
      %v1474 = vrot.slane %v1473, 4
      %v1475 = vrot.slane %v1088, 5
      %v1476 = vsel %vm728, %v1474, %v1475
      %v1477 = vrot.slane %v1475, 4
      %v1478 = vrot.slane %v1089, 5
      %v1479 = vsel %vm728, %v1477, %v1478
      %v1480 = vrot.slane %v1430, 5
      %v1481 = vrot.slane %v1480, 4
      %v1482 = vrot.slane %v1091, 5
      %v1483 = vsel %vm728, %v1481, %v1482
      %v1484 = vrot.slane %v1482, 4
      %v1485 = vrot.slane %v1092, 5
      %v1486 = vsel %vm728, %v1484, %v1485
      %v1487 = vrot.slane %v1431, 5
      %v1488 = vrot.slane %v1487, 4
      %v1489 = vrot.slane %v1094, 5
      %v1490 = vsel %vm728, %v1488, %v1489
      %v1491 = vrot.slane %v1489, 4
      %v1492 = vrot.slane %v1095, 5
      %v1493 = vsel %vm728, %v1491, %v1492
      %v1494 = vrot.slane %v1432, 5
      %v1495 = vrot.slane %v1494, 4
      %v1496 = vrot.slane %v1097, 5
      %v1497 = vsel %vm728, %v1495, %v1496
      %v1498 = vrot.slane %v1496, 4
      %v1499 = vrot.slane %v1098, 5
      %v1500 = vsel %vm728, %v1498, %v1499
      %v1501 = vrot.slane %v1433, 5
      %v1502 = vrot.slane %v1501, 4
      %v1503 = vrot.slane %v1100, 5
      %v1504 = vsel %vm728, %v1502, %v1503
      %v1505 = vrot.slane %v1503, 4
      %v1506 = vrot.slane %v1101, 5
      %v1507 = vsel %vm728, %v1505, %v1506
      %v1508 = vrot.slane %v1434, 5
      %v1509 = vrot.slane %v1508, 4
      %v1510 = vrot.slane %v1103, 5
      %v1511 = vsel %vm728, %v1509, %v1510
      %v1512 = vrot.slane %v1510, 4
      %v1513 = vrot.slane %v1104, 5
      %v1514 = vsel %vm728, %v1512, %v1513
      %s1515 = scalar_lea.vmem %s1, 80
      %v1516 = vld [vmem:[%s1515] sm:$0xf]
      %v1517 = vld [vmem:[%s1515 + $0x4] sm:$0xf]
      %v1518 = vld [vmem:[%s1515 + $0x8] sm:$0xf]
      %v1519 = vld [vmem:[%s1515 + $0xc] sm:$0xf]
      %v1520 = vunpack.c.l.b16 %v1462
      %v1521 = vunpack.c.l.b16 %v1465
      %v1522 = vunpack.c.l.b16 %v1469
      %v1523 = vunpack.c.l.b16 %v1472
      %v1524 = vunpack.c.l.b16 %v1476
      %v1525 = vunpack.c.l.b16 %v1479
      %v1526 = vunpack.c.l.b16 %v1483
      %v1527 = vunpack.c.l.b16 %v1486
      %v1528 = vunpack.c.l.b16 %v1490
      %v1529 = vunpack.c.l.b16 %v1493
      %v1530 = vunpack.c.l.b16 %v1497
      %v1531 = vunpack.c.l.b16 %v1500
      %v1532 = vunpack.c.l.b16 %v1504
      %v1533 = vunpack.c.l.b16 %v1507
      %v1534 = vunpack.c.l.b16 %v1511
      %v1535 = vunpack.c.l.b16 %v1514
      %v1536 = vpack.c.b16 %v1521, %v1520
      %v1537 = vpack.c.b16 %v1523, %v1522
      %v1538 = vpack.c.b16 %v1525, %v1524
      %v1539 = vpack.c.b16 %v1527, %v1526
      %v1540 = vpack.c.b16 %v1529, %v1528
      %v1541 = vpack.c.b16 %v1531, %v1530
      %v1542 = vpack.c.b16 %v1533, %v1532
      %v1543 = vpack.c.b16 %v1535, %v1534
      %v1548 = vunpack.c.l.b16 %v1516
      %v1549 = vunpack.c.l.b16 %v1517
      %v1550 = vunpack.c.l.b16 %v1518
      %v1551 = vunpack.c.l.b16 %v1519
      %v1552 = vpack.c.b16 %v1549, %v1548
      %v1553 = vpack.c.b16 %v1551, %v1550
      %v1557 = vsel %vm503, %v1536, 0
      %v1560 = vsel %vm503, %v1537, 0
      %v1563 = vsel %vm503, %v1538, 0
      %v1566 = vsel %vm503, %v1539, 0
      %v1569 = vsel %vm503, %v1540, 0
      %v1572 = vsel %vm503, %v1541, 0
      %v1575 = vsel %vm503, %v1542, 0
      %v1578 = vsel %vm503, %v1543, 0
      %1580 = vmatpush.bf16.msra.mxu0 0
      %1581 = vmatpush.bf16.msra.mxu0 0
      %1582 = vmatpush.bf16.msra.mxu0 0
      %1583 = vmatpush.bf16.msra.mxu0 0
      %1584 = vmatpush.bf16.msra.mxu0 0
      %1585 = vmatpush.bf16.msra.mxu0 0
      %1586 = vmatpush.bf16.msra.mxu0 %v1553
      %1587 = vmatpush.bf16.msra.mxu0 %v1552
      %1588 = vmatmul.bf16.gmra.mxu0 %v1557
      %v1589 = vpop.f32.mrf.mxu0
      %v1590 = vadd.f32 0.0, %v1589
      %v1591 = vpop.f32.mrf.mxu0
      %v1592 = vadd.f32 0.0, %v1591
      %1593 = vmatmul.bf16.gmra.mxu0 %v1560
      %v1594 = vpop.f32.mrf.mxu0
      %v1595 = vadd.f32 0.0, %v1594
      %v1596 = vpop.f32.mrf.mxu0
      %v1597 = vadd.f32 0.0, %v1596
      %1598 = vmatmul.bf16.gmra.mxu0 %v1563
      %v1599 = vpop.f32.mrf.mxu0
      %v1600 = vadd.f32 0.0, %v1599
      %v1601 = vpop.f32.mrf.mxu0
      %v1602 = vadd.f32 0.0, %v1601
      %1603 = vmatmul.bf16.gmra.mxu0 %v1566
      %v1604 = vpop.f32.mrf.mxu0
      %v1605 = vadd.f32 0.0, %v1604
      %v1606 = vpop.f32.mrf.mxu0
      %v1607 = vadd.f32 0.0, %v1606
      %1608 = vmatmul.bf16.gmra.mxu0 %v1569
      %v1609 = vpop.f32.mrf.mxu0
      %v1610 = vadd.f32 0.0, %v1609
      %v1611 = vpop.f32.mrf.mxu0
      %v1612 = vadd.f32 0.0, %v1611
      %1613 = vmatmul.bf16.gmra.mxu0 %v1572
      %v1614 = vpop.f32.mrf.mxu0
      %v1615 = vadd.f32 0.0, %v1614
      %v1616 = vpop.f32.mrf.mxu0
      %v1617 = vadd.f32 0.0, %v1616
      %1618 = vmatmul.bf16.gmra.mxu0 %v1575
      %v1619 = vpop.f32.mrf.mxu0
      %v1620 = vadd.f32 0.0, %v1619
      %v1621 = vpop.f32.mrf.mxu0
      %v1622 = vadd.f32 0.0, %v1621
      %1623 = vmatmul.bf16.gmra.mxu0 %v1578
      %v1624 = vpop.f32.mrf.mxu0
      %v1625 = vadd.f32 0.0, %v1624
      %v1626 = vpop.f32.mrf.mxu0
      %v1627 = vadd.f32 0.0, %v1626
      %1628 = vdwg.mxu0
      %v1629 = vadd.f32 %v1411, %v1590
      %v1630 = vadd.f32 %v1412, %v1592
      %v1631 = vadd.f32 %v1413, %v1595
      %v1632 = vadd.f32 %v1414, %v1597
      %v1633 = vadd.f32 %v1415, %v1600
      %v1634 = vadd.f32 %v1416, %v1602
      %v1635 = vadd.f32 %v1417, %v1605
      %v1636 = vadd.f32 %v1418, %v1607
      %v1637 = vadd.f32 %v1419, %v1610
      %v1638 = vadd.f32 %v1420, %v1612
      %v1639 = vadd.f32 %v1421, %v1615
      %v1640 = vadd.f32 %v1422, %v1617
      %v1641 = vadd.f32 %v1423, %v1620
      %v1642 = vadd.f32 %v1424, %v1622
      %v1643 = vadd.f32 %v1425, %v1625
      %v1644 = vadd.f32 %v1426, %v1627
      %s1645 = sadd.s32 %s235, 2
      %s1646 = smul.u32 %s1645, 3
      %s1647 = smul.addr %s1646, 4
      %s1648 = scalar_lea.vmem %s218, %s1647
      %v1649 = vld [vmem:[%s1648] sm:$0xf]
      %v1650 = vld [vmem:[%s1648 + $0x4] sm:$0xf]
      %v1651 = vld [vmem:[%s1648 + $0xc] sm:$0xf]
      %v1652 = vld [vmem:[%s1648 + $0x10] sm:$0xf]
      %v1653 = vld [vmem:[%s1648 + $0x18] sm:$0xf]
      %v1654 = vld [vmem:[%s1648 + $0x1c] sm:$0xf]
      %v1655 = vld [vmem:[%s1648 + $0x24] sm:$0xf]
      %v1656 = vld [vmem:[%s1648 + $0x28] sm:$0xf]
      %v1657 = vld [vmem:[%s1648 + $0x30] sm:$0xf]
      %v1658 = vld [vmem:[%s1648 + $0x34] sm:$0xf]
      %v1659 = vld [vmem:[%s1648 + $0x3c] sm:$0xf]
      %v1660 = vld [vmem:[%s1648 + $0x40] sm:$0xf]
      %v1661 = vld [vmem:[%s1648 + $0x48] sm:$0xf]
      %v1662 = vld [vmem:[%s1648 + $0x4c] sm:$0xf]
      %v1663 = vld [vmem:[%s1648 + $0x54] sm:$0xf]
      %v1664 = vld [vmem:[%s1648 + $0x58] sm:$0xf]
      %s1665 = scalar_lea.vmem %s1, 96
      %v1666 = vld [vmem:[%s1665] sm:$0xf]
      %v1667 = vld [vmem:[%s1665 + $0x4] sm:$0xf]
      %v1668 = vld [vmem:[%s1665 + $0x8] sm:$0xf]
      %v1669 = vld [vmem:[%s1665 + $0xc] sm:$0xf]
      %v1686 = vunpack.c.l.b16 %v1649
      %v1687 = vunpack.c.l.b16 %v1650
      %v1688 = vunpack.c.l.b16 %v1651
      %v1689 = vunpack.c.l.b16 %v1652
      %v1690 = vunpack.c.l.b16 %v1653
      %v1691 = vunpack.c.l.b16 %v1654
      %v1692 = vunpack.c.l.b16 %v1655
      %v1693 = vunpack.c.l.b16 %v1656
      %v1694 = vunpack.c.l.b16 %v1657
      %v1695 = vunpack.c.l.b16 %v1658
      %v1696 = vunpack.c.l.b16 %v1659
      %v1697 = vunpack.c.l.b16 %v1660
      %v1698 = vunpack.c.l.b16 %v1661
      %v1699 = vunpack.c.l.b16 %v1662
      %v1700 = vunpack.c.l.b16 %v1663
      %v1701 = vunpack.c.l.b16 %v1664
      %v1702 = vpack.c.b16 %v1687, %v1686
      %v1703 = vpack.c.b16 %v1689, %v1688
      %v1704 = vpack.c.b16 %v1691, %v1690
      %v1705 = vpack.c.b16 %v1693, %v1692
      %v1706 = vpack.c.b16 %v1695, %v1694
      %v1707 = vpack.c.b16 %v1697, %v1696
      %v1708 = vpack.c.b16 %v1699, %v1698
      %v1709 = vpack.c.b16 %v1701, %v1700
      %v1714 = vunpack.c.l.b16 %v1666
      %v1715 = vunpack.c.l.b16 %v1667
      %v1716 = vunpack.c.l.b16 %v1668
      %v1717 = vunpack.c.l.b16 %v1669
      %v1718 = vpack.c.b16 %v1715, %v1714
      %v1719 = vpack.c.b16 %v1717, %v1716
      %v1723 = vsel %vm503, %v1702, 0
      %v1726 = vsel %vm503, %v1703, 0
      %v1729 = vsel %vm503, %v1704, 0
      %v1732 = vsel %vm503, %v1705, 0
      %v1735 = vsel %vm503, %v1706, 0
      %v1738 = vsel %vm503, %v1707, 0
      %v1741 = vsel %vm503, %v1708, 0
      %v1744 = vsel %vm503, %v1709, 0
      %1746 = vmatpush.bf16.msra.mxu0 0
      %1747 = vmatpush.bf16.msra.mxu0 0
      %1748 = vmatpush.bf16.msra.mxu0 0
      %1749 = vmatpush.bf16.msra.mxu0 0
      %1750 = vmatpush.bf16.msra.mxu0 0
      %1751 = vmatpush.bf16.msra.mxu0 0
      %1752 = vmatpush.bf16.msra.mxu0 %v1719
      %1753 = vmatpush.bf16.msra.mxu0 %v1718
      %1754 = vmatmul.bf16.gmra.mxu0 %v1723
      %v1755 = vpop.f32.mrf.mxu0
      %v1756 = vadd.f32 0.0, %v1755
      %v1757 = vpop.f32.mrf.mxu0
      %v1758 = vadd.f32 0.0, %v1757
      %1759 = vmatmul.bf16.gmra.mxu0 %v1726
      %v1760 = vpop.f32.mrf.mxu0
      %v1761 = vadd.f32 0.0, %v1760
      %v1762 = vpop.f32.mrf.mxu0
      %v1763 = vadd.f32 0.0, %v1762
      %1764 = vmatmul.bf16.gmra.mxu0 %v1729
      %v1765 = vpop.f32.mrf.mxu0
      %v1766 = vadd.f32 0.0, %v1765
      %v1767 = vpop.f32.mrf.mxu0
      %v1768 = vadd.f32 0.0, %v1767
      %1769 = vmatmul.bf16.gmra.mxu0 %v1732
      %v1770 = vpop.f32.mrf.mxu0
      %v1771 = vadd.f32 0.0, %v1770
      %v1772 = vpop.f32.mrf.mxu0
      %v1773 = vadd.f32 0.0, %v1772
      %1774 = vmatmul.bf16.gmra.mxu0 %v1735
      %v1775 = vpop.f32.mrf.mxu0
      %v1776 = vadd.f32 0.0, %v1775
      %v1777 = vpop.f32.mrf.mxu0
      %v1778 = vadd.f32 0.0, %v1777
      %1779 = vmatmul.bf16.gmra.mxu0 %v1738
      %v1780 = vpop.f32.mrf.mxu0
      %v1781 = vadd.f32 0.0, %v1780
      %v1782 = vpop.f32.mrf.mxu0
      %v1783 = vadd.f32 0.0, %v1782
      %1784 = vmatmul.bf16.gmra.mxu0 %v1741
      %v1785 = vpop.f32.mrf.mxu0
      %v1786 = vadd.f32 0.0, %v1785
      %v1787 = vpop.f32.mrf.mxu0
      %v1788 = vadd.f32 0.0, %v1787
      %1789 = vmatmul.bf16.gmra.mxu0 %v1744
      %v1790 = vpop.f32.mrf.mxu0
      %v1791 = vadd.f32 0.0, %v1790
      %v1792 = vpop.f32.mrf.mxu0
      %v1793 = vadd.f32 0.0, %v1792
      %1794 = vdwg.mxu0
      %v1795 = vadd.f32 %v1629, %v1756
      %v1796 = vadd.f32 %v1630, %v1758
      %v1797 = vadd.f32 %v1631, %v1761
      %v1798 = vadd.f32 %v1632, %v1763
      %v1799 = vadd.f32 %v1633, %v1766
      %v1800 = vadd.f32 %v1634, %v1768
      %v1801 = vadd.f32 %v1635, %v1771
      %v1802 = vadd.f32 %v1636, %v1773
      %v1803 = vadd.f32 %v1637, %v1776
      %v1804 = vadd.f32 %v1638, %v1778
      %v1805 = vadd.f32 %v1639, %v1781
      %v1806 = vadd.f32 %v1640, %v1783
      %v1807 = vadd.f32 %v1641, %v1786
      %v1808 = vadd.f32 %v1642, %v1788
      %v1809 = vadd.f32 %v1643, %v1791
      %v1810 = vadd.f32 %v1644, %v1793
      %v1811 = vld [vmem:[%s1648] sm:$0xf]
      %v1812 = vld [vmem:[%s1648 + $0x4] sm:$0xf]
      %v1813 = vld [vmem:[%s1648 + $0x8] sm:$0x1]
      %v1814 = vld [vmem:[%s1648 + $0xc] sm:$0xf]
      %v1815 = vld [vmem:[%s1648 + $0x10] sm:$0xf]
      %v1816 = vld [vmem:[%s1648 + $0x14] sm:$0x1]
      %v1817 = vld [vmem:[%s1648 + $0x18] sm:$0xf]
      %v1818 = vld [vmem:[%s1648 + $0x1c] sm:$0xf]
      %v1819 = vld [vmem:[%s1648 + $0x20] sm:$0x1]
      %v1820 = vld [vmem:[%s1648 + $0x24] sm:$0xf]
      %v1821 = vld [vmem:[%s1648 + $0x28] sm:$0xf]
      %v1822 = vld [vmem:[%s1648 + $0x2c] sm:$0x1]
      %v1823 = vld [vmem:[%s1648 + $0x30] sm:$0xf]
      %v1824 = vld [vmem:[%s1648 + $0x34] sm:$0xf]
      %v1825 = vld [vmem:[%s1648 + $0x38] sm:$0x1]
      %v1826 = vld [vmem:[%s1648 + $0x3c] sm:$0xf]
      %v1827 = vld [vmem:[%s1648 + $0x40] sm:$0xf]
      %v1828 = vld [vmem:[%s1648 + $0x44] sm:$0x1]
      %v1829 = vld [vmem:[%s1648 + $0x48] sm:$0xf]
      %v1830 = vld [vmem:[%s1648 + $0x4c] sm:$0xf]
      %v1831 = vld [vmem:[%s1648 + $0x50] sm:$0x1]
      %v1832 = vld [vmem:[%s1648 + $0x54] sm:$0xf]
      %v1833 = vld [vmem:[%s1648 + $0x58] sm:$0xf]
      %v1834 = vld [vmem:[%s1648 + $0x5c] sm:$0x1]
      %v1836 = vshrl.u32 %v1811, 16
      %v1838 = vrot.slane %v1836, 4
      %v1839 = vshll.u32 %v1811, 16
      %v1841 = vrot.slane %v1839, 5
      %v1842 = vor.u32 %v1838, %v1841
      %v1843 = vrot.slane %v1842, 4
      %v1845 = vshll.u32 %v1812, 16
      %v1847 = vrot.slane %v1845, 5
      %v1848 = vsel %vm269, %v1843, %v1847
      %v1849 = vshrl.u32 %v1812, 16
      %v1851 = vrot.slane %v1849, 4
      %v1852 = vor.u32 %v1851, %v1847
      %v1853 = vrot.slane %v1852, 4
      %v1855 = vshll.u32 %v1813, 16
      %v1857 = vrot.slane %v1855, 5
      %v1858 = vsel %vm269, %v1853, %v1857
      %v1860 = vshrl.u32 %v1814, 16
      %v1862 = vrot.slane %v1860, 4
      %v1863 = vshll.u32 %v1814, 16
      %v1865 = vrot.slane %v1863, 5
      %v1866 = vor.u32 %v1862, %v1865
      %v1867 = vrot.slane %v1866, 4
      %v1869 = vshll.u32 %v1815, 16
      %v1871 = vrot.slane %v1869, 5
      %v1872 = vsel %vm269, %v1867, %v1871
      %v1873 = vshrl.u32 %v1815, 16
      %v1875 = vrot.slane %v1873, 4
      %v1876 = vor.u32 %v1875, %v1871
      %v1877 = vrot.slane %v1876, 4
      %v1879 = vshll.u32 %v1816, 16
      %v1881 = vrot.slane %v1879, 5
      %v1882 = vsel %vm269, %v1877, %v1881
      %v1884 = vshrl.u32 %v1817, 16
      %v1886 = vrot.slane %v1884, 4
      %v1887 = vshll.u32 %v1817, 16
      %v1889 = vrot.slane %v1887, 5
      %v1890 = vor.u32 %v1886, %v1889
      %v1891 = vrot.slane %v1890, 4
      %v1893 = vshll.u32 %v1818, 16
      %v1895 = vrot.slane %v1893, 5
      %v1896 = vsel %vm269, %v1891, %v1895
      %v1897 = vshrl.u32 %v1818, 16
      %v1899 = vrot.slane %v1897, 4
      %v1900 = vor.u32 %v1899, %v1895
      %v1901 = vrot.slane %v1900, 4
      %v1903 = vshll.u32 %v1819, 16
      %v1905 = vrot.slane %v1903, 5
      %v1906 = vsel %vm269, %v1901, %v1905
      %v1908 = vshrl.u32 %v1820, 16
      %v1910 = vrot.slane %v1908, 4
      %v1911 = vshll.u32 %v1820, 16
      %v1913 = vrot.slane %v1911, 5
      %v1914 = vor.u32 %v1910, %v1913
      %v1915 = vrot.slane %v1914, 4
      %v1917 = vshll.u32 %v1821, 16
      %v1919 = vrot.slane %v1917, 5
      %v1920 = vsel %vm269, %v1915, %v1919
      %v1921 = vshrl.u32 %v1821, 16
      %v1923 = vrot.slane %v1921, 4
      %v1924 = vor.u32 %v1923, %v1919
      %v1925 = vrot.slane %v1924, 4
      %v1927 = vshll.u32 %v1822, 16
      %v1929 = vrot.slane %v1927, 5
      %v1930 = vsel %vm269, %v1925, %v1929
      %v1932 = vshrl.u32 %v1823, 16
      %v1934 = vrot.slane %v1932, 4
      %v1935 = vshll.u32 %v1823, 16
      %v1937 = vrot.slane %v1935, 5
      %v1938 = vor.u32 %v1934, %v1937
      %v1939 = vrot.slane %v1938, 4
      %v1941 = vshll.u32 %v1824, 16
      %v1943 = vrot.slane %v1941, 5
      %v1944 = vsel %vm269, %v1939, %v1943
      %v1945 = vshrl.u32 %v1824, 16
      %v1947 = vrot.slane %v1945, 4
      %v1948 = vor.u32 %v1947, %v1943
      %v1949 = vrot.slane %v1948, 4
      %v1951 = vshll.u32 %v1825, 16
      %v1953 = vrot.slane %v1951, 5
      %v1954 = vsel %vm269, %v1949, %v1953
      %v1956 = vshrl.u32 %v1826, 16
      %v1958 = vrot.slane %v1956, 4
      %v1959 = vshll.u32 %v1826, 16
      %v1961 = vrot.slane %v1959, 5
      %v1962 = vor.u32 %v1958, %v1961
      %v1963 = vrot.slane %v1962, 4
      %v1965 = vshll.u32 %v1827, 16
      %v1967 = vrot.slane %v1965, 5
      %v1968 = vsel %vm269, %v1963, %v1967
      %v1969 = vshrl.u32 %v1827, 16
      %v1971 = vrot.slane %v1969, 4
      %v1972 = vor.u32 %v1971, %v1967
      %v1973 = vrot.slane %v1972, 4
      %v1975 = vshll.u32 %v1828, 16
      %v1977 = vrot.slane %v1975, 5
      %v1978 = vsel %vm269, %v1973, %v1977
      %v1980 = vshrl.u32 %v1829, 16
      %v1982 = vrot.slane %v1980, 4
      %v1983 = vshll.u32 %v1829, 16
      %v1985 = vrot.slane %v1983, 5
      %v1986 = vor.u32 %v1982, %v1985
      %v1987 = vrot.slane %v1986, 4
      %v1989 = vshll.u32 %v1830, 16
      %v1991 = vrot.slane %v1989, 5
      %v1992 = vsel %vm269, %v1987, %v1991
      %v1993 = vshrl.u32 %v1830, 16
      %v1995 = vrot.slane %v1993, 4
      %v1996 = vor.u32 %v1995, %v1991
      %v1997 = vrot.slane %v1996, 4
      %v1999 = vshll.u32 %v1831, 16
      %v2001 = vrot.slane %v1999, 5
      %v2002 = vsel %vm269, %v1997, %v2001
      %v2004 = vshrl.u32 %v1832, 16
      %v2006 = vrot.slane %v2004, 4
      %v2007 = vshll.u32 %v1832, 16
      %v2009 = vrot.slane %v2007, 5
      %v2010 = vor.u32 %v2006, %v2009
      %v2011 = vrot.slane %v2010, 4
      %v2013 = vshll.u32 %v1833, 16
      %v2015 = vrot.slane %v2013, 5
      %v2016 = vsel %vm269, %v2011, %v2015
      %v2017 = vshrl.u32 %v1833, 16
      %v2019 = vrot.slane %v2017, 4
      %v2020 = vor.u32 %v2019, %v2015
      %v2021 = vrot.slane %v2020, 4
      %v2023 = vshll.u32 %v1834, 16
      %v2025 = vrot.slane %v2023, 5
      %v2026 = vsel %vm269, %v2021, %v2025
      %s2027 = scalar_lea.vmem %s1, 112
      %v2028 = vld [vmem:[%s2027] sm:$0xf]
      %v2029 = vld [vmem:[%s2027 + $0x4] sm:$0xf]
      %v2030 = vld [vmem:[%s2027 + $0x8] sm:$0xf]
      %v2031 = vld [vmem:[%s2027 + $0xc] sm:$0xf]
      %v2032 = vunpack.c.l.b16 %v1848
      %v2033 = vunpack.c.l.b16 %v1858
      %v2034 = vunpack.c.l.b16 %v1872
      %v2035 = vunpack.c.l.b16 %v1882
      %v2036 = vunpack.c.l.b16 %v1896
      %v2037 = vunpack.c.l.b16 %v1906
      %v2038 = vunpack.c.l.b16 %v1920
      %v2039 = vunpack.c.l.b16 %v1930
      %v2040 = vunpack.c.l.b16 %v1944
      %v2041 = vunpack.c.l.b16 %v1954
      %v2042 = vunpack.c.l.b16 %v1968
      %v2043 = vunpack.c.l.b16 %v1978
      %v2044 = vunpack.c.l.b16 %v1992
      %v2045 = vunpack.c.l.b16 %v2002
      %v2046 = vunpack.c.l.b16 %v2016
      %v2047 = vunpack.c.l.b16 %v2026
      %v2048 = vpack.c.b16 %v2033, %v2032
      %v2049 = vpack.c.b16 %v2035, %v2034
      %v2050 = vpack.c.b16 %v2037, %v2036
      %v2051 = vpack.c.b16 %v2039, %v2038
      %v2052 = vpack.c.b16 %v2041, %v2040
      %v2053 = vpack.c.b16 %v2043, %v2042
      %v2054 = vpack.c.b16 %v2045, %v2044
      %v2055 = vpack.c.b16 %v2047, %v2046
      %v2060 = vunpack.c.l.b16 %v2028
      %v2061 = vunpack.c.l.b16 %v2029
      %v2062 = vunpack.c.l.b16 %v2030
      %v2063 = vunpack.c.l.b16 %v2031
      %v2064 = vpack.c.b16 %v2061, %v2060
      %v2065 = vpack.c.b16 %v2063, %v2062
      %v2069 = vsel %vm503, %v2048, 0
      %v2072 = vsel %vm503, %v2049, 0
      %v2075 = vsel %vm503, %v2050, 0
      %v2078 = vsel %vm503, %v2051, 0
      %v2081 = vsel %vm503, %v2052, 0
      %v2084 = vsel %vm503, %v2053, 0
      %v2087 = vsel %vm503, %v2054, 0
      %v2090 = vsel %vm503, %v2055, 0
      %2092 = vmatpush.bf16.msra.mxu0 0
      %2093 = vmatpush.bf16.msra.mxu0 0
      %2094 = vmatpush.bf16.msra.mxu0 0
      %2095 = vmatpush.bf16.msra.mxu0 0
      %2096 = vmatpush.bf16.msra.mxu0 0
      %2097 = vmatpush.bf16.msra.mxu0 0
      %2098 = vmatpush.bf16.msra.mxu0 %v2065
      %2099 = vmatpush.bf16.msra.mxu0 %v2064
      %2100 = vmatmul.bf16.gmra.mxu0 %v2069
      %v2101 = vpop.f32.mrf.mxu0
      %v2102 = vadd.f32 0.0, %v2101
      %v2103 = vpop.f32.mrf.mxu0
      %v2104 = vadd.f32 0.0, %v2103
      %2105 = vmatmul.bf16.gmra.mxu0 %v2072
      %v2106 = vpop.f32.mrf.mxu0
      %v2107 = vadd.f32 0.0, %v2106
      %v2108 = vpop.f32.mrf.mxu0
      %v2109 = vadd.f32 0.0, %v2108
      %2110 = vmatmul.bf16.gmra.mxu0 %v2075
      %v2111 = vpop.f32.mrf.mxu0
      %v2112 = vadd.f32 0.0, %v2111
      %v2113 = vpop.f32.mrf.mxu0
      %v2114 = vadd.f32 0.0, %v2113
      %2115 = vmatmul.bf16.gmra.mxu0 %v2078
      %v2116 = vpop.f32.mrf.mxu0
      %v2117 = vadd.f32 0.0, %v2116
      %v2118 = vpop.f32.mrf.mxu0
      %v2119 = vadd.f32 0.0, %v2118
      %2120 = vmatmul.bf16.gmra.mxu0 %v2081
      %v2121 = vpop.f32.mrf.mxu0
      %v2122 = vadd.f32 0.0, %v2121
      %v2123 = vpop.f32.mrf.mxu0
      %v2124 = vadd.f32 0.0, %v2123
      %2125 = vmatmul.bf16.gmra.mxu0 %v2084
      %v2126 = vpop.f32.mrf.mxu0
      %v2127 = vadd.f32 0.0, %v2126
      %v2128 = vpop.f32.mrf.mxu0
      %v2129 = vadd.f32 0.0, %v2128
      %2130 = vmatmul.bf16.gmra.mxu0 %v2087
      %v2131 = vpop.f32.mrf.mxu0
      %v2132 = vadd.f32 0.0, %v2131
      %v2133 = vpop.f32.mrf.mxu0
      %v2134 = vadd.f32 0.0, %v2133
      %2135 = vmatmul.bf16.gmra.mxu0 %v2090
      %v2136 = vpop.f32.mrf.mxu0
      %v2137 = vadd.f32 0.0, %v2136
      %v2138 = vpop.f32.mrf.mxu0
      %v2139 = vadd.f32 0.0, %v2138
      %2140 = vdwg.mxu0
      %v2141 = vadd.f32 %v1795, %v2102
      %v2142 = vadd.f32 %v1796, %v2104
      %v2143 = vadd.f32 %v1797, %v2107
      %v2144 = vadd.f32 %v1798, %v2109
      %v2145 = vadd.f32 %v1799, %v2112
      %v2146 = vadd.f32 %v1800, %v2114
      %v2147 = vadd.f32 %v1801, %v2117
      %v2148 = vadd.f32 %v1802, %v2119
      %v2149 = vadd.f32 %v1803, %v2122
      %v2150 = vadd.f32 %v1804, %v2124
      %v2151 = vadd.f32 %v1805, %v2127
      %v2152 = vadd.f32 %v1806, %v2129
      %v2153 = vadd.f32 %v1807, %v2132
      %v2154 = vadd.f32 %v1808, %v2134
      %v2155 = vadd.f32 %v1809, %v2137
      %v2156 = vadd.f32 %v1810, %v2139
      %v2157 = vld [vmem:[%s1648] sm:$0xe]
      %v2158 = vld [vmem:[%s1648 + $0xc] sm:$0xe]
      %v2159 = vld [vmem:[%s1648 + $0x18] sm:$0xe]
      %v2160 = vld [vmem:[%s1648 + $0x24] sm:$0xe]
      %v2161 = vld [vmem:[%s1648 + $0x30] sm:$0xe]
      %v2162 = vld [vmem:[%s1648 + $0x3c] sm:$0xe]
      %v2163 = vld [vmem:[%s1648 + $0x48] sm:$0xe]
      %v2164 = vld [vmem:[%s1648 + $0x54] sm:$0xe]
      %v2189 = vrot.slane %v2157, 5
      %v2190 = vrot.slane %v2189, 4
      %v2191 = vrot.slane %v1812, 5
      %v2192 = vsel %vm728, %v2190, %v2191
      %v2193 = vrot.slane %v2191, 4
      %v2194 = vrot.slane %v1813, 5
      %v2195 = vsel %vm728, %v2193, %v2194
      %v2196 = vrot.slane %v2158, 5
      %v2197 = vrot.slane %v2196, 4
      %v2198 = vrot.slane %v1815, 5
      %v2199 = vsel %vm728, %v2197, %v2198
      %v2200 = vrot.slane %v2198, 4
      %v2201 = vrot.slane %v1816, 5
      %v2202 = vsel %vm728, %v2200, %v2201
      %v2203 = vrot.slane %v2159, 5
      %v2204 = vrot.slane %v2203, 4
      %v2205 = vrot.slane %v1818, 5
      %v2206 = vsel %vm728, %v2204, %v2205
      %v2207 = vrot.slane %v2205, 4
      %v2208 = vrot.slane %v1819, 5
      %v2209 = vsel %vm728, %v2207, %v2208
      %v2210 = vrot.slane %v2160, 5
      %v2211 = vrot.slane %v2210, 4
      %v2212 = vrot.slane %v1821, 5
      %v2213 = vsel %vm728, %v2211, %v2212
      %v2214 = vrot.slane %v2212, 4
      %v2215 = vrot.slane %v1822, 5
      %v2216 = vsel %vm728, %v2214, %v2215
      %v2217 = vrot.slane %v2161, 5
      %v2218 = vrot.slane %v2217, 4
      %v2219 = vrot.slane %v1824, 5
      %v2220 = vsel %vm728, %v2218, %v2219
      %v2221 = vrot.slane %v2219, 4
      %v2222 = vrot.slane %v1825, 5
      %v2223 = vsel %vm728, %v2221, %v2222
      %v2224 = vrot.slane %v2162, 5
      %v2225 = vrot.slane %v2224, 4
      %v2226 = vrot.slane %v1827, 5
      %v2227 = vsel %vm728, %v2225, %v2226
      %v2228 = vrot.slane %v2226, 4
      %v2229 = vrot.slane %v1828, 5
      %v2230 = vsel %vm728, %v2228, %v2229
      %v2231 = vrot.slane %v2163, 5
      %v2232 = vrot.slane %v2231, 4
      %v2233 = vrot.slane %v1830, 5
      %v2234 = vsel %vm728, %v2232, %v2233
      %v2235 = vrot.slane %v2233, 4
      %v2236 = vrot.slane %v1831, 5
      %v2237 = vsel %vm728, %v2235, %v2236
      %v2238 = vrot.slane %v2164, 5
      %v2239 = vrot.slane %v2238, 4
      %v2240 = vrot.slane %v1833, 5
      %v2241 = vsel %vm728, %v2239, %v2240
      %v2242 = vrot.slane %v2240, 4
      %v2243 = vrot.slane %v1834, 5
      %v2244 = vsel %vm728, %v2242, %v2243
      %s2245 = scalar_lea.vmem %s1, 128
      %v2246 = vld [vmem:[%s2245] sm:$0xf]
      %v2247 = vld [vmem:[%s2245 + $0x4] sm:$0xf]
      %v2248 = vld [vmem:[%s2245 + $0x8] sm:$0xf]
      %v2249 = vld [vmem:[%s2245 + $0xc] sm:$0xf]
      %v2250 = vunpack.c.l.b16 %v2192
      %v2251 = vunpack.c.l.b16 %v2195
      %v2252 = vunpack.c.l.b16 %v2199
      %v2253 = vunpack.c.l.b16 %v2202
      %v2254 = vunpack.c.l.b16 %v2206
      %v2255 = vunpack.c.l.b16 %v2209
      %v2256 = vunpack.c.l.b16 %v2213
      %v2257 = vunpack.c.l.b16 %v2216
      %v2258 = vunpack.c.l.b16 %v2220
      %v2259 = vunpack.c.l.b16 %v2223
      %v2260 = vunpack.c.l.b16 %v2227
      %v2261 = vunpack.c.l.b16 %v2230
      %v2262 = vunpack.c.l.b16 %v2234
      %v2263 = vunpack.c.l.b16 %v2237
      %v2264 = vunpack.c.l.b16 %v2241
      %v2265 = vunpack.c.l.b16 %v2244
      %v2266 = vpack.c.b16 %v2251, %v2250
      %v2267 = vpack.c.b16 %v2253, %v2252
      %v2268 = vpack.c.b16 %v2255, %v2254
      %v2269 = vpack.c.b16 %v2257, %v2256
      %v2270 = vpack.c.b16 %v2259, %v2258
      %v2271 = vpack.c.b16 %v2261, %v2260
      %v2272 = vpack.c.b16 %v2263, %v2262
      %v2273 = vpack.c.b16 %v2265, %v2264
      %v2278 = vunpack.c.l.b16 %v2246
      %v2279 = vunpack.c.l.b16 %v2247
      %v2280 = vunpack.c.l.b16 %v2248
      %v2281 = vunpack.c.l.b16 %v2249
      %v2282 = vpack.c.b16 %v2279, %v2278
      %v2283 = vpack.c.b16 %v2281, %v2280
      %v2287 = vsel %vm503, %v2266, 0
      %v2290 = vsel %vm503, %v2267, 0
      %v2293 = vsel %vm503, %v2268, 0
      %v2296 = vsel %vm503, %v2269, 0
      %v2299 = vsel %vm503, %v2270, 0
      %v2302 = vsel %vm503, %v2271, 0
      %v2305 = vsel %vm503, %v2272, 0
      %v2308 = vsel %vm503, %v2273, 0
      %2310 = vmatpush.bf16.msra.mxu0 0
      %2311 = vmatpush.bf16.msra.mxu0 0
      %2312 = vmatpush.bf16.msra.mxu0 0
      %2313 = vmatpush.bf16.msra.mxu0 0
      %2314 = vmatpush.bf16.msra.mxu0 0
      %2315 = vmatpush.bf16.msra.mxu0 0
      %2316 = vmatpush.bf16.msra.mxu0 %v2283
      %2317 = vmatpush.bf16.msra.mxu0 %v2282
      %2318 = vmatmul.bf16.gmra.mxu0 %v2287
      %v2319 = vpop.f32.mrf.mxu0
      %v2320 = vadd.f32 0.0, %v2319
      %v2321 = vpop.f32.mrf.mxu0
      %v2322 = vadd.f32 0.0, %v2321
      %2323 = vmatmul.bf16.gmra.mxu0 %v2290
      %v2324 = vpop.f32.mrf.mxu0
      %v2325 = vadd.f32 0.0, %v2324
      %v2326 = vpop.f32.mrf.mxu0
      %v2327 = vadd.f32 0.0, %v2326
      %2328 = vmatmul.bf16.gmra.mxu0 %v2293
      %v2329 = vpop.f32.mrf.mxu0
      %v2330 = vadd.f32 0.0, %v2329
      %v2331 = vpop.f32.mrf.mxu0
      %v2332 = vadd.f32 0.0, %v2331
      %2333 = vmatmul.bf16.gmra.mxu0 %v2296
      %v2334 = vpop.f32.mrf.mxu0
      %v2335 = vadd.f32 0.0, %v2334
      %v2336 = vpop.f32.mrf.mxu0
      %v2337 = vadd.f32 0.0, %v2336
      %2338 = vmatmul.bf16.gmra.mxu0 %v2299
      %v2339 = vpop.f32.mrf.mxu0
      %v2340 = vadd.f32 0.0, %v2339
      %v2341 = vpop.f32.mrf.mxu0
      %v2342 = vadd.f32 0.0, %v2341
      %2343 = vmatmul.bf16.gmra.mxu0 %v2302
      %v2344 = vpop.f32.mrf.mxu0
      %v2345 = vadd.f32 0.0, %v2344
      %v2346 = vpop.f32.mrf.mxu0
      %v2347 = vadd.f32 0.0, %v2346
      %2348 = vmatmul.bf16.gmra.mxu0 %v2305
      %v2349 = vpop.f32.mrf.mxu0
      %v2350 = vadd.f32 0.0, %v2349
      %v2351 = vpop.f32.mrf.mxu0
      %v2352 = vadd.f32 0.0, %v2351
      %2353 = vmatmul.bf16.gmra.mxu0 %v2308
      %v2354 = vpop.f32.mrf.mxu0
      %v2355 = vadd.f32 0.0, %v2354
      %v2356 = vpop.f32.mrf.mxu0
      %v2357 = vadd.f32 0.0, %v2356
      %2358 = vdwg.mxu0
      %v2359 = vadd.f32 %v2141, %v2320
      %v2360 = vadd.f32 %v2142, %v2322
      %v2361 = vadd.f32 %v2143, %v2325
      %v2362 = vadd.f32 %v2144, %v2327
      %v2363 = vadd.f32 %v2145, %v2330
      %v2364 = vadd.f32 %v2146, %v2332
      %v2365 = vadd.f32 %v2147, %v2335
      %v2366 = vadd.f32 %v2148, %v2337
      %v2367 = vadd.f32 %v2149, %v2340
      %v2368 = vadd.f32 %v2150, %v2342
      %v2369 = vadd.f32 %v2151, %v2345
      %v2370 = vadd.f32 %v2152, %v2347
      %v2371 = vadd.f32 %v2153, %v2350
      %v2372 = vadd.f32 %v2154, %v2352
      %v2373 = vadd.f32 %v2155, %v2355
      %v2374 = vadd.f32 %v2156, %v2357
      %v2375 = vld [vmem:[%s2] sm:$0x1]
      %v2377 = vperm.slane %v2375, 0
      %v2379 = vadd.f32 %v2359, %v2377
      %v2380 = vadd.f32 %v2360, %v2377
      %v2381 = vadd.f32 %v2361, %v2377
      %v2382 = vadd.f32 %v2362, %v2377
      %v2383 = vadd.f32 %v2363, %v2377
      %v2384 = vadd.f32 %v2364, %v2377
      %v2385 = vadd.f32 %v2365, %v2377
      %v2386 = vadd.f32 %v2366, %v2377
      %v2387 = vadd.f32 %v2367, %v2377
      %v2388 = vadd.f32 %v2368, %v2377
      %v2389 = vadd.f32 %v2369, %v2377
      %v2390 = vadd.f32 %v2370, %v2377
      %v2391 = vadd.f32 %v2371, %v2377
      %v2392 = vadd.f32 %v2372, %v2377
      %v2393 = vadd.f32 %v2373, %v2377
      %v2394 = vadd.f32 %v2374, %v2377
      %2395 = vst.msk [vmem:[%s228] sm:$0xff] %vm503, %v2379
      %2396 = vst.msk [vmem:[%s228 + $0x8] sm:$0xff] %vm503, %v2380
      %2397 = vst.msk [vmem:[%s228 + $0x10] sm:$0xff] %vm503, %v2381
      %2398 = vst.msk [vmem:[%s228 + $0x18] sm:$0xff] %vm503, %v2382
      %2399 = vst.msk [vmem:[%s228 + $0x20] sm:$0xff] %vm503, %v2383
      %2400 = vst.msk [vmem:[%s228 + $0x28] sm:$0xff] %vm503, %v2384
      %2401 = vst.msk [vmem:[%s228 + $0x30] sm:$0xff] %vm503, %v2385
      %2402 = vst.msk [vmem:[%s228 + $0x38] sm:$0xff] %vm503, %v2386
      %2403 = vst.msk [vmem:[%s228 + $0x40] sm:$0xff] %vm503, %v2387
      %2404 = vst.msk [vmem:[%s228 + $0x48] sm:$0xff] %vm503, %v2388
      %2405 = vst.msk [vmem:[%s228 + $0x50] sm:$0xff] %vm503, %v2389
      %2406 = vst.msk [vmem:[%s228 + $0x58] sm:$0xff] %vm503, %v2390
      %2407 = vst.msk [vmem:[%s228 + $0x60] sm:$0xff] %vm503, %v2391
      %2408 = vst.msk [vmem:[%s228 + $0x68] sm:$0xff] %vm503, %v2392
      %2409 = vst.msk [vmem:[%s228 + $0x70] sm:$0xff] %vm503, %v2393
      %2410 = vst.msk [vmem:[%s228 + $0x78] sm:$0xff] %vm503, %v2394
      %p2411 = scmp.eq.s32.totalorder %s21, 0
      // Predicated region
      $region33: #{_lambda_.6} parent=31 // pred_check
        %p2412 = pneg %p2411
      $region34: #{_lambda_.6} parent=31 // pred_check_branch
        %2414 = sbr.rel (%p2412) target = $region36
      $region35: #{_lambda_.6} parent=31 // pred_region
        %vm2415 = vcmask 254976
        %2416 = vst.msk [vmem:[%s233] sm:$0x3] %vm2415, 0.0
      $region36: #{_lambda_.6} parent=31 // pred_fallthru
        _
      %v2417 = vsel %vm503, %v2379, 0.0
      %v2418 = vsel %vm503, %v2380, 0.0
      %v2419 = vadd.f32 %v2417, %v2418
      %v2420 = vsel %vm503, %v2381, 0.0
      %v2421 = vadd.f32 %v2419, %v2420
      %v2422 = vsel %vm503, %v2382, 0.0
      %v2423 = vadd.f32 %v2421, %v2422
      %v2424 = vsel %vm503, %v2383, 0.0
      %v2425 = vadd.f32 %v2423, %v2424
      %v2426 = vsel %vm503, %v2384, 0.0
      %v2427 = vadd.f32 %v2425, %v2426
      %v2428 = vsel %vm503, %v2385, 0.0
      %v2429 = vadd.f32 %v2427, %v2428
      %v2430 = vsel %vm503, %v2386, 0.0
      %v2431 = vadd.f32 %v2429, %v2430
      %v2432 = vsel %vm503, %v2387, 0.0
      %v2433 = vadd.f32 %v2431, %v2432
      %v2434 = vsel %vm503, %v2388, 0.0
      %v2435 = vadd.f32 %v2433, %v2434
      %v2436 = vsel %vm503, %v2389, 0.0
      %v2437 = vadd.f32 %v2435, %v2436
      %v2438 = vsel %vm503, %v2390, 0.0
      %v2439 = vadd.f32 %v2437, %v2438
      %v2440 = vsel %vm503, %v2391, 0.0
      %v2441 = vadd.f32 %v2439, %v2440
      %v2442 = vsel %vm503, %v2392, 0.0
      %v2443 = vadd.f32 %v2441, %v2442
      %v2444 = vsel %vm503, %v2393, 0.0
      %v2445 = vadd.f32 %v2443, %v2444
      %v2446 = vsel %vm503, %v2394, 0.0
      %v2447 = vadd.f32 %v2445, %v2446
      %v2448 = vrot.slane %v2447, 4
      %v2449 = vadd.f32 %v2447, %v2448
      %v2450 = vrot.slane %v2449, 2
      %v2451 = vadd.f32 %v2449, %v2450
      %v2452 = vrot.slane %v2451, 1
      %v2453 = vadd.f32 %v2451, %v2452
      %v2454 = vmul.f32 %v2379, %v2379
      %v2455 = vmul.f32 %v2380, %v2380
      %v2456 = vmul.f32 %v2381, %v2381
      %v2457 = vmul.f32 %v2382, %v2382
      %v2458 = vmul.f32 %v2383, %v2383
      %v2459 = vmul.f32 %v2384, %v2384
      %v2460 = vmul.f32 %v2385, %v2385
      %v2461 = vmul.f32 %v2386, %v2386
      %v2462 = vmul.f32 %v2387, %v2387
      %v2463 = vmul.f32 %v2388, %v2388
      %v2464 = vmul.f32 %v2389, %v2389
      %v2465 = vmul.f32 %v2390, %v2390
      %v2466 = vmul.f32 %v2391, %v2391
      %v2467 = vmul.f32 %v2392, %v2392
      %v2468 = vmul.f32 %v2393, %v2393
      %v2469 = vmul.f32 %v2394, %v2394
      %v2470 = vsel %vm503, %v2454, 0.0
      %v2471 = vsel %vm503, %v2455, 0.0
      %v2472 = vadd.f32 %v2470, %v2471
      %v2473 = vsel %vm503, %v2456, 0.0
      %v2474 = vadd.f32 %v2472, %v2473
      %v2475 = vsel %vm503, %v2457, 0.0
      %v2476 = vadd.f32 %v2474, %v2475
      %v2477 = vsel %vm503, %v2458, 0.0
      %v2478 = vadd.f32 %v2476, %v2477
      %v2479 = vsel %vm503, %v2459, 0.0
      %v2480 = vadd.f32 %v2478, %v2479
      %v2481 = vsel %vm503, %v2460, 0.0
      %v2482 = vadd.f32 %v2480, %v2481
      %v2483 = vsel %vm503, %v2461, 0.0
      %v2484 = vadd.f32 %v2482, %v2483
      %v2485 = vsel %vm503, %v2462, 0.0
      %v2486 = vadd.f32 %v2484, %v2485
      %v2487 = vsel %vm503, %v2463, 0.0
      %v2488 = vadd.f32 %v2486, %v2487
      %v2489 = vsel %vm503, %v2464, 0.0
      %v2490 = vadd.f32 %v2488, %v2489
      %v2491 = vsel %vm503, %v2465, 0.0
      %v2492 = vadd.f32 %v2490, %v2491
      %v2493 = vsel %vm503, %v2466, 0.0
      %v2494 = vadd.f32 %v2492, %v2493
      %v2495 = vsel %vm503, %v2467, 0.0
      %v2496 = vadd.f32 %v2494, %v2495
      %v2497 = vsel %vm503, %v2468, 0.0
      %v2498 = vadd.f32 %v2496, %v2497
      %v2499 = vsel %vm503, %v2469, 0.0
      %v2500 = vadd.f32 %v2498, %v2499
      %v2501 = vrot.slane %v2500, 4
      %v2502 = vadd.f32 %v2500, %v2501
      %v2503 = vrot.slane %v2502, 2
      %v2504 = vadd.f32 %v2502, %v2503
      %v2505 = vrot.slane %v2504, 1
      %v2506 = vadd.f32 %v2504, %v2505
      %v2507 = vld [vmem:[%s233] sm:$0x3]
      %vm2508 = vcmask 1040384
      %v2509 = vsel %vm2508, %v2453, %v2506
      %v2510 = vadd.f32 %v2507, %v2509
      %vm2511 = vcmask 254976
      %2512 = vst.msk [vmem:[%s233] sm:$0x3] %vm2511, %v2510
      %s2513 = smul.u32 8, %s21
      %p2514 = scmp.lt.s32.totalorder %s20, 1
      %s2515 = scalar_select %p2514, %s20, 1
      %p2516 = scmp.lt.s32.totalorder %s2513, 15
      %s2517 = scalar_select %p2516, %s2513, 15
      %s2518 = smul.addr %s2517, 2
      %s2519 = smul.addr %s2515, 32
      %s2520 = sadd.s32 %s2518, %s2519
      %s2521 = smul.addr %s2520, 8
      %s2522 = scalar_lea.vmem %s3, %s2521
      %p2523 = scmp.lt.s32.totalorder %s20, 1
      %s2524 = scalar_select %p2523, %s20, 1
      %s2525 = smul.addr %s2524, 2
      %s2526 = scalar_lea.vmem %s4, %s2525
      // Predicated region
      $region37: #{_lambda_.6} parent=31 // pred_check
        %p2527 = pneg %p116
      $region38: #{_lambda_.6} parent=31 // pred_check_branch
        %2529 = sbr.rel (%p2527) target = $region40
      $region39: #{_lambda_.6} parent=31 // pred_region
        %s2530 = smul.u32 8, %s21
      $region40: #{_lambda_.6} parent=31 // pred_fallthru
        _
      // Predicated region
      $region41: #{_lambda_.6} parent=31 // pred_check
        %p2531 = pneg %p142
      $region42: #{_lambda_.6} parent=31 // pred_check_branch
        %2533 = sbr.rel (%p2531) target = $region44
      $region43: #{_lambda_.6} parent=31 // pred_region
        _
      $region44: #{_lambda_.6} parent=31 // pred_fallthru
        _
    $region32: #{_lambda_.6} parent=5 // pred_fallthru
      _
    %p2534 = scmp.le.s32.totalorder 2, %s11
    // Predicated region
    $region45: #{_lambda_.6} parent=5 // pred_check
      %p2535 = pneg %p2534
    $region46: #{_lambda_.6} parent=5 // pred_check_branch
      %2537 = sbr.rel (%p2535) target = $region48
    $region47: #{_lambda_.6} parent=5 // pred_region
      %s2538 = ssub.s32 %s11, 2
      // Predicated region
      $region49: #{_lambda_.6} parent=47 // pred_check
        %p2539 = pneg %p122
      $region50: #{_lambda_.6} parent=47 // pred_check_branch
        %2541 = sbr.rel (%p2539) target = $region52
      $region51: #{_lambda_.6} parent=47 // pred_region
        %s2542 = smul.u32 8, %s23
        %p2543 = scmp.lt.s32.totalorder %s22, 1
        %s2544 = scalar_select %p2543, %s22, 1
        %p2545 = scmp.lt.s32.totalorder %s2542, 15
        %s2546 = scalar_select %p2545, %s2542, 15
        %s2547 = smul.addr %s2546, 2
        %s2548 = smul.addr %s2544, 32
        %s2549 = sadd.s32 %s2547, %s2548
        %s2550 = smul.addr %s2549, 8
        %s2551 = scalar_lea.vmem %s3, %s2550
      $region52: #{_lambda_.6} parent=47 // pred_fallthru
        _
      // Predicated region
      $region53: #{_lambda_.6} parent=47 // pred_check
        %p2552 = pneg %p148
      $region54: #{_lambda_.6} parent=47 // pred_check_branch
        %2554 = sbr.rel (%p2552) target = $region56
      $region55: #{_lambda_.6} parent=47 // pred_region
        %p2555 = scmp.lt.s32.totalorder %s22, 1
        %s2556 = scalar_select %p2555, %s22, 1
        %s2557 = smul.addr %s2556, 2
        %s2558 = scalar_lea.vmem %s4, %s2557
      $region56: #{_lambda_.6} parent=47 // pred_fallthru
        _
    $region48: #{_lambda_.6} parent=5 // pred_fallthru
      _
  $region6: #{_lambda_.6} parent=0 // loop_footer
    %s15 = sadd.s32 1, %s11
  $region7: #{_lambda_.6} parent=0 // loop_footer_branch
    %10 = sbr.rel target = $region3
  $region8: #{_lambda_.6} parent=0 // loop_exit
    _

</llo_original>
